<compile_context>
chip_gen: v6e
topology: v6e:2x2x1
jax: 0.10.0
libtpu: 0.0.40
codegen_flags: <defaults>
</compile_context>

<pallas_src>
import jax
import jax.numpy as jnp
from jax.experimental import pallas as pl
from jax.experimental.pallas import tpu as pltpu

BN_EPS = 1e-5
LANE = 128


def _round_up(x, m):
    return (x + m - 1) // m * m


def _choose_tile_m(m):
    # >=512 rows reaches ~85% of HBM roofline; small layers use one full tile.
    return 512 if m >= 512 else _round_up(m, 8)


# ----------------------------- Pallas kernels ------------------------------

def _matmul_stats_kernel(p_ref, w_ref, y_ref, stats_ref):
    # p_ref: (1, TM, K) bf16   w_ref: (1, K, Cp) bf16 (resident per phase)
    # y_ref: (1, TM, Cp) f32   stats_ref: (1, 1, 2, Cp) f32 [col_sum; col_sum_sq]
    y = jnp.dot(p_ref[0], w_ref[0], preferred_element_type=jnp.float32)
    y_ref[0] = y
    s = jnp.sum(y, axis=0, keepdims=True)
    ss = jnp.sum(y * y, axis=0, keepdims=True)
    stats_ref[...] = jnp.concatenate([s, ss], axis=0)[None, None, :, :]


def _bn_relu_kernel(y_ref, scale_ref, shift_ref, out_ref):
    # y_ref: (1, TM, Cp) f32   scale/shift: (1, Cp) f32 (resident)
    # out_ref: (1, TM, Cp) bf16
    out_ref[0] = jnp.maximum(
        y_ref[0] * scale_ref[...] + shift_ref[...], 0.0).astype(out_ref.dtype)


def _matmul_tanh_kernel(p_ref, w_ref, out_ref):
    y = jnp.dot(p_ref[0], w_ref[0], preferred_element_type=jnp.float32)
    out_ref[0] = jnp.tanh(y)


# -------------------------- pallas_call wrappers ----------------------------

_PP = pltpu.CompilerParams(dimension_semantics=("parallel", "parallel"))


def _phase_matmul_stats(patches, w_mats, tile_m):
    # patches: (P, M_pad, K) bf16   w_mats: (P, K, Cp) bf16
    p, m_pad, kdim = patches.shape
    cp = w_mats.shape[2]
    nt = m_pad // tile_m
    return pl.pallas_call(
        _matmul_stats_kernel,
        out_shape=(jax.ShapeDtypeStruct((p, m_pad, cp), jnp.float32),
                   jax.ShapeDtypeStruct((p, nt, 2, cp), jnp.float32)),
        grid=(p, nt),
        in_specs=[pl.BlockSpec((1, tile_m, kdim), lambda ph, i: (ph, i, 0)),
                  pl.BlockSpec((1, kdim, cp), lambda ph, i: (ph, 0, 0))],
        out_specs=(pl.BlockSpec((1, tile_m, cp), lambda ph, i: (ph, i, 0)),
                   pl.BlockSpec((1, 1, 2, cp), lambda ph, i: (ph, i, 0, 0))),
        compiler_params=_PP,
    )(patches, w_mats)


def _phase_bn_relu(y, scale, shift, tile_m):
    p, m_pad, cp = y.shape
    nt = m_pad // tile_m
    return pl.pallas_call(
        _bn_relu_kernel,
        out_shape=jax.ShapeDtypeStruct((p, m_pad, cp), jnp.bfloat16),
        grid=(p, nt),
        in_specs=[pl.BlockSpec((1, tile_m, cp), lambda ph, i: (ph, i, 0)),
                  pl.BlockSpec((1, cp), lambda ph, i: (0, 0)),
                  pl.BlockSpec((1, cp), lambda ph, i: (0, 0))],
        out_specs=pl.BlockSpec((1, tile_m, cp), lambda ph, i: (ph, i, 0)),
        compiler_params=_PP,
    )(y, scale, shift)


def _phase_matmul_tanh(patches, w_mats, tile_m):
    p, m_pad, kdim = patches.shape
    cp = w_mats.shape[2]
    nt = m_pad // tile_m
    return pl.pallas_call(
        _matmul_tanh_kernel,
        out_shape=jax.ShapeDtypeStruct((p, m_pad, cp), jnp.float32),
        grid=(p, nt),
        in_specs=[pl.BlockSpec((1, tile_m, kdim), lambda ph, i: (ph, i, 0)),
                  pl.BlockSpec((1, kdim, cp), lambda ph, i: (ph, 0, 0))],
        out_specs=pl.BlockSpec((1, tile_m, cp), lambda ph, i: (ph, i, 0)),
        compiler_params=_PP,
    )(patches, w_mats)


# ------------------------------ JAX glue code -------------------------------

def _subpixel_patches(x):
    """NHWC (N,H,W,C) -> (4 phases, N*H*W, 4*C) bf16 patches.

    ConvTranspose2d(k=4, s=2, p=1) decomposed per output-pixel parity (ry,rx):
      out[n, 2m+ry, 2q+rx, co] = sum_{wy,wx,ci}
          xp[n, m+ry+wy, q+rx+wx, ci] * W[ci, co, 3-ry-2*wy, 3-rx-2*wx],
    where xp is x zero-padded by 1 on every side."""
    n, h, w, c = x.shape
    xp = jnp.pad(x, ((0, 0), (1, 1), (1, 1), (0, 0)))
    phases = []
    for ry in range(2):
        for rx in range(2):
            wins = [xp[:, ry + wy:ry + wy + h, rx + wx:rx + wx + w, :]
                    for wy in range(2) for wx in range(2)]
            ph = jnp.stack(wins, axis=3)                   # (N, H, W, 4, C)
            phases.append(ph.reshape(n * h * w, 4 * c))
    return jnp.stack(phases, axis=0)                       # (4, N*H*W, 4*C)


def _interleave_phases(y_phases, n, h, w, c):
    """(4, N*H*W, C) per-phase outputs -> NHWC (N, 2H, 2W, C)."""
    y = y_phases.reshape(2, 2, n, h, w, c)
    y = y.transpose(2, 3, 0, 4, 1, 5)                      # (N, H, ry, W, rx, C)
    return y.reshape(n, 2 * h, 2 * w, c)


def _pad_rows(patches, tile_m):
    m = patches.shape[1]
    m_pad = _round_up(m, tile_m)
    if m_pad != m:   # zero rows contribute exactly 0 to sum / sum_sq
        patches = jnp.pad(patches, ((0, 0), (0, m_pad - m), (0, 0)))
    return patches, m


def _bn_scale_shift(sum_, sum_sq, count, gamma, beta):
    mean = sum_ / count
    var = jnp.maximum(sum_sq / count - mean * mean, 0.0)
    scale = gamma * jax.lax.rsqrt(var + BN_EPS)
    shift = beta - mean * scale
    return scale, shift


def _first_forward(z, w_mat, gamma, beta, c_out):
    """ConvTranspose2d(k=4, s=1, p=0) on a 1x1 input == plain matmul, + BN + ReLU."""
    n = z.shape[0]
    cols = w_mat.shape[1]                                  # 16*c_out, lane aligned
    tile_m = _choose_tile_m(n)
    zp = jnp.pad(z, ((0, _round_up(n, tile_m) - n), (0, 0)))
    y, stats = _phase_matmul_stats(zp[None], w_mat[None], tile_m)
    tot = jnp.sum(stats, axis=(0, 1)).reshape(2, 16, c_out).sum(axis=1)  # (2, c_out)
    scale, shift = _bn_scale_shift(tot[0], tot[1], 16.0 * n, gamma, beta)
    scale_cols = jnp.tile(scale, 16).reshape(1, cols)      # column order (ky, kx, co)
    shift_cols = jnp.tile(shift, 16).reshape(1, cols)
    act = _phase_bn_relu(y, scale_cols, shift_cols, tile_m)
    return act[0, :n].reshape(n, 4, 4, c_out)


def _block_forward(x, w_mats, gamma_p, beta_p, c_out):
    """ConvTranspose2d(k=4, s=2, p=1, bias=False) + BatchNorm2d + ReLU (NHWC bf16)."""
    n, h, w, _ = x.shape
    tile_m = _choose_tile_m(n * h * w)
    patches, m = _pad_rows(_subpixel_patches(x), tile_m)
    cp = w_mats.shape[2]
    y, stats = _phase_matmul_stats(patches, w_mats, tile_m)
    tot = jnp.sum(stats, axis=(0, 1))                      # (2, Cp), f32 accumulation
    scale, shift = _bn_scale_shift(tot[0], tot[1], 4.0 * m, gamma_p, beta_p)
    act = _phase_bn_relu(y, scale.reshape(1, cp), shift.reshape(1, cp), tile_m)
    return _interleave_phases(act[:, :m, :c_out], n, h, w, c_out)


def _final_forward(x, w_mats, c_out):
    """ConvTranspose2d(k=4, s=2, p=1, bias=False) + Tanh."""
    n, h, w, _ = x.shape
    tile_m = _choose_tile_m(n * h * w)
    patches, m = _pad_rows(_subpixel_patches(x), tile_m)
    y = _phase_matmul_tanh(patches, w_mats, tile_m)
    return _interleave_phases(y[:, :m, :c_out], n, h, w, c_out)


def make_generator_forward(channel_image, feature_channel):
    c_first = feature_channel * 16
    block_c_out = (feature_channel * 8, feature_channel * 4, feature_channel * 2)

    @jax.jit
    def forward(x_nchw, first_params, block_params, final_w_mats):
        n = x_nchw.shape[0]
        z = x_nchw.reshape(n, -1).astype(jnp.bfloat16)     # (N, z_dim, 1, 1) -> (N, z)
        w1, g1, b1 = first_params
        x = _first_forward(z, w1, g1, b1, c_first)
        for (w_mats, gamma_p, beta_p), c_out in zip(block_params, block_c_out):
            x = _block_forward(x, w_mats, gamma_p, beta_p, c_out)
        img = _final_forward(x, final_w_mats, channel_image)
        return img.transpose(0, 3, 1, 2)                   # NHWC -> NCHW
    return forward


# ------------------------------ Parameters -----------------------------------

def _first_weight_matrix(w):
    """PyTorch (z, C_out, 4, 4) -> (z, 16*C_out) bf16; columns ordered (ky, kx, co)."""
    z, c_out = w.shape[:2]
    return w.transpose(0, 2, 3, 1).reshape(z, 16 * c_out).astype(jnp.bfloat16)


def _subpixel_weight_matrices(w, cp):
    """PyTorch (C_in, C_out, 4, 4) -> (4 phases, 4*C_in, Cp) bf16.

    Phase order (ry, rx) row-major; rows ordered ((wy, wx), ci) to match
    _subpixel_patches; tap = W[:, :, 3-ry-2*wy, 3-rx-2*wx]; columns zero-padded
    to the lane multiple Cp."""
    c_in, c_out = w.shape[:2]
    mats = []
    for ry in range(2):
        for rx in range(2):
            taps = [w[:, :, 3 - ry - 2 * wy, 3 - rx - 2 * wx]
                    for wy in range(2) for wx in range(2)]
            mats.append(jnp.stack(taps, axis=0).reshape(4 * c_in, c_out))
    m = jnp.stack(mats, axis=0)                            # (4, 4*C_in, C_out)
    return jnp.pad(m, ((0, 0), (0, 0), (0, cp - c_out))).astype(jnp.bfloat16)


def init_generator_params(key, z_dimension, channel_image, feature_channel):
    ksz = 4
    c1 = feature_channel * 16
    specs = [(c1, feature_channel * 8),
             (feature_channel * 8, feature_channel * 4),
             (feature_channel * 4, feature_channel * 2)]
    keys = jax.random.split(key, len(specs) + 2)

    w1 = 0.02 * jax.random.normal(keys[0], (z_dimension, c1, ksz, ksz), jnp.float32)
    first = (_first_weight_matrix(w1),
             jnp.ones((c1,), jnp.float32),                  # BN default gamma
             jnp.zeros((c1,), jnp.float32))                 # BN default beta

    blocks = []
    for i, (cin, cout) in enumerate(specs):
        w = 0.02 * jax.random.normal(keys[i + 1], (cin, cout, ksz, ksz), jnp.float32)
        cp = _round_up(cout, LANE)
        gamma_p = jnp.pad(jnp.ones((cout,), jnp.float32), (0, cp - cout))
        beta_p = jnp.zeros((cp,), jnp.float32)
        blocks.append((_subpixel_weight_matrices(w, cp), gamma_p, beta_p))

    w_final = 0.02 * jax.random.normal(
        keys[-1], (feature_channel * 2, channel_image, ksz, ksz), jnp.float32)
    final_w = _subpixel_weight_matrices(w_final, _round_up(channel_image, LANE))
    return first, blocks, final_w


if __name__ == "__main__":
    z_dimension, channel_image, feature_channel, batch = 32, 3, 4, 2

    key = jax.random.PRNGKey(0)
    k_params, k_x = jax.random.split(key)
    first, blocks, final_w = init_generator_params(
        k_params, z_dimension, channel_image, feature_channel)
    forward = make_generator_forward(channel_image, feature_channel)

    # Latent input, same convention as PyTorch: (N, z_dim, 1, 1), NCHW.
    x = jax.random.normal(k_x, (batch, z_dimension, 1, 1), jnp.float32)

    out = jax.block_until_ready(forward(x, first, blocks, final_w))

    assert out.shape == (batch, channel_image, 64, 64), out.shape
    assert bool(jnp.all(jnp.isfinite(out)))
    assert bool(jnp.all(jnp.abs(out) <= 1.0 + 1e-6))  # tanh range
    print("KERNEL_OK")
</pallas_src>

<mosaic_0001>
module attributes {stable_mosaic.version = 11 : i64} {
  func.func @_matmul_stats_kernel(%arg0: i32, %arg1: i32, %arg2: memref<1x8x32xbf16, #tpu.memory_space<vmem>>, %arg3: memref<1x32x1024xbf16, #tpu.memory_space<vmem>>, %arg4: memref<1x8x1024xf32, #tpu.memory_space<vmem>>, %arg5: memref<1x1x2x1024xf32, #tpu.memory_space<vmem>>) attributes {dimension_semantics = [#tpu.dimension_semantics<parallel>, #tpu.dimension_semantics<parallel>], iteration_bounds = array<i64: 1, 1>, scalar_prefetch = 0 : i64, scratch_operands = 0 : i64, tpu.core_type = #tpu.core_type<tc>, window_params = [{transform_indices = @transform_0, window_bounds = array<i64: 1, 8, 32>}, {transform_indices = @transform_1, window_bounds = array<i64: 1, 32, 1024>}, {transform_indices = @transform_2, window_bounds = array<i64: 1, 8, 1024>}, {transform_indices = @transform_3, window_bounds = array<i64: 1, 1, 2, 1024>}]} {
    %c0 = arith.constant 0 : index
    %c0_0 = arith.constant 0 : index
    %c0_1 = arith.constant 0 : index
    %0 = vector.load %arg2[%c0, %c0_0, %c0_1] : memref<1x8x32xbf16, #tpu.memory_space<vmem>>, vector<1x8x32xbf16>
    %1 = vector.shape_cast %0 : vector<1x8x32xbf16> to vector<8x32xbf16>
    %c0_2 = arith.constant 0 : index
    %c0_3 = arith.constant 0 : index
    %c0_4 = arith.constant 0 : index
    %2 = vector.load %arg3[%c0_2, %c0_3, %c0_4] : memref<1x32x1024xbf16, #tpu.memory_space<vmem>>, vector<1x32x1024xbf16>
    %3 = vector.shape_cast %2 : vector<1x32x1024xbf16> to vector<32x1024xbf16>
    %cst = arith.constant dense<0.000000e+00> : vector<8x1024xf32>
    %4 = tpu.matmul %1, %3, %cst {dimension_numbers = #tpu.dot_dimension_numbers<[1], [0], [0], [1], [0, 0, 1, 1], [], []>} : vector<8x32xbf16>, vector<32x1024xbf16>, vector<8x1024xf32> -> vector<8x1024xf32>
    %c0_5 = arith.constant 0 : index
    %c0_6 = arith.constant 0 : index
    %c0_7 = arith.constant 0 : index
    %5 = vector.load %arg4[%c0_5, %c0_6, %c0_7] : memref<1x8x1024xf32, #tpu.memory_space<vmem>>, vector<1x8x1024xf32>
    %6 = vector.shape_cast %5 : vector<1x8x1024xf32> to vector<8x1024xf32>
    %7 = vector.shape_cast %4 : vector<8x1024xf32> to vector<1x8x1024xf32>
    tpu.vector_store %arg4[%c0_5, %c0_6, %c0_7], %7 {strides = array<i32>} : memref<1x8x1024xf32, #tpu.memory_space<vmem>>, vector<1x8x1024xf32>,
    %cst_8 = arith.constant dense<0.000000e+00> : vector<1024xf32>
    %8 = vector.multi_reduction <add>, %4, %cst_8 [0] : vector<8x1024xf32> to vector<1024xf32>
    %9 = vector.shape_cast %8 : vector<1024xf32> to vector<1x1024xf32>
    %10 = arith.mulf %4, %4 : vector<8x1024xf32>
    %cst_9 = arith.constant dense<0.000000e+00> : vector<1024xf32>
    %11 = vector.multi_reduction <add>, %10, %cst_9 [0] : vector<8x1024xf32> to vector<1024xf32>
    %12 = vector.shape_cast %11 : vector<1024xf32> to vector<1x1024xf32>
    %13 = tpu.concatenate %9, %12 in 0 : vector<1x1024xf32>, vector<1x1024xf32> -> vector<2x1024xf32>
    %14 = vector.shape_cast %13 : vector<2x1024xf32> to vector<1x1x2x1024xf32>
    %c0_10 = arith.constant 0 : index
    %c0_11 = arith.constant 0 : index
    %c0_12 = arith.constant 0 : index
    %c0_13 = arith.constant 0 : index
    %15 = vector.load %arg5[%c0_10, %c0_11, %c0_12, %c0_13] : memref<1x1x2x1024xf32, #tpu.memory_space<vmem>>, vector<1x1x2x1024xf32>
    tpu.vector_store %arg5[%c0_10, %c0_11, %c0_12, %c0_13], %14 {strides = array<i32>} : memref<1x1x2x1024xf32, #tpu.memory_space<vmem>>, vector<1x1x2x1024xf32>,
    return
  }
  func.func @transform_0(%arg0: i32, %arg1: i32) -> (i32, i32, i32) {
    %c0_i32 = arith.constant 0 : i32
    %c0_i32_0 = arith.constant 0 : i32
    return %arg0, %arg1, %c0_i32 : i32, i32, i32
  }
  func.func @transform_1(%arg0: i32, %arg1: i32) -> (i32, i32, i32) {
    %c0_i32 = arith.constant 0 : i32
    %c0_i32_0 = arith.constant 0 : i32
    %c0_i32_1 = arith.constant 0 : i32
    return %arg0, %c0_i32, %c0_i32_0 : i32, i32, i32
  }
  func.func @transform_2(%arg0: i32, %arg1: i32) -> (i32, i32, i32) {
    %c0_i32 = arith.constant 0 : i32
    %c0_i32_0 = arith.constant 0 : i32
    return %arg0, %arg1, %c0_i32 : i32, i32, i32
  }
  func.func @transform_3(%arg0: i32, %arg1: i32) -> (i32, i32, i32, i32) {
    %c0_i32 = arith.constant 0 : i32
    %c0_i32_0 = arith.constant 0 : i32
    %c0_i32_1 = arith.constant 0 : i32
    return %arg0, %arg1, %c0_i32, %c0_i32_0 : i32, i32, i32, i32
  }
}

module attributes {stable_mosaic.version = 11 : i64} {
  func.func @_bn_relu_kernel(%arg0: i32, %arg1: i32, %arg2: memref<1x8x1024xf32, #tpu.memory_space<vmem>>, %arg3: memref<1x1024xf32, #tpu.memory_space<vmem>>, %arg4: memref<1x1024xf32, #tpu.memory_space<vmem>>, %arg5: memref<1x8x1024xbf16, #tpu.memory_space<vmem>>) attributes {dimension_semantics = [#tpu.dimension_semantics<parallel>, #tpu.dimension_semantics<parallel>], iteration_bounds = array<i64: 1, 1>, scalar_prefetch = 0 : i64, scratch_operands = 0 : i64, tpu.core_type = #tpu.core_type<tc>, window_params = [{transform_indices = @transform_0, window_bounds = array<i64: 1, 8, 1024>}, {pipeline_mode = #tpu.pipeline_mode<synchronous>, transform_indices = @transform_1, window_bounds = array<i64: 1, 1024>}, {pipeline_mode = #tpu.pipeline_mode<synchronous>, transform_indices = @transform_2, window_bounds = array<i64: 1, 1024>}, {transform_indices = @transform_3, window_bounds = array<i64: 1, 8, 1024>}]} {
    %c0 = arith.constant 0 : index
    %c0_0 = arith.constant 0 : index
    %c0_1 = arith.constant 0 : index
    %0 = vector.load %arg2[%c0, %c0_0, %c0_1] : memref<1x8x1024xf32, #tpu.memory_space<vmem>>, vector<1x8x1024xf32>
    %1 = vector.shape_cast %0 : vector<1x8x1024xf32> to vector<8x1024xf32>
    %c0_2 = arith.constant 0 : index
    %c0_3 = arith.constant 0 : index
    %2 = vector.load %arg3[%c0_2, %c0_3] : memref<1x1024xf32, #tpu.memory_space<vmem>>, vector<1x1024xf32>
    %3 = vector.broadcast %2 : vector<1x1024xf32> to vector<8x1024xf32>
    %4 = arith.mulf %1, %3 : vector<8x1024xf32>
    %c0_4 = arith.constant 0 : index
    %c0_5 = arith.constant 0 : index
    %5 = vector.load %arg4[%c0_4, %c0_5] : memref<1x1024xf32, #tpu.memory_space<vmem>>, vector<1x1024xf32>
    %6 = vector.broadcast %5 : vector<1x1024xf32> to vector<8x1024xf32>
    %7 = arith.addf %4, %6 : vector<8x1024xf32>
    %cst = arith.constant 0.000000e+00 : f32
    %8 = vector.broadcast %cst : f32 to vector<8x1024xf32>
    %9 = arith.maximumf %7, %8 : vector<8x1024xf32>
    %10 = arith.truncf %9 : vector<8x1024xf32> to vector<8x1024xbf16>
    %c0_6 = arith.constant 0 : index
    %c0_7 = arith.constant 0 : index
    %c0_8 = arith.constant 0 : index
    %11 = vector.load %arg5[%c0_6, %c0_7, %c0_8] : memref<1x8x1024xbf16, #tpu.memory_space<vmem>>, vector<1x8x1024xbf16>
    %12 = vector.shape_cast %11 : vector<1x8x1024xbf16> to vector<8x1024xbf16>
    %13 = vector.shape_cast %10 : vector<8x1024xbf16> to vector<1x8x1024xbf16>
    tpu.vector_store %arg5[%c0_6, %c0_7, %c0_8], %13 {strides = array<i32>} : memref<1x8x1024xbf16, #tpu.memory_space<vmem>>, vector<1x8x1024xbf16>,
    return
  }
  func.func @transform_0(%arg0: i32, %arg1: i32) -> (i32, i32, i32) {
    %c0_i32 = arith.constant 0 : i32
    %c0_i32_0 = arith.constant 0 : i32
    return %arg0, %arg1, %c0_i32 : i32, i32, i32
  }
  func.func @transform_1(%arg0: i32, %arg1: i32) -> (i32, i32) {
    %c0_i32 = arith.constant 0 : i32
    %c0_i32_0 = arith.constant 0 : i32
    %c0_i32_1 = arith.constant 0 : i32
    return %c0_i32, %c0_i32_0 : i32, i32
  }
  func.func @transform_2(%arg0: i32, %arg1: i32) -> (i32, i32) {
    %c0_i32 = arith.constant 0 : i32
    %c0_i32_0 = arith.constant 0 : i32
    %c0_i32_1 = arith.constant 0 : i32
    return %c0_i32, %c0_i32_0 : i32, i32
  }
  func.func @transform_3(%arg0: i32, %arg1: i32) -> (i32, i32, i32) {
    %c0_i32 = arith.constant 0 : i32
    %c0_i32_0 = arith.constant 0 : i32
    return %arg0, %arg1, %c0_i32 : i32, i32, i32
  }
}

module attributes {stable_mosaic.version = 11 : i64} {
  func.func @_matmul_stats_kernel(%arg0: i32, %arg1: i32, %arg2: memref<1x32x256xbf16, #tpu.memory_space<vmem>>, %arg3: memref<1x256x128xbf16, #tpu.memory_space<vmem>>, %arg4: memref<1x32x128xf32, #tpu.memory_space<vmem>>, %arg5: memref<1x1x2x128xf32, #tpu.memory_space<vmem>>) attributes {dimension_semantics = [#tpu.dimension_semantics<parallel>, #tpu.dimension_semantics<parallel>], iteration_bounds = array<i64: 4, 1>, scalar_prefetch = 0 : i64, scratch_operands = 0 : i64, tpu.core_type = #tpu.core_type<tc>, window_params = [{transform_indices = @transform_0, window_bounds = array<i64: 1, 32, 256>}, {transform_indices = @transform_1, window_bounds = array<i64: 1, 256, 128>}, {transform_indices = @transform_2, window_bounds = array<i64: 1, 32, 128>}, {transform_indices = @transform_3, window_bounds = array<i64: 1, 1, 2, 128>}]} {
    %c0 = arith.constant 0 : index
    %c0_0 = arith.constant 0 : index
    %c0_1 = arith.constant 0 : index
    %0 = vector.load %arg2[%c0, %c0_0, %c0_1] : memref<1x32x256xbf16, #tpu.memory_space<vmem>>, vector<1x32x256xbf16>
    %1 = vector.shape_cast %0 : vector<1x32x256xbf16> to vector<32x256xbf16>
    %c0_2 = arith.constant 0 : index
    %c0_3 = arith.constant 0 : index
    %c0_4 = arith.constant 0 : index
    %2 = vector.load %arg3[%c0_2, %c0_3, %c0_4] : memref<1x256x128xbf16, #tpu.memory_space<vmem>>, vector<1x256x128xbf16>
    %3 = vector.shape_cast %2 : vector<1x256x128xbf16> to vector<256x128xbf16>
    %cst = arith.constant dense<0.000000e+00> : vector<32x128xf32>
    %4 = tpu.matmul %1, %3, %cst {dimension_numbers = #tpu.dot_dimension_numbers<[1], [0], [0], [1], [0, 0, 1, 1], [], []>} : vector<32x256xbf16>, vector<256x128xbf16>, vector<32x128xf32> -> vector<32x128xf32>
    %c0_5 = arith.constant 0 : index
    %c0_6 = arith.constant 0 : index
    %c0_7 = arith.constant 0 : index
    %5 = vector.load %arg4[%c0_5, %c0_6, %c0_7] : memref<1x32x128xf32, #tpu.memory_space<vmem>>, vector<1x32x128xf32>
    %6 = vector.shape_cast %5 : vector<1x32x128xf32> to vector<32x128xf32>
    %7 = vector.shape_cast %4 : vector<32x128xf32> to vector<1x32x128xf32>
    tpu.vector_store %arg4[%c0_5, %c0_6, %c0_7], %7 {strides = array<i32>} : memref<1x32x128xf32, #tpu.memory_space<vmem>>, vector<1x32x128xf32>,
    %cst_8 = arith.constant dense<0.000000e+00> : vector<128xf32>
    %8 = vector.multi_reduction <add>, %4, %cst_8 [0] : vector<32x128xf32> to vector<128xf32>
    %9 = vector.shape_cast %8 : vector<128xf32> to vector<1x128xf32>
    %10 = arith.mulf %4, %4 : vector<32x128xf32>
    %cst_9 = arith.constant dense<0.000000e+00> : vector<128xf32>
    %11 = vector.multi_reduction <add>, %10, %cst_9 [0] : vector<32x128xf32> to vector<128xf32>
    %12 = vector.shape_cast %11 : vector<128xf32> to vector<1x128xf32>
    %13 = tpu.concatenate %9, %12 in 0 : vector<1x128xf32>, vector<1x128xf32> -> vector<2x128xf32>
    %14 = vector.shape_cast %13 : vector<2x128xf32> to vector<1x1x2x128xf32>
    %c0_10 = arith.constant 0 : index
    %c0_11 = arith.constant 0 : index
    %c0_12 = arith.constant 0 : index
    %c0_13 = arith.constant 0 : index
    %15 = vector.load %arg5[%c0_10, %c0_11, %c0_12, %c0_13] : memref<1x1x2x128xf32, #tpu.memory_space<vmem>>, vector<1x1x2x128xf32>
    tpu.vector_store %arg5[%c0_10, %c0_11, %c0_12, %c0_13], %14 {strides = array<i32>} : memref<1x1x2x128xf32, #tpu.memory_space<vmem>>, vector<1x1x2x128xf32>,
    return
  }
  func.func @transform_0(%arg0: i32, %arg1: i32) -> (i32, i32, i32) {
    %c0_i32 = arith.constant 0 : i32
    %c0_i32_0 = arith.constant 0 : i32
    return %arg0, %arg1, %c0_i32 : i32, i32, i32
  }
  func.func @transform_1(%arg0: i32, %arg1: i32) -> (i32, i32, i32) {
    %c0_i32 = arith.constant 0 : i32
    %c0_i32_0 = arith.constant 0 : i32
    %c0_i32_1 = arith.constant 0 : i32
    return %arg0, %c0_i32, %c0_i32_0 : i32, i32, i32
  }
  func.func @transform_2(%arg0: i32, %arg1: i32) -> (i32, i32, i32) {
    %c0_i32 = arith.constant 0 : i32
    %c0_i32_0 = arith.constant 0 : i32
    return %arg0, %arg1, %c0_i32 : i32, i32, i32
  }
  func.func @transform_3(%arg0: i32, %arg1: i32) -> (i32, i32, i32, i32) {
    %c0_i32 = arith.constant 0 : i32
    %c0_i32_0 = arith.constant 0 : i32
    %c0_i32_1 = arith.constant 0 : i32
    return %arg0, %arg1, %c0_i32, %c0_i32_0 : i32, i32, i32, i32
  }
}

module attributes {stable_mosaic.version = 11 : i64} {
  func.func @_bn_relu_kernel(%arg0: i32, %arg1: i32, %arg2: memref<1x32x128xf32, #tpu.memory_space<vmem>>, %arg3: memref<1x128xf32, #tpu.memory_space<vmem>>, %arg4: memref<1x128xf32, #tpu.memory_space<vmem>>, %arg5: memref<1x32x128xbf16, #tpu.memory_space<vmem>>) attributes {dimension_semantics = [#tpu.dimension_semantics<parallel>, #tpu.dimension_semantics<parallel>], iteration_bounds = array<i64: 4, 1>, scalar_prefetch = 0 : i64, scratch_operands = 0 : i64, tpu.core_type = #tpu.core_type<tc>, window_params = [{transform_indices = @transform_0, window_bounds = array<i64: 1, 32, 128>}, {pipeline_mode = #tpu.pipeline_mode<synchronous>, transform_indices = @transform_1, window_bounds = array<i64: 1, 128>}, {pipeline_mode = #tpu.pipeline_mode<synchronous>, transform_indices = @transform_2, window_bounds = array<i64: 1, 128>}, {transform_indices = @transform_3, window_bounds = array<i64: 1, 32, 128>}]} {
    %c0 = arith.constant 0 : index
    %c0_0 = arith.constant 0 : index
    %c0_1 = arith.constant 0 : index
    %0 = vector.load %arg2[%c0, %c0_0, %c0_1] : memref<1x32x128xf32, #tpu.memory_space<vmem>>, vector<1x32x128xf32>
    %1 = vector.shape_cast %0 : vector<1x32x128xf32> to vector<32x128xf32>
    %c0_2 = arith.constant 0 : index
    %c0_3 = arith.constant 0 : index
    %2 = vector.load %arg3[%c0_2, %c0_3] : memref<1x128xf32, #tpu.memory_space<vmem>>, vector<1x128xf32>
    %3 = vector.broadcast %2 : vector<1x128xf32> to vector<32x128xf32>
    %4 = arith.mulf %1, %3 : vector<32x128xf32>
    %c0_4 = arith.constant 0 : index
    %c0_5 = arith.constant 0 : index
    %5 = vector.load %arg4[%c0_4, %c0_5] : memref<1x128xf32, #tpu.memory_space<vmem>>, vector<1x128xf32>
    %6 = vector.broadcast %5 : vector<1x128xf32> to vector<32x128xf32>
    %7 = arith.addf %4, %6 : vector<32x128xf32>
    %cst = arith.constant 0.000000e+00 : f32
    %8 = vector.broadcast %cst : f32 to vector<32x128xf32>
    %9 = arith.maximumf %7, %8 : vector<32x128xf32>
    %10 = arith.truncf %9 : vector<32x128xf32> to vector<32x128xbf16>
    %c0_6 = arith.constant 0 : index
    %c0_7 = arith.constant 0 : index
    %c0_8 = arith.constant 0 : index
    %11 = vector.load %arg5[%c0_6, %c0_7, %c0_8] : memref<1x32x128xbf16, #tpu.memory_space<vmem>>, vector<1x32x128xbf16>
    %12 = vector.shape_cast %11 : vector<1x32x128xbf16> to vector<32x128xbf16>
    %13 = vector.shape_cast %10 : vector<32x128xbf16> to vector<1x32x128xbf16>
    tpu.vector_store %arg5[%c0_6, %c0_7, %c0_8], %13 {strides = array<i32>} : memref<1x32x128xbf16, #tpu.memory_space<vmem>>, vector<1x32x128xbf16>,
    return
  }
  func.func @transform_0(%arg0: i32, %arg1: i32) -> (i32, i32, i32) {
    %c0_i32 = arith.constant 0 : i32
    %c0_i32_0 = arith.constant 0 : i32
    return %arg0, %arg1, %c0_i32 : i32, i32, i32
  }
  func.func @transform_1(%arg0: i32, %arg1: i32) -> (i32, i32) {
    %c0_i32 = arith.constant 0 : i32
    %c0_i32_0 = arith.constant 0 : i32
    %c0_i32_1 = arith.constant 0 : i32
    return %c0_i32, %c0_i32_0 : i32, i32
  }
  func.func @transform_2(%arg0: i32, %arg1: i32) -> (i32, i32) {
    %c0_i32 = arith.constant 0 : i32
    %c0_i32_0 = arith.constant 0 : i32
    %c0_i32_1 = arith.constant 0 : i32
    return %c0_i32, %c0_i32_0 : i32, i32
  }
  func.func @transform_3(%arg0: i32, %arg1: i32) -> (i32, i32, i32) {
    %c0_i32 = arith.constant 0 : i32
    %c0_i32_0 = arith.constant 0 : i32
    return %arg0, %arg1, %c0_i32 : i32, i32, i32
  }
}

module attributes {stable_mosaic.version = 11 : i64} {
  func.func @_matmul_stats_kernel(%arg0: i32, %arg1: i32, %arg2: memref<1x128x128xbf16, #tpu.memory_space<vmem>>, %arg3: memref<1x128x128xbf16, #tpu.memory_space<vmem>>, %arg4: memref<1x128x128xf32, #tpu.memory_space<vmem>>, %arg5: memref<1x1x2x128xf32, #tpu.memory_space<vmem>>) attributes {dimension_semantics = [#tpu.dimension_semantics<parallel>, #tpu.dimension_semantics<parallel>], iteration_bounds = array<i64: 4, 1>, scalar_prefetch = 0 : i64, scratch_operands = 0 : i64, tpu.core_type = #tpu.core_type<tc>, window_params = [{transform_indices = @transform_0, window_bounds = array<i64: 1, 128, 128>}, {transform_indices = @transform_1, window_bounds = array<i64: 1, 128, 128>}, {transform_indices = @transform_2, window_bounds = array<i64: 1, 128, 128>}, {transform_indices = @transform_3, window_bounds = array<i64: 1, 1, 2, 128>}]} {
    %c0 = arith.constant 0 : index
    %c0_0 = arith.constant 0 : index
    %c0_1 = arith.constant 0 : index
    %0 = vector.load %arg2[%c0, %c0_0, %c0_1] : memref<1x128x128xbf16, #tpu.memory_space<vmem>>, vector<1x128x128xbf16>
    %1 = vector.shape_cast %0 : vector<1x128x128xbf16> to vector<128x128xbf16>
    %c0_2 = arith.constant 0 : index
    %c0_3 = arith.constant 0 : index
    %c0_4 = arith.constant 0 : index
    %2 = vector.load %arg3[%c0_2, %c0_3, %c0_4] : memref<1x128x128xbf16, #tpu.memory_space<vmem>>, vector<1x128x128xbf16>
    %3 = vector.shape_cast %2 : vector<1x128x128xbf16> to vector<128x128xbf16>
    %cst = arith.constant dense<0.000000e+00> : vector<128x128xf32>
    %4 = tpu.matmul %1, %3, %cst {dimension_numbers = #tpu.dot_dimension_numbers<[1], [0], [0], [1], [0, 0, 1, 1], [], []>} : vector<128x128xbf16>, vector<128x128xbf16>, vector<128x128xf32> -> vector<128x128xf32>
    %c0_5 = arith.constant 0 : index
    %c0_6 = arith.constant 0 : index
    %c0_7 = arith.constant 0 : index
    %5 = vector.load %arg4[%c0_5, %c0_6, %c0_7] : memref<1x128x128xf32, #tpu.memory_space<vmem>>, vector<1x128x128xf32>
    %6 = vector.shape_cast %5 : vector<1x128x128xf32> to vector<128x128xf32>
    %7 = vector.shape_cast %4 : vector<128x128xf32> to vector<1x128x128xf32>
    tpu.vector_store %arg4[%c0_5, %c0_6, %c0_7], %7 {strides = array<i32>} : memref<1x128x128xf32, #tpu.memory_space<vmem>>, vector<1x128x128xf32>,
    %cst_8 = arith.constant dense<0.000000e+00> : vector<128xf32>
    %8 = vector.multi_reduction <add>, %4, %cst_8 [0] : vector<128x128xf32> to vector<128xf32>
    %9 = vector.shape_cast %8 : vector<128xf32> to vector<1x128xf32>
    %10 = arith.mulf %4, %4 : vector<128x128xf32>
    %cst_9 = arith.constant dense<0.000000e+00> : vector<128xf32>
    %11 = vector.multi_reduction <add>, %10, %cst_9 [0] : vector<128x128xf32> to vector<128xf32>
    %12 = vector.shape_cast %11 : vector<128xf32> to vector<1x128xf32>
    %13 = tpu.concatenate %9, %12 in 0 : vector<1x128xf32>, vector<1x128xf32> -> vector<2x128xf32>
    %14 = vector.shape_cast %13 : vector<2x128xf32> to vector<1x1x2x128xf32>
    %c0_10 = arith.constant 0 : index
    %c0_11 = arith.constant 0 : index
    %c0_12 = arith.constant 0 : index
    %c0_13 = arith.constant 0 : index
    %15 = vector.load %arg5[%c0_10, %c0_11, %c0_12, %c0_13] : memref<1x1x2x128xf32, #tpu.memory_space<vmem>>, vector<1x1x2x128xf32>
    tpu.vector_store %arg5[%c0_10, %c0_11, %c0_12, %c0_13], %14 {strides = array<i32>} : memref<1x1x2x128xf32, #tpu.memory_space<vmem>>, vector<1x1x2x128xf32>,
    return
  }
  func.func @transform_0(%arg0: i32, %arg1: i32) -> (i32, i32, i32) {
    %c0_i32 = arith.constant 0 : i32
    %c0_i32_0 = arith.constant 0 : i32
    return %arg0, %arg1, %c0_i32 : i32, i32, i32
  }
  func.func @transform_1(%arg0: i32, %arg1: i32) -> (i32, i32, i32) {
    %c0_i32 = arith.constant 0 : i32
    %c0_i32_0 = arith.constant 0 : i32
    %c0_i32_1 = arith.constant 0 : i32
    return %arg0, %c0_i32, %c0_i32_0 : i32, i32, i32
  }
  func.func @transform_2(%arg0: i32, %arg1: i32) -> (i32, i32, i32) {
    %c0_i32 = arith.constant 0 : i32
    %c0_i32_0 = arith.constant 0 : i32
    return %arg0, %arg1, %c0_i32 : i32, i32, i32
  }
  func.func @transform_3(%arg0: i32, %arg1: i32) -> (i32, i32, i32, i32) {
    %c0_i32 = arith.constant 0 : i32
    %c0_i32_0 = arith.constant 0 : i32
    %c0_i32_1 = arith.constant 0 : i32
    return %arg0, %arg1, %c0_i32, %c0_i32_0 : i32, i32, i32, i32
  }
}

module attributes {stable_mosaic.version = 11 : i64} {
  func.func @_bn_relu_kernel(%arg0: i32, %arg1: i32, %arg2: memref<1x128x128xf32, #tpu.memory_space<vmem>>, %arg3: memref<1x128xf32, #tpu.memory_space<vmem>>, %arg4: memref<1x128xf32, #tpu.memory_space<vmem>>, %arg5: memref<1x128x128xbf16, #tpu.memory_space<vmem>>) attributes {dimension_semantics = [#tpu.dimension_semantics<parallel>, #tpu.dimension_semantics<parallel>], iteration_bounds = array<i64: 4, 1>, scalar_prefetch = 0 : i64, scratch_operands = 0 : i64, tpu.core_type = #tpu.core_type<tc>, window_params = [{transform_indices = @transform_0, window_bounds = array<i64: 1, 128, 128>}, {pipeline_mode = #tpu.pipeline_mode<synchronous>, transform_indices = @transform_1, window_bounds = array<i64: 1, 128>}, {pipeline_mode = #tpu.pipeline_mode<synchronous>, transform_indices = @transform_2, window_bounds = array<i64: 1, 128>}, {transform_indices = @transform_3, window_bounds = array<i64: 1, 128, 128>}]} {
    %c0 = arith.constant 0 : index
    %c0_0 = arith.constant 0 : index
    %c0_1 = arith.constant 0 : index
    %0 = vector.load %arg2[%c0, %c0_0, %c0_1] : memref<1x128x128xf32, #tpu.memory_space<vmem>>, vector<1x128x128xf32>
    %1 = vector.shape_cast %0 : vector<1x128x128xf32> to vector<128x128xf32>
    %c0_2 = arith.constant 0 : index
    %c0_3 = arith.constant 0 : index
    %2 = vector.load %arg3[%c0_2, %c0_3] : memref<1x128xf32, #tpu.memory_space<vmem>>, vector<1x128xf32>
    %3 = vector.broadcast %2 : vector<1x128xf32> to vector<128x128xf32>
    %4 = arith.mulf %1, %3 : vector<128x128xf32>
    %c0_4 = arith.constant 0 : index
    %c0_5 = arith.constant 0 : index
    %5 = vector.load %arg4[%c0_4, %c0_5] : memref<1x128xf32, #tpu.memory_space<vmem>>, vector<1x128xf32>
    %6 = vector.broadcast %5 : vector<1x128xf32> to vector<128x128xf32>
    %7 = arith.addf %4, %6 : vector<128x128xf32>
    %cst = arith.constant 0.000000e+00 : f32
    %8 = vector.broadcast %cst : f32 to vector<128x128xf32>
    %9 = arith.maximumf %7, %8 : vector<128x128xf32>
    %10 = arith.truncf %9 : vector<128x128xf32> to vector<128x128xbf16>
    %c0_6 = arith.constant 0 : index
    %c0_7 = arith.constant 0 : index
    %c0_8 = arith.constant 0 : index
    %11 = vector.load %arg5[%c0_6, %c0_7, %c0_8] : memref<1x128x128xbf16, #tpu.memory_space<vmem>>, vector<1x128x128xbf16>
    %12 = vector.shape_cast %11 : vector<1x128x128xbf16> to vector<128x128xbf16>
    %13 = vector.shape_cast %10 : vector<128x128xbf16> to vector<1x128x128xbf16>
    tpu.vector_store %arg5[%c0_6, %c0_7, %c0_8], %13 {strides = array<i32>} : memref<1x128x128xbf16, #tpu.memory_space<vmem>>, vector<1x128x128xbf16>,
    return
  }
  func.func @transform_0(%arg0: i32, %arg1: i32) -> (i32, i32, i32) {
    %c0_i32 = arith.constant 0 : i32
    %c0_i32_0 = arith.constant 0 : i32
    return %arg0, %arg1, %c0_i32 : i32, i32, i32
  }
  func.func @transform_1(%arg0: i32, %arg1: i32) -> (i32, i32) {
    %c0_i32 = arith.constant 0 : i32
    %c0_i32_0 = arith.constant 0 : i32
    %c0_i32_1 = arith.constant 0 : i32
    return %c0_i32, %c0_i32_0 : i32, i32
  }
  func.func @transform_2(%arg0: i32, %arg1: i32) -> (i32, i32) {
    %c0_i32 = arith.constant 0 : i32
    %c0_i32_0 = arith.constant 0 : i32
    %c0_i32_1 = arith.constant 0 : i32
    return %c0_i32, %c0_i32_0 : i32, i32
  }
  func.func @transform_3(%arg0: i32, %arg1: i32) -> (i32, i32, i32) {
    %c0_i32 = arith.constant 0 : i32
    %c0_i32_0 = arith.constant 0 : i32
    return %arg0, %arg1, %c0_i32 : i32, i32, i32
  }
}

module attributes {stable_mosaic.version = 11 : i64} {
  func.func @_matmul_stats_kernel(%arg0: i32, %arg1: i32, %arg2: memref<1x512x64xbf16, #tpu.memory_space<vmem>>, %arg3: memref<1x64x128xbf16, #tpu.memory_space<vmem>>, %arg4: memref<1x512x128xf32, #tpu.memory_space<vmem>>, %arg5: memref<1x1x2x128xf32, #tpu.memory_space<vmem>>) attributes {dimension_semantics = [#tpu.dimension_semantics<parallel>, #tpu.dimension_semantics<parallel>], iteration_bounds = array<i64: 4, 1>, scalar_prefetch = 0 : i64, scratch_operands = 0 : i64, tpu.core_type = #tpu.core_type<tc>, window_params = [{transform_indices = @transform_0, window_bounds = array<i64: 1, 512, 64>}, {transform_indices = @transform_1, window_bounds = array<i64: 1, 64, 128>}, {transform_indices = @transform_2, window_bounds = array<i64: 1, 512, 128>}, {transform_indices = @transform_3, window_bounds = array<i64: 1, 1, 2, 128>}]} {
    %c0 = arith.constant 0 : index
    %c0_0 = arith.constant 0 : index
    %c0_1 = arith.constant 0 : index
    %0 = vector.load %arg2[%c0, %c0_0, %c0_1] : memref<1x512x64xbf16, #tpu.memory_space<vmem>>, vector<1x512x64xbf16>
    %1 = vector.shape_cast %0 : vector<1x512x64xbf16> to vector<512x64xbf16>
    %c0_2 = arith.constant 0 : index
    %c0_3 = arith.constant 0 : index
    %c0_4 = arith.constant 0 : index
    %2 = vector.load %arg3[%c0_2, %c0_3, %c0_4] : memref<1x64x128xbf16, #tpu.memory_space<vmem>>, vector<1x64x128xbf16>
    %3 = vector.shape_cast %2 : vector<1x64x128xbf16> to vector<64x128xbf16>
    %cst = arith.constant dense<0.000000e+00> : vector<512x128xf32>
    %4 = tpu.matmul %1, %3, %cst {dimension_numbers = #tpu.dot_dimension_numbers<[1], [0], [0], [1], [0, 0, 1, 1], [], []>} : vector<512x64xbf16>, vector<64x128xbf16>, vector<512x128xf32> -> vector<512x128xf32>
    %c0_5 = arith.constant 0 : index
    %c0_6 = arith.constant 0 : index
    %c0_7 = arith.constant 0 : index
    %5 = vector.load %arg4[%c0_5, %c0_6, %c0_7] : memref<1x512x128xf32, #tpu.memory_space<vmem>>, vector<1x512x128xf32>
    %6 = vector.shape_cast %5 : vector<1x512x128xf32> to vector<512x128xf32>
    %7 = vector.shape_cast %4 : vector<512x128xf32> to vector<1x512x128xf32>
    tpu.vector_store %arg4[%c0_5, %c0_6, %c0_7], %7 {strides = array<i32>} : memref<1x512x128xf32, #tpu.memory_space<vmem>>, vector<1x512x128xf32>,
    %cst_8 = arith.constant dense<0.000000e+00> : vector<128xf32>
    %8 = vector.multi_reduction <add>, %4, %cst_8 [0] : vector<512x128xf32> to vector<128xf32>
    %9 = vector.shape_cast %8 : vector<128xf32> to vector<1x128xf32>
    %10 = arith.mulf %4, %4 : vector<512x128xf32>
    %cst_9 = arith.constant dense<0.000000e+00> : vector<128xf32>
    %11 = vector.multi_reduction <add>, %10, %cst_9 [0] : vector<512x128xf32> to vector<128xf32>
    %12 = vector.shape_cast %11 : vector<128xf32> to vector<1x128xf32>
    %13 = tpu.concatenate %9, %12 in 0 : vector<1x128xf32>, vector<1x128xf32> -> vector<2x128xf32>
    %14 = vector.shape_cast %13 : vector<2x128xf32> to vector<1x1x2x128xf32>
    %c0_10 = arith.constant 0 : index
    %c0_11 = arith.constant 0 : index
    %c0_12 = arith.constant 0 : index
    %c0_13 = arith.constant 0 : index
    %15 = vector.load %arg5[%c0_10, %c0_11, %c0_12, %c0_13] : memref<1x1x2x128xf32, #tpu.memory_space<vmem>>, vector<1x1x2x128xf32>
    tpu.vector_store %arg5[%c0_10, %c0_11, %c0_12, %c0_13], %14 {strides = array<i32>} : memref<1x1x2x128xf32, #tpu.memory_space<vmem>>, vector<1x1x2x128xf32>,
    return
  }
  func.func @transform_0(%arg0: i32, %arg1: i32) -> (i32, i32, i32) {
    %c0_i32 = arith.constant 0 : i32
    %c0_i32_0 = arith.constant 0 : i32
    return %arg0, %arg1, %c0_i32 : i32, i32, i32
  }
  func.func @transform_1(%arg0: i32, %arg1: i32) -> (i32, i32, i32) {
    %c0_i32 = arith.constant 0 : i32
    %c0_i32_0 = arith.constant 0 : i32
    %c0_i32_1 = arith.constant 0 : i32
    return %arg0, %c0_i32, %c0_i32_0 : i32, i32, i32
  }
  func.func @transform_2(%arg0: i32, %arg1: i32) -> (i32, i32, i32) {
    %c0_i32 = arith.constant 0 : i32
    %c0_i32_0 = arith.constant 0 : i32
    return %arg0, %arg1, %c0_i32 : i32, i32, i32
  }
  func.func @transform_3(%arg0: i32, %arg1: i32) -> (i32, i32, i32, i32) {
    %c0_i32 = arith.constant 0 : i32
    %c0_i32_0 = arith.constant 0 : i32
    %c0_i32_1 = arith.constant 0 : i32
    return %arg0, %arg1, %c0_i32, %c0_i32_0 : i32, i32, i32, i32
  }
}

module attributes {stable_mosaic.version = 11 : i64} {
  func.func @_bn_relu_kernel(%arg0: i32, %arg1: i32, %arg2: memref<1x512x128xf32, #tpu.memory_space<vmem>>, %arg3: memref<1x128xf32, #tpu.memory_space<vmem>>, %arg4: memref<1x128xf32, #tpu.memory_space<vmem>>, %arg5: memref<1x512x128xbf16, #tpu.memory_space<vmem>>) attributes {dimension_semantics = [#tpu.dimension_semantics<parallel>, #tpu.dimension_semantics<parallel>], iteration_bounds = array<i64: 4, 1>, scalar_prefetch = 0 : i64, scratch_operands = 0 : i64, tpu.core_type = #tpu.core_type<tc>, window_params = [{transform_indices = @transform_0, window_bounds = array<i64: 1, 512, 128>}, {pipeline_mode = #tpu.pipeline_mode<synchronous>, transform_indices = @transform_1, window_bounds = array<i64: 1, 128>}, {pipeline_mode = #tpu.pipeline_mode<synchronous>, transform_indices = @transform_2, window_bounds = array<i64: 1, 128>}, {transform_indices = @transform_3, window_bounds = array<i64: 1, 512, 128>}]} {
    %c0 = arith.constant 0 : index
    %c0_0 = arith.constant 0 : index
    %c0_1 = arith.constant 0 : index
    %0 = vector.load %arg2[%c0, %c0_0, %c0_1] : memref<1x512x128xf32, #tpu.memory_space<vmem>>, vector<1x512x128xf32>
    %1 = vector.shape_cast %0 : vector<1x512x128xf32> to vector<512x128xf32>
    %c0_2 = arith.constant 0 : index
    %c0_3 = arith.constant 0 : index
    %2 = vector.load %arg3[%c0_2, %c0_3] : memref<1x128xf32, #tpu.memory_space<vmem>>, vector<1x128xf32>
    %3 = vector.broadcast %2 : vector<1x128xf32> to vector<512x128xf32>
    %4 = arith.mulf %1, %3 : vector<512x128xf32>
    %c0_4 = arith.constant 0 : index
    %c0_5 = arith.constant 0 : index
    %5 = vector.load %arg4[%c0_4, %c0_5] : memref<1x128xf32, #tpu.memory_space<vmem>>, vector<1x128xf32>
    %6 = vector.broadcast %5 : vector<1x128xf32> to vector<512x128xf32>
    %7 = arith.addf %4, %6 : vector<512x128xf32>
    %cst = arith.constant 0.000000e+00 : f32
    %8 = vector.broadcast %cst : f32 to vector<512x128xf32>
    %9 = arith.maximumf %7, %8 : vector<512x128xf32>
    %10 = arith.truncf %9 : vector<512x128xf32> to vector<512x128xbf16>
    %c0_6 = arith.constant 0 : index
    %c0_7 = arith.constant 0 : index
    %c0_8 = arith.constant 0 : index
    %11 = vector.load %arg5[%c0_6, %c0_7, %c0_8] : memref<1x512x128xbf16, #tpu.memory_space<vmem>>, vector<1x512x128xbf16>
    %12 = vector.shape_cast %11 : vector<1x512x128xbf16> to vector<512x128xbf16>
    %13 = vector.shape_cast %10 : vector<512x128xbf16> to vector<1x512x128xbf16>
    tpu.vector_store %arg5[%c0_6, %c0_7, %c0_8], %13 {strides = array<i32>} : memref<1x512x128xbf16, #tpu.memory_space<vmem>>, vector<1x512x128xbf16>,
    return
  }
  func.func @transform_0(%arg0: i32, %arg1: i32) -> (i32, i32, i32) {
    %c0_i32 = arith.constant 0 : i32
    %c0_i32_0 = arith.constant 0 : i32
    return %arg0, %arg1, %c0_i32 : i32, i32, i32
  }
  func.func @transform_1(%arg0: i32, %arg1: i32) -> (i32, i32) {
    %c0_i32 = arith.constant 0 : i32
    %c0_i32_0 = arith.constant 0 : i32
    %c0_i32_1 = arith.constant 0 : i32
    return %c0_i32, %c0_i32_0 : i32, i32
  }
  func.func @transform_2(%arg0: i32, %arg1: i32) -> (i32, i32) {
    %c0_i32 = arith.constant 0 : i32
    %c0_i32_0 = arith.constant 0 : i32
    %c0_i32_1 = arith.constant 0 : i32
    return %c0_i32, %c0_i32_0 : i32, i32
  }
  func.func @transform_3(%arg0: i32, %arg1: i32) -> (i32, i32, i32) {
    %c0_i32 = arith.constant 0 : i32
    %c0_i32_0 = arith.constant 0 : i32
    return %arg0, %arg1, %c0_i32 : i32, i32, i32
  }
}

module attributes {stable_mosaic.version = 11 : i64} {
  func.func @_matmul_tanh_kernel(%arg0: i32, %arg1: i32, %arg2: memref<1x512x32xbf16, #tpu.memory_space<vmem>>, %arg3: memref<1x32x128xbf16, #tpu.memory_space<vmem>>, %arg4: memref<1x512x128xf32, #tpu.memory_space<vmem>>) attributes {dimension_semantics = [#tpu.dimension_semantics<parallel>, #tpu.dimension_semantics<parallel>], iteration_bounds = array<i64: 4, 4>, scalar_prefetch = 0 : i64, scratch_operands = 0 : i64, tpu.core_type = #tpu.core_type<tc>, window_params = [{transform_indices = @transform_0, window_bounds = array<i64: 1, 512, 32>}, {transform_indices = @transform_1, window_bounds = array<i64: 1, 32, 128>}, {transform_indices = @transform_2, window_bounds = array<i64: 1, 512, 128>}]} {
    %c0 = arith.constant 0 : index
    %c0_0 = arith.constant 0 : index
    %c0_1 = arith.constant 0 : index
    %0 = vector.load %arg2[%c0, %c0_0, %c0_1] : memref<1x512x32xbf16, #tpu.memory_space<vmem>>, vector<1x512x32xbf16>
    %1 = vector.shape_cast %0 : vector<1x512x32xbf16> to vector<512x32xbf16>
    %c0_2 = arith.constant 0 : index
    %c0_3 = arith.constant 0 : index
    %c0_4 = arith.constant 0 : index
    %2 = vector.load %arg3[%c0_2, %c0_3, %c0_4] : memref<1x32x128xbf16, #tpu.memory_space<vmem>>, vector<1x32x128xbf16>
    %3 = vector.shape_cast %2 : vector<1x32x128xbf16> to vector<32x128xbf16>
    %cst = arith.constant dense<0.000000e+00> : vector<512x128xf32>
    %4 = tpu.matmul %1, %3, %cst {dimension_numbers = #tpu.dot_dimension_numbers<[1], [0], [0], [1], [0, 0, 1, 1], [], []>} : vector<512x32xbf16>, vector<32x128xbf16>, vector<512x128xf32> -> vector<512x128xf32>
    %5 = math.tanh %4 : vector<512x128xf32>
    %c0_5 = arith.constant 0 : index
    %c0_6 = arith.constant 0 : index
    %c0_7 = arith.constant 0 : index
    %6 = vector.load %arg4[%c0_5, %c0_6, %c0_7] : memref<1x512x128xf32, #tpu.memory_space<vmem>>, vector<1x512x128xf32>
    %7 = vector.shape_cast %6 : vector<1x512x128xf32> to vector<512x128xf32>
    %8 = vector.shape_cast %5 : vector<512x128xf32> to vector<1x512x128xf32>
    tpu.vector_store %arg4[%c0_5, %c0_6, %c0_7], %8 {strides = array<i32>} : memref<1x512x128xf32, #tpu.memory_space<vmem>>, vector<1x512x128xf32>,
    return
  }
  func.func @transform_0(%arg0: i32, %arg1: i32) -> (i32, i32, i32) {
    %c0_i32 = arith.constant 0 : i32
    %c0_i32_0 = arith.constant 0 : i32
    return %arg0, %arg1, %c0_i32 : i32, i32, i32
  }
  func.func @transform_1(%arg0: i32, %arg1: i32) -> (i32, i32, i32) {
    %c0_i32 = arith.constant 0 : i32
    %c0_i32_0 = arith.constant 0 : i32
    %c0_i32_1 = arith.constant 0 : i32
    return %arg0, %c0_i32, %c0_i32_0 : i32, i32, i32
  }
  func.func @transform_2(%arg0: i32, %arg1: i32) -> (i32, i32, i32) {
    %c0_i32 = arith.constant 0 : i32
    %c0_i32_0 = arith.constant 0 : i32
    return %arg0, %arg1, %c0_i32 : i32, i32, i32
  }
}

</mosaic_0001>

<llo_original>
// kernel: tile.18
$region0: #{tile.18}
  #allocation0 [shape = 's32[1]{0}', space=sflag, size = 0x4, scoped, tag = 'scoped memory for tile.18']
  %s0 = inlined_call_operand.vmem [shape: f32[64], index: 0, kind: input, shape index: {}]
  %s1 = inlined_call_operand.vmem [shape: f32[16,64], index: 1, kind: output, shape index: {}]
  // Predicated region
  $region2: #{tile.18} parent=0 // pred_check
    _
  $region3: #{tile.18} parent=0 // pred_check_branch
    %3 = sbr.rel (0) target = $region5
  $region4: #{tile.18} parent=0 // pred_region
    _
  $region5: #{tile.18} parent=0 // pred_fallthru
    _
  %v4 = vld [vmem:[%s0] ss:$0 sm:$0xff]
  %5 = vst [vmem:[%s1] sm:$0xff] %v4
  %s6 = scalar_lea.vmem %s1, 8
  %7 = vst [vmem:[%s6] sm:$0xff] %v4

// kernel: tile.19
$region0: #{tile.19}
  %s0 = inlined_call_operand.vmem [shape: f32[16,64], index: 0, kind: input, shape index: {}]
  %s1 = inlined_call_operand.vmem [shape: f32[1,1024], index: 1, kind: output, shape index: {}]
  $region1: #{tile.19} parent=0
    #allocation0 [shape = 'u8[32768]{0}', space=vmem, size = 0x8000, scoped, tag = 'scoped mem for output reshape']
    %v2 = vld [vmem:[%s0] ss:$2 sm:$0xff]
    %vm3 = vcmask 523264
    %4 = vst.msk [vmem:[#allocation0] ss:$8 sm:$0xf] %vm3, %v2
    %5 = vst.msk [vmem:[#allocation0] ss:$8 sm:$0xf0] %vm3, %v2
    %s6 = scalar_lea.vmem %s0, 1
    %v7 = vld [vmem:[%s6] ss:$2 sm:$0xff]
    %8 = vrot.lane.b32.xlu0 %v7, 64
    %v9 = vpop.permute.xlu0 %8
    %vm10 = vcmask 1048064
    %11 = vst.msk [vmem:[#allocation0] ss:$8 sm:$0xf] %vm10, %v9
    %12 = vst.msk [vmem:[#allocation0] ss:$8 sm:$0xf0] %vm10, %v9
    %s14 = sshll.u32 1, 1
    %s15 = ssub.s32 %s14, 1
    %v17 = vld [vmem:[#allocation0] sm:%s15]
    %s18 = sshll.u32 1, 1
    %s19 = ssub.s32 %s18, 1
    %20 = vst [vmem:[%s1] sm:%s19] %v17
    %s21 = scalar_lea.vmem [#allocation0], 8
    %v22 = vld [vmem:[%s21] sm:%s15]
    %s23 = sshll.u32 1, 1
    %s24 = ssub.s32 %s23, 1
    %s25 = scalar_lea.vmem %s1, 1
    %26 = vst [vmem:[%s25] sm:%s24] %v22
    %s27 = scalar_lea.vmem [#allocation0], 16
    %v28 = vld [vmem:[%s27] sm:%s15]
    %s29 = sshll.u32 1, 1
    %s30 = ssub.s32 %s29, 1
    %s31 = smul.addr 1, 2
    %s32 = scalar_lea.vmem %s1, %s31
    %33 = vst [vmem:[%s32] sm:%s30] %v28
    %s34 = scalar_lea.vmem [#allocation0], 24
    %v35 = vld [vmem:[%s34] sm:%s15]
    %s36 = sshll.u32 1, 1
    %s37 = ssub.s32 %s36, 1
    %s38 = smul.addr 1, 3
    %s39 = scalar_lea.vmem %s1, %s38
    %40 = vst [vmem:[%s39] sm:%s37] %v35
    %s41 = scalar_lea.vmem [#allocation0], 32
    %v42 = vld [vmem:[%s41] sm:%s15]
    %s43 = sshll.u32 1, 1
    %s44 = ssub.s32 %s43, 1
    %s45 = smul.addr 1, 4
    %s46 = scalar_lea.vmem %s1, %s45
    %47 = vst [vmem:[%s46] sm:%s44] %v42
    %s48 = scalar_lea.vmem [#allocation0], 40
    %v49 = vld [vmem:[%s48] sm:%s15]
    %s50 = sshll.u32 1, 1
    %s51 = ssub.s32 %s50, 1
    %s52 = smul.addr 1, 5
    %s53 = scalar_lea.vmem %s1, %s52
    %54 = vst [vmem:[%s53] sm:%s51] %v49
    %s55 = scalar_lea.vmem [#allocation0], 48
    %v56 = vld [vmem:[%s55] sm:%s15]
    %s57 = sshll.u32 1, 1
    %s58 = ssub.s32 %s57, 1
    %s59 = smul.addr 1, 6
    %s60 = scalar_lea.vmem %s1, %s59
    %61 = vst [vmem:[%s60] sm:%s58] %v56
    %s62 = scalar_lea.vmem [#allocation0], 56
    %v63 = vld [vmem:[%s62] sm:%s15]
    %s64 = sshll.u32 1, 1
    %s65 = ssub.s32 %s64, 1
    %s66 = smul.addr 1, 7
    %s67 = scalar_lea.vmem %s1, %s66
    %68 = vst [vmem:[%s67] sm:%s65] %v63

// kernel: squeeze.11
$region0: #{squeeze.11}
  %s0 = inlined_call_operand.vmem [shape: bf16[1,2,1024], index: 0, kind: input, shape index: {}]
  %s1 = inlined_call_operand.vmem [shape: bf16[2,4,4,64], index: 1, kind: output, shape index: {}]
  $region1: #{squeeze.11} parent=0
    #allocation0 [shape = 'u8[32768]{0}', space=vmem, size = 0x8000, scoped, tag = 'scoped mem for output reshape']
    #allocation1 [shape = 'u8[32768]{0}', space=vmem, size = 0x8000, scoped, tag = 'scoped mem for input reshape']
    %s3 = smul.u32 1, 2
    %s4 = sshll.u32 1, %s3
    %s5 = ssub.s32 %s4, 1
    %s6 = smul.addr 1, 7
    %s7 = scalar_lea.vmem %s0, %s6
    %s8 = sshrl.u32 %s5, 1
    %s9 = sor.u32 %s5, %s8
    %s10 = sand.u32 %s9, 85
    %s11 = sshrl.u32 %s10, 1
    %s12 = sor.u32 %s10, %s11
    %s13 = sand.u32 51, %s12
    %s14 = sshrl.u32 %s13, 2
    %s15 = sor.u32 %s13, %s14
    %s16 = sand.u32 15, %s15
    %v17 = vld [vmem:[%s7] sm:%s16]
    %v18 = vunpack.c.l.bf16 %v17
    %v19 = vunpack.c.h.bf16 %v17
    %s20 = scalar_lea.vmem [#allocation1], 56
    %21 = vst [vmem:[%s20] sm:%s5] %v18
    %s22 = smul.addr 1, 6
    %s23 = scalar_lea.vmem %s0, %s22
    %s24 = sshrl.u32 %s5, 1
    %s25 = sor.u32 %s5, %s24
    %s26 = sand.u32 %s25, 85
    %s27 = sshrl.u32 %s26, 1
    %s28 = sor.u32 %s26, %s27
    %s29 = sand.u32 51, %s28
    %s30 = sshrl.u32 %s29, 2
    %s31 = sor.u32 %s29, %s30
    %s32 = sand.u32 15, %s31
    %v33 = vld [vmem:[%s23] sm:%s32]
    %v34 = vunpack.c.l.bf16 %v33
    %v35 = vunpack.c.h.bf16 %v33
    %s36 = scalar_lea.vmem [#allocation1], 48
    %37 = vst [vmem:[%s36] sm:%s5] %v34
    %s38 = smul.addr 1, 5
    %s39 = scalar_lea.vmem %s0, %s38
    %s40 = sshrl.u32 %s5, 1
    %s41 = sor.u32 %s5, %s40
    %s42 = sand.u32 %s41, 85
    %s43 = sshrl.u32 %s42, 1
    %s44 = sor.u32 %s42, %s43
    %s45 = sand.u32 51, %s44
    %s46 = sshrl.u32 %s45, 2
    %s47 = sor.u32 %s45, %s46
    %s48 = sand.u32 15, %s47
    %v49 = vld [vmem:[%s39] sm:%s48]
    %v50 = vunpack.c.l.bf16 %v49
    %v51 = vunpack.c.h.bf16 %v49
    %s52 = scalar_lea.vmem [#allocation1], 40
    %53 = vst [vmem:[%s52] sm:%s5] %v50
    %s54 = smul.addr 1, 4
    %s55 = scalar_lea.vmem %s0, %s54
    %s56 = sshrl.u32 %s5, 1
    %s57 = sor.u32 %s5, %s56
    %s58 = sand.u32 %s57, 85
    %s59 = sshrl.u32 %s58, 1
    %s60 = sor.u32 %s58, %s59
    %s61 = sand.u32 51, %s60
    %s62 = sshrl.u32 %s61, 2
    %s63 = sor.u32 %s61, %s62
    %s64 = sand.u32 15, %s63
    %v65 = vld [vmem:[%s55] sm:%s64]
    %v66 = vunpack.c.l.bf16 %v65
    %v67 = vunpack.c.h.bf16 %v65
    %s68 = scalar_lea.vmem [#allocation1], 32
    %69 = vst [vmem:[%s68] sm:%s5] %v66
    %s70 = smul.addr 1, 3
    %s71 = scalar_lea.vmem %s0, %s70
    %s72 = sshrl.u32 %s5, 1
    %s73 = sor.u32 %s5, %s72
    %s74 = sand.u32 %s73, 85
    %s75 = sshrl.u32 %s74, 1
    %s76 = sor.u32 %s74, %s75
    %s77 = sand.u32 51, %s76
    %s78 = sshrl.u32 %s77, 2
    %s79 = sor.u32 %s77, %s78
    %s80 = sand.u32 15, %s79
    %v81 = vld [vmem:[%s71] sm:%s80]
    %v82 = vunpack.c.l.bf16 %v81
    %v83 = vunpack.c.h.bf16 %v81
    %s84 = scalar_lea.vmem [#allocation1], 24
    %85 = vst [vmem:[%s84] sm:%s5] %v82
    %s86 = smul.addr 1, 2
    %s87 = scalar_lea.vmem %s0, %s86
    %s88 = sshrl.u32 %s5, 1
    %s89 = sor.u32 %s5, %s88
    %s90 = sand.u32 %s89, 85
    %s91 = sshrl.u32 %s90, 1
    %s92 = sor.u32 %s90, %s91
    %s93 = sand.u32 51, %s92
    %s94 = sshrl.u32 %s93, 2
    %s95 = sor.u32 %s93, %s94
    %s96 = sand.u32 15, %s95
    %v97 = vld [vmem:[%s87] sm:%s96]
    %v98 = vunpack.c.l.bf16 %v97
    %v99 = vunpack.c.h.bf16 %v97
    %s100 = scalar_lea.vmem [#allocation1], 16
    %101 = vst [vmem:[%s100] sm:%s5] %v98
    %s102 = scalar_lea.vmem %s0, 1
    %s103 = sshrl.u32 %s5, 1
    %s104 = sor.u32 %s5, %s103
    %s105 = sand.u32 %s104, 85
    %s106 = sshrl.u32 %s105, 1
    %s107 = sor.u32 %s105, %s106
    %s108 = sand.u32 51, %s107
    %s109 = sshrl.u32 %s108, 2
    %s110 = sor.u32 %s108, %s109
    %s111 = sand.u32 15, %s110
    %v112 = vld [vmem:[%s102] sm:%s111]
    %v113 = vunpack.c.l.bf16 %v112
    %v114 = vunpack.c.h.bf16 %v112
    %s115 = scalar_lea.vmem [#allocation1], 8
    %116 = vst [vmem:[%s115] sm:%s5] %v113
    %s117 = sshrl.u32 %s5, 1
    %s118 = sor.u32 %s5, %s117
    %s119 = sand.u32 %s118, 85
    %s120 = sshrl.u32 %s119, 1
    %s121 = sor.u32 %s119, %s120
    %s122 = sand.u32 51, %s121
    %s123 = sshrl.u32 %s122, 2
    %s124 = sor.u32 %s122, %s123
    %s125 = sand.u32 15, %s124
    %v126 = vld [vmem:[%s0] sm:%s125]
    %v127 = vunpack.c.l.bf16 %v126
    %v128 = vunpack.c.h.bf16 %v126
    %129 = vst [vmem:[#allocation1] sm:%s5] %v127
    %v130 = vld [vmem:[#allocation1] sm:$0x3]
    %vm131 = vcmask 523264
    %132 = vst.msk [vmem:[#allocation0] sm:$0x1] %vm131, %v130
    %s133 = scalar_lea.vmem [#allocation0], 31
    %134 = vst.msk [vmem:[%s133] sm:$0x2] %vm131, %v130
    %s135 = scalar_lea.vmem [#allocation1], 8
    %v136 = vld [vmem:[%s135] sm:$0x3]
    %vm137 = vcmask 523264
    %s138 = scalar_lea.vmem [#allocation0], 2
    %139 = vst.msk [vmem:[%s138] sm:$0x1] %vm137, %v136
    %s140 = scalar_lea.vmem [#allocation0], 33
    %141 = vst.msk [vmem:[%s140] sm:$0x2] %vm137, %v136
    %s142 = scalar_lea.vmem [#allocation1], 16
    %v143 = vld [vmem:[%s142] sm:$0x3]
    %vm144 = vcmask 523264
    %s145 = scalar_lea.vmem [#allocation0], 8
    %146 = vst.msk [vmem:[%s145] sm:$0x1] %vm144, %v143
    %s147 = scalar_lea.vmem [#allocation0], 39
    %148 = vst.msk [vmem:[%s147] sm:$0x2] %vm144, %v143
    %s149 = scalar_lea.vmem [#allocation1], 24
    %v150 = vld [vmem:[%s149] sm:$0x3]
    %vm151 = vcmask 523264
    %s152 = scalar_lea.vmem [#allocation0], 10
    %153 = vst.msk [vmem:[%s152] sm:$0x1] %vm151, %v150
    %s154 = scalar_lea.vmem [#allocation0], 41
    %155 = vst.msk [vmem:[%s154] sm:$0x2] %vm151, %v150
    %s156 = scalar_lea.vmem [#allocation1], 32
    %v157 = vld [vmem:[%s156] sm:$0x3]
    %vm158 = vcmask 523264
    %s159 = scalar_lea.vmem [#allocation0], 16
    %160 = vst.msk [vmem:[%s159] sm:$0x1] %vm158, %v157
    %s161 = scalar_lea.vmem [#allocation0], 47
    %162 = vst.msk [vmem:[%s161] sm:$0x2] %vm158, %v157
    %s163 = scalar_lea.vmem [#allocation1], 40
    %v164 = vld [vmem:[%s163] sm:$0x3]
    %vm165 = vcmask 523264
    %s166 = scalar_lea.vmem [#allocation0], 18
    %167 = vst.msk [vmem:[%s166] sm:$0x1] %vm165, %v164
    %s168 = scalar_lea.vmem [#allocation0], 49
    %169 = vst.msk [vmem:[%s168] sm:$0x2] %vm165, %v164
    %s170 = scalar_lea.vmem [#allocation1], 48
    %v171 = vld [vmem:[%s170] sm:$0x3]
    %vm172 = vcmask 523264
    %s173 = scalar_lea.vmem [#allocation0], 24
    %174 = vst.msk [vmem:[%s173] sm:$0x1] %vm172, %v171
    %s175 = scalar_lea.vmem [#allocation0], 55
    %176 = vst.msk [vmem:[%s175] sm:$0x2] %vm172, %v171
    %s177 = scalar_lea.vmem [#allocation1], 56
    %v178 = vld [vmem:[%s177] sm:$0x3]
    %vm179 = vcmask 523264
    %s180 = scalar_lea.vmem [#allocation0], 26
    %181 = vst.msk [vmem:[%s180] sm:$0x1] %vm179, %v178
    %s182 = scalar_lea.vmem [#allocation0], 57
    %183 = vst.msk [vmem:[%s182] sm:$0x2] %vm179, %v178
    %v184 = vld [vmem:[#allocation1] ss:$8 sm:$0xf]
    %v185 = vld [vmem:[#allocation1] ss:$8 sm:$0xf0]
    %vm186 = vcmask 1047556
    %v187 = vsel %vm186, %v185, %v184
    %188 = vrot.lane.b32.xlu0 %v187, 64
    %v189 = vpop.permute.xlu0 %188
    %vm190 = vcmask 523264
    %s191 = scalar_lea.vmem [#allocation0], 1
    %192 = vst.msk [vmem:[%s191] ss:$2 sm:$0x3] %vm190, %v189
    %s193 = scalar_lea.vmem [#allocation0], 5
    %194 = vst.msk [vmem:[%s193] ss:$2 sm:$0xc] %vm190, %v189
    %s195 = scalar_lea.vmem [#allocation0], 9
    %196 = vst.msk [vmem:[%s195] ss:$2 sm:$0x30] %vm190, %v189
    %s197 = scalar_lea.vmem [#allocation0], 13
    %198 = vst.msk [vmem:[%s197] ss:$2 sm:$0xc0] %vm190, %v189
    %s199 = scalar_lea.vmem [#allocation1], 1
    %v200 = vld [vmem:[%s199] ss:$8 sm:$0xf]
    %s201 = scalar_lea.vmem [#allocation1], 1
    %v202 = vld [vmem:[%s201] ss:$8 sm:$0xf0]
    %vm203 = vcmask 1047556
    %v204 = vsel %vm203, %v202, %v200
    %205 = vrot.lane.b32.xlu0 %v204, 64
    %v206 = vpop.permute.xlu0 %205
    %vm207 = vcmask 523264
    %s208 = scalar_lea.vmem [#allocation0], 33
    %209 = vst.msk [vmem:[%s208] ss:$2 sm:$0x3] %vm207, %v206
    %s210 = scalar_lea.vmem [#allocation0], 37
    %211 = vst.msk [vmem:[%s210] ss:$2 sm:$0xc] %vm207, %v206
    %s212 = scalar_lea.vmem [#allocation0], 41
    %213 = vst.msk [vmem:[%s212] ss:$2 sm:$0x30] %vm207, %v206
    %s214 = scalar_lea.vmem [#allocation0], 45
    %215 = vst.msk [vmem:[%s214] ss:$2 sm:$0xc0] %vm207, %v206
    %s217 = smul.u32 2, 2
    %s218 = sshll.u32 1, %s217
    %s219 = ssub.s32 %s218, 1
    %s220 = sshrl.u32 %s217, 1
    %v221 = vld [vmem:[#allocation0] sm:%s219]
    %v222 = vpack.c.bf16 0.0, %v221
    %s223 = sshll.u32 1, %s220
    %s224 = ssub.s32 %s223, 1
    %225 = vst [vmem:[%s1] sm:%s224] %v222
    %s226 = scalar_lea.vmem [#allocation0], 8
    %v227 = vld [vmem:[%s226] sm:%s219]
    %v228 = vpack.c.bf16 0.0, %v227
    %s229 = sshll.u32 1, %s220
    %s230 = ssub.s32 %s229, 1
    %s231 = scalar_lea.vmem %s1, 2
    %232 = vst [vmem:[%s231] sm:%s230] %v228
    %s233 = scalar_lea.vmem [#allocation0], 16
    %v234 = vld [vmem:[%s233] sm:%s219]
    %v235 = vpack.c.bf16 0.0, %v234
    %s236 = sshll.u32 1, %s220
    %s237 = ssub.s32 %s236, 1
    %s238 = smul.addr 2, 2
    %s239 = scalar_lea.vmem %s1, %s238
    %240 = vst [vmem:[%s239] sm:%s237] %v235
    %s241 = scalar_lea.vmem [#allocation0], 24
    %v242 = vld [vmem:[%s241] sm:%s219]
    %v243 = vpack.c.bf16 0.0, %v242
    %s244 = sshll.u32 1, %s220
    %s245 = ssub.s32 %s244, 1
    %s246 = smul.addr 2, 3
    %s247 = scalar_lea.vmem %s1, %s246
    %248 = vst [vmem:[%s247] sm:%s245] %v243
    %s249 = scalar_lea.vmem [#allocation0], 32
    %v250 = vld [vmem:[%s249] sm:%s219]
    %v251 = vpack.c.bf16 0.0, %v250
    %s252 = sshll.u32 1, %s220
    %s253 = ssub.s32 %s252, 1
    %s254 = smul.addr 2, 4
    %s255 = scalar_lea.vmem %s1, %s254
    %256 = vst [vmem:[%s255] sm:%s253] %v251
    %s257 = scalar_lea.vmem [#allocation0], 40
    %v258 = vld [vmem:[%s257] sm:%s219]
    %v259 = vpack.c.bf16 0.0, %v258
    %s260 = sshll.u32 1, %s220
    %s261 = ssub.s32 %s260, 1
    %s262 = smul.addr 2, 5
    %s263 = scalar_lea.vmem %s1, %s262
    %264 = vst [vmem:[%s263] sm:%s261] %v259
    %s265 = scalar_lea.vmem [#allocation0], 48
    %v266 = vld [vmem:[%s265] sm:%s219]
    %v267 = vpack.c.bf16 0.0, %v266
    %s268 = sshll.u32 1, %s220
    %s269 = ssub.s32 %s268, 1
    %s270 = smul.addr 2, 6
    %s271 = scalar_lea.vmem %s1, %s270
    %272 = vst [vmem:[%s271] sm:%s269] %v267
    %s273 = scalar_lea.vmem [#allocation0], 56
    %v274 = vld [vmem:[%s273] sm:%s219]
    %v275 = vpack.c.bf16 0.0, %v274
    %s276 = sshll.u32 1, %s220
    %s277 = ssub.s32 %s276, 1
    %s278 = smul.addr 2, 7
    %s279 = scalar_lea.vmem %s1, %s278
    %280 = vst [vmem:[%s279] sm:%s277] %v275

// kernel: forward.9
$region0: #{forward.9}
  #allocation0 [shape = 'u32[]', space=smem, size = 0x4, offset = 0x4, fixed_abs, tag = 'smem constant byte address 0x4 - core index']
  #allocation1 [shape = 'u32[144,128]{1,0:T(1,128)}', space=vmem, size = 0x12000, scoped, tag = 'internal scratch']
  %s0 = inlined_call_operand.vmem [shape: bf16[1,8,32], index: 0, kind: input, shape index: {}]
  %s1 = inlined_call_operand.hbm [shape: bf16[1,32,1024], index: 1, kind: input, shape index: {}]
  %s2 = inlined_call_operand.vmem [shape: f32[1,8,1024], index: 2, kind: output, shape index: {0}]
  %s3 = inlined_call_operand.vmem [shape: f32[1,1,2,1024], index: 3, kind: output, shape index: {1}]
  %4 = xla_tuple %s2, %s3
  %s5 = sld [smem:[#allocation0]]
  $region30: #{forward.9} parent=0
    _
  %s7 = ssub.s32 1, %s5
  %s8 = scalar_select 0, %s7, %s5
  $region1: #{forward.9} parent=0
    #allocation2 [shape = 'u8[65536]{0}', space=vmem, size = 0x10000, scoped, tag = 'input window, operand 1, single buffered']
    #allocation3 [shape = 's32[1]{0}', space=sflag, size = 0x4, scoped, tag = 'scoped memory for forward.9']
    %9 = vsyncpa [#allocation3], 0
    // Predicated region
    $region2: #{forward.9} parent=1 // pred_check
      _
    $region3: #{forward.9} parent=1 // pred_check_branch
      %11 = sbr.rel (0) target = $region5
    $region4: #{forward.9} parent=1 // pred_region
      _
    $region5: #{forward.9} parent=1 // pred_fallthru
      _
    // Predicated region
    $region6: #{forward.9} parent=1 // pred_check
      _
    $region7: #{forward.9} parent=1 // pred_check_branch
      %13 = sbr.rel (0) target = $region9
    $region8: #{forward.9} parent=1 // pred_region
      %s15 = ssub.s32 2048, 2048
      %16 = vsyncadd [#allocation3], %s15
      %s17 = sshll.u32 [#allocation2], 4
      %s18 = int_to_ptr.vmem [resolvable:$true] %s17
      %23 = dma.hbm_to_vmem [thread:$0]  %s1, 2048, %s18, [#allocation3], 512, 512, 32
    $region9: #{forward.9} parent=1 // pred_fallthru
      _
    // Predicated region
    $region10: #{forward.9} parent=1 // pred_check
      _
    $region11: #{forward.9} parent=1 // pred_check_branch
      %25 = sbr.rel (0) target = $region13
    $region12: #{forward.9} parent=1 // pred_region
      %26 = dma.done [#allocation3], 2048
    $region13: #{forward.9} parent=1 // pred_fallthru
      _
    %v28 = vld [vmem:[%s0] sm:$0xf]
    %v29 = vld [vmem:[#allocation2] sm:$0xff]
    %v30 = vld [vmem:[#allocation2 + $0x8] sm:$0xff]
    %v31 = vld [vmem:[#allocation2 + $0x10] sm:$0xff]
    %v32 = vld [vmem:[#allocation2 + $0x18] sm:$0xff]
    %v33 = vld [vmem:[#allocation2 + $0x20] sm:$0xff]
    %v34 = vld [vmem:[#allocation2 + $0x28] sm:$0xff]
    %v35 = vld [vmem:[#allocation2 + $0x30] sm:$0xff]
    %v36 = vld [vmem:[#allocation2 + $0x38] sm:$0xff]
    %v37 = vld [vmem:[#allocation2 + $0x40] sm:$0xff]
    %v38 = vld [vmem:[#allocation2 + $0x48] sm:$0xff]
    %v39 = vld [vmem:[#allocation2 + $0x50] sm:$0xff]
    %v40 = vld [vmem:[#allocation2 + $0x58] sm:$0xff]
    %v41 = vld [vmem:[#allocation2 + $0x60] sm:$0xff]
    %v42 = vld [vmem:[#allocation2 + $0x68] sm:$0xff]
    %v43 = vld [vmem:[#allocation2 + $0x70] sm:$0xff]
    %v44 = vld [vmem:[#allocation2 + $0x78] sm:$0xff]
    %v61 = vunpack.c.l.b16 %v29
    %v62 = vunpack.c.h.b16 %v29
    %v63 = vunpack.c.l.b16 %v30
    %v64 = vunpack.c.h.b16 %v30
    %v65 = vunpack.c.l.b16 %v31
    %v66 = vunpack.c.h.b16 %v31
    %v67 = vunpack.c.l.b16 %v32
    %v68 = vunpack.c.h.b16 %v32
    %v69 = vunpack.c.l.b16 %v33
    %v70 = vunpack.c.h.b16 %v33
    %v71 = vunpack.c.l.b16 %v34
    %v72 = vunpack.c.h.b16 %v34
    %v73 = vunpack.c.l.b16 %v35
    %v74 = vunpack.c.h.b16 %v35
    %v75 = vunpack.c.l.b16 %v36
    %v76 = vunpack.c.h.b16 %v36
    %v77 = vunpack.c.l.b16 %v37
    %v78 = vunpack.c.h.b16 %v37
    %v79 = vunpack.c.l.b16 %v38
    %v80 = vunpack.c.h.b16 %v38
    %v81 = vunpack.c.l.b16 %v39
    %v82 = vunpack.c.h.b16 %v39
    %v83 = vunpack.c.l.b16 %v40
    %v84 = vunpack.c.h.b16 %v40
    %v85 = vunpack.c.l.b16 %v41
    %v86 = vunpack.c.h.b16 %v41
    %v87 = vunpack.c.l.b16 %v42
    %v88 = vunpack.c.h.b16 %v42
    %v89 = vunpack.c.l.b16 %v43
    %v90 = vunpack.c.h.b16 %v43
    %v91 = vunpack.c.l.b16 %v44
    %v92 = vunpack.c.h.b16 %v44
    %v93 = vpack.c.b16 %v69, %v61
    %v94 = vpack.c.b16 %v70, %v62
    %v95 = vpack.c.b16 %v71, %v63
    %v96 = vpack.c.b16 %v72, %v64
    %v97 = vpack.c.b16 %v73, %v65
    %v98 = vpack.c.b16 %v74, %v66
    %v99 = vpack.c.b16 %v75, %v67
    %v100 = vpack.c.b16 %v76, %v68
    %v101 = vpack.c.b16 %v85, %v77
    %v102 = vpack.c.b16 %v86, %v78
    %v103 = vpack.c.b16 %v87, %v79
    %v104 = vpack.c.b16 %v88, %v80
    %v105 = vpack.c.b16 %v89, %v81
    %v106 = vpack.c.b16 %v90, %v82
    %v107 = vpack.c.b16 %v91, %v83
    %v108 = vpack.c.b16 %v92, %v84
    %vm125 = vcmask 261120
    %v127 = vsel %vm125, %v28, 0
    %129 = vmatprep.subr.bf16.mxu0 0
    %130 = vmatpush1.bf16.msra.mxu0 0
    %131 = vmatprep.subr.bf16.mxu0 0
    %132 = vmatpush1.bf16.msra.mxu0 0
    %133 = vmatprep.subr.bf16.mxu0 0
    %134 = vmatpush1.bf16.msra.mxu0 0
    %135 = vmatprep.subr.bf16.mxu0 0
    %136 = vmatpush1.bf16.msra.mxu0 0
    %137 = vmatprep.subr.bf16.mxu0 0
    %138 = vmatpush1.bf16.msra.mxu0 0
    %139 = vmatprep.subr.bf16.mxu0 0
    %140 = vmatpush1.bf16.msra.mxu0 0
    %141 = vmatprep.subr.bf16.mxu0 %v102
    %142 = vmatpush1.bf16.msra.mxu0 %v101
    %143 = vmatprep.subr.bf16.mxu0 %v94
    %144 = vmatpush1.bf16.msra.mxu0 %v93
    %145 = vmatprep.subr.bf16.mxu0 0
    %146 = vmatpush2.bf16.msra.mxu0 0
    %147 = vmatprep.subr.bf16.mxu0 0
    %148 = vmatpush2.bf16.msra.mxu0 0
    %149 = vmatprep.subr.bf16.mxu0 0
    %150 = vmatpush2.bf16.msra.mxu0 0
    %151 = vmatprep.subr.bf16.mxu0 0
    %152 = vmatpush2.bf16.msra.mxu0 0
    %153 = vmatprep.subr.bf16.mxu0 0
    %154 = vmatpush2.bf16.msra.mxu0 0
    %155 = vmatprep.subr.bf16.mxu0 0
    %156 = vmatpush2.bf16.msra.mxu0 0
    %157 = vmatprep.subr.bf16.mxu0 0
    %158 = vmatpush2.bf16.msra.mxu0 0
    %159 = vmatprep.subr.bf16.mxu0 0
    %160 = vmatpush2.bf16.msra.mxu0 0
    %161 = vmatprep.mubr.bf16.mxu0 0
    %162 = vmatmul.mubr.bf16.gmra.mxu0 %v127
    %v163 = vpop.f32.mrf.mxu0
    %v164 = vadd.f32 0.0, %v163
    %v165 = vpop.f32.mrf.mxu0
    %v166 = vadd.f32 0.0, %v165
    %v167 = vpop.f32.mrf.mxu0
    %v168 = vpop.f32.mrf.mxu0
    %169 = vdwg.mxu0
    %170 = vmatprep.subr.bf16.mxu0 0
    %171 = vmatpush1.bf16.msra.mxu0 0
    %172 = vmatprep.subr.bf16.mxu0 0
    %173 = vmatpush1.bf16.msra.mxu0 0
    %174 = vmatprep.subr.bf16.mxu0 0
    %175 = vmatpush1.bf16.msra.mxu0 0
    %176 = vmatprep.subr.bf16.mxu0 0
    %177 = vmatpush1.bf16.msra.mxu0 0
    %178 = vmatprep.subr.bf16.mxu0 0
    %179 = vmatpush1.bf16.msra.mxu0 0
    %180 = vmatprep.subr.bf16.mxu0 0
    %181 = vmatpush1.bf16.msra.mxu0 0
    %182 = vmatprep.subr.bf16.mxu0 %v104
    %183 = vmatpush1.bf16.msra.mxu0 %v103
    %184 = vmatprep.subr.bf16.mxu0 %v96
    %185 = vmatpush1.bf16.msra.mxu0 %v95
    %186 = vmatprep.subr.bf16.mxu0 0
    %187 = vmatpush2.bf16.msra.mxu0 0
    %188 = vmatprep.subr.bf16.mxu0 0
    %189 = vmatpush2.bf16.msra.mxu0 0
    %190 = vmatprep.subr.bf16.mxu0 0
    %191 = vmatpush2.bf16.msra.mxu0 0
    %192 = vmatprep.subr.bf16.mxu0 0
    %193 = vmatpush2.bf16.msra.mxu0 0
    %194 = vmatprep.subr.bf16.mxu0 0
    %195 = vmatpush2.bf16.msra.mxu0 0
    %196 = vmatprep.subr.bf16.mxu0 0
    %197 = vmatpush2.bf16.msra.mxu0 0
    %198 = vmatprep.subr.bf16.mxu0 0
    %199 = vmatpush2.bf16.msra.mxu0 0
    %200 = vmatprep.subr.bf16.mxu0 0
    %201 = vmatpush2.bf16.msra.mxu0 0
    %202 = vmatprep.mubr.bf16.mxu0 0
    %203 = vmatmul.mubr.bf16.gmra.mxu0 %v127
    %v204 = vpop.f32.mrf.mxu0
    %v205 = vadd.f32 0.0, %v204
    %v206 = vpop.f32.mrf.mxu0
    %v207 = vadd.f32 0.0, %v206
    %v208 = vpop.f32.mrf.mxu0
    %v209 = vpop.f32.mrf.mxu0
    %210 = vdwg.mxu0
    %211 = vmatprep.subr.bf16.mxu0 0
    %212 = vmatpush1.bf16.msra.mxu0 0
    %213 = vmatprep.subr.bf16.mxu0 0
    %214 = vmatpush1.bf16.msra.mxu0 0
    %215 = vmatprep.subr.bf16.mxu0 0
    %216 = vmatpush1.bf16.msra.mxu0 0
    %217 = vmatprep.subr.bf16.mxu0 0
    %218 = vmatpush1.bf16.msra.mxu0 0
    %219 = vmatprep.subr.bf16.mxu0 0
    %220 = vmatpush1.bf16.msra.mxu0 0
    %221 = vmatprep.subr.bf16.mxu0 0
    %222 = vmatpush1.bf16.msra.mxu0 0
    %223 = vmatprep.subr.bf16.mxu0 %v106
    %224 = vmatpush1.bf16.msra.mxu0 %v105
    %225 = vmatprep.subr.bf16.mxu0 %v98
    %226 = vmatpush1.bf16.msra.mxu0 %v97
    %227 = vmatprep.subr.bf16.mxu0 0
    %228 = vmatpush2.bf16.msra.mxu0 0
    %229 = vmatprep.subr.bf16.mxu0 0
    %230 = vmatpush2.bf16.msra.mxu0 0
    %231 = vmatprep.subr.bf16.mxu0 0
    %232 = vmatpush2.bf16.msra.mxu0 0
    %233 = vmatprep.subr.bf16.mxu0 0
    %234 = vmatpush2.bf16.msra.mxu0 0
    %235 = vmatprep.subr.bf16.mxu0 0
    %236 = vmatpush2.bf16.msra.mxu0 0
    %237 = vmatprep.subr.bf16.mxu0 0
    %238 = vmatpush2.bf16.msra.mxu0 0
    %239 = vmatprep.subr.bf16.mxu0 0
    %240 = vmatpush2.bf16.msra.mxu0 0
    %241 = vmatprep.subr.bf16.mxu0 0
    %242 = vmatpush2.bf16.msra.mxu0 0
    %243 = vmatprep.mubr.bf16.mxu0 0
    %244 = vmatmul.mubr.bf16.gmra.mxu0 %v127
    %v245 = vpop.f32.mrf.mxu0
    %v246 = vadd.f32 0.0, %v245
    %v247 = vpop.f32.mrf.mxu0
    %v248 = vadd.f32 0.0, %v247
    %v249 = vpop.f32.mrf.mxu0
    %v250 = vpop.f32.mrf.mxu0
    %251 = vdwg.mxu0
    %252 = vmatprep.subr.bf16.mxu0 0
    %253 = vmatpush1.bf16.msra.mxu0 0
    %254 = vmatprep.subr.bf16.mxu0 0
    %255 = vmatpush1.bf16.msra.mxu0 0
    %256 = vmatprep.subr.bf16.mxu0 0
    %257 = vmatpush1.bf16.msra.mxu0 0
    %258 = vmatprep.subr.bf16.mxu0 0
    %259 = vmatpush1.bf16.msra.mxu0 0
    %260 = vmatprep.subr.bf16.mxu0 0
    %261 = vmatpush1.bf16.msra.mxu0 0
    %262 = vmatprep.subr.bf16.mxu0 0
    %263 = vmatpush1.bf16.msra.mxu0 0
    %264 = vmatprep.subr.bf16.mxu0 %v108
    %265 = vmatpush1.bf16.msra.mxu0 %v107
    %266 = vmatprep.subr.bf16.mxu0 %v100
    %267 = vmatpush1.bf16.msra.mxu0 %v99
    %268 = vmatprep.subr.bf16.mxu0 0
    %269 = vmatpush2.bf16.msra.mxu0 0
    %270 = vmatprep.subr.bf16.mxu0 0
    %271 = vmatpush2.bf16.msra.mxu0 0
    %272 = vmatprep.subr.bf16.mxu0 0
    %273 = vmatpush2.bf16.msra.mxu0 0
    %274 = vmatprep.subr.bf16.mxu0 0
    %275 = vmatpush2.bf16.msra.mxu0 0
    %276 = vmatprep.subr.bf16.mxu0 0
    %277 = vmatpush2.bf16.msra.mxu0 0
    %278 = vmatprep.subr.bf16.mxu0 0
    %279 = vmatpush2.bf16.msra.mxu0 0
    %280 = vmatprep.subr.bf16.mxu0 0
    %281 = vmatpush2.bf16.msra.mxu0 0
    %282 = vmatprep.subr.bf16.mxu0 0
    %283 = vmatpush2.bf16.msra.mxu0 0
    %284 = vmatprep.mubr.bf16.mxu0 0
    %285 = vmatmul.mubr.bf16.gmra.mxu0 %v127
    %v286 = vpop.f32.mrf.mxu0
    %v287 = vadd.f32 0.0, %v286
    %v288 = vpop.f32.mrf.mxu0
    %v289 = vadd.f32 0.0, %v288
    %v290 = vpop.f32.mrf.mxu0
    %v291 = vpop.f32.mrf.mxu0
    %292 = vdwg.mxu0
    %293 = vst [vmem:[%s2] sm:$0xff] %v164
    %294 = vst [vmem:[%s2 + $0x8] sm:$0xff] %v166
    %295 = vst [vmem:[%s2 + $0x10] sm:$0xff] %v205
    %296 = vst [vmem:[%s2 + $0x18] sm:$0xff] %v207
    %297 = vst [vmem:[%s2 + $0x20] sm:$0xff] %v246
    %298 = vst [vmem:[%s2 + $0x28] sm:$0xff] %v248
    %299 = vst [vmem:[%s2 + $0x30] sm:$0xff] %v287
    %300 = vst [vmem:[%s2 + $0x38] sm:$0xff] %v289
    %v301 = vrot.slane %v164, 4
    %v302 = vadd.f32 %v164, %v301
    %v303 = vrot.slane %v302, 2
    %v304 = vadd.f32 %v302, %v303
    %v305 = vrot.slane %v304, 1
    %v306 = vadd.f32 %v304, %v305
    %v307 = vrot.slane %v166, 4
    %v308 = vadd.f32 %v166, %v307
    %v309 = vrot.slane %v308, 2
    %v310 = vadd.f32 %v308, %v309
    %v311 = vrot.slane %v310, 1
    %v312 = vadd.f32 %v310, %v311
    %v313 = vrot.slane %v205, 4
    %v314 = vadd.f32 %v205, %v313
    %v315 = vrot.slane %v314, 2
    %v316 = vadd.f32 %v314, %v315
    %v317 = vrot.slane %v316, 1
    %v318 = vadd.f32 %v316, %v317
    %v319 = vrot.slane %v207, 4
    %v320 = vadd.f32 %v207, %v319
    %v321 = vrot.slane %v320, 2
    %v322 = vadd.f32 %v320, %v321
    %v323 = vrot.slane %v322, 1
    %v324 = vadd.f32 %v322, %v323
    %v325 = vrot.slane %v246, 4
    %v326 = vadd.f32 %v246, %v325
    %v327 = vrot.slane %v326, 2
    %v328 = vadd.f32 %v326, %v327
    %v329 = vrot.slane %v328, 1
    %v330 = vadd.f32 %v328, %v329
    %v331 = vrot.slane %v248, 4
    %v332 = vadd.f32 %v248, %v331
    %v333 = vrot.slane %v332, 2
    %v334 = vadd.f32 %v332, %v333
    %v335 = vrot.slane %v334, 1
    %v336 = vadd.f32 %v334, %v335
    %v337 = vrot.slane %v287, 4
    %v338 = vadd.f32 %v287, %v337
    %v339 = vrot.slane %v338, 2
    %v340 = vadd.f32 %v338, %v339
    %v341 = vrot.slane %v340, 1
    %v342 = vadd.f32 %v340, %v341
    %v343 = vrot.slane %v289, 4
    %v344 = vadd.f32 %v289, %v343
    %v345 = vrot.slane %v344, 2
    %v346 = vadd.f32 %v344, %v345
    %v347 = vrot.slane %v346, 1
    %v348 = vadd.f32 %v346, %v347
    %v349 = vmul.f32 %v164, %v164
    %v350 = vmul.f32 %v166, %v166
    %v351 = vmul.f32 %v205, %v205
    %v352 = vmul.f32 %v207, %v207
    %v353 = vmul.f32 %v246, %v246
    %v354 = vmul.f32 %v248, %v248
    %v355 = vmul.f32 %v287, %v287
    %v356 = vmul.f32 %v289, %v289
    %v357 = vrot.slane %v349, 4
    %v358 = vadd.f32 %v349, %v357
    %v359 = vrot.slane %v358, 2
    %v360 = vadd.f32 %v358, %v359
    %v361 = vrot.slane %v360, 1
    %v362 = vadd.f32 %v360, %v361
    %v363 = vrot.slane %v350, 4
    %v364 = vadd.f32 %v350, %v363
    %v365 = vrot.slane %v364, 2
    %v366 = vadd.f32 %v364, %v365
    %v367 = vrot.slane %v366, 1
    %v368 = vadd.f32 %v366, %v367
    %v369 = vrot.slane %v351, 4
    %v370 = vadd.f32 %v351, %v369
    %v371 = vrot.slane %v370, 2
    %v372 = vadd.f32 %v370, %v371
    %v373 = vrot.slane %v372, 1
    %v374 = vadd.f32 %v372, %v373
    %v375 = vrot.slane %v352, 4
    %v376 = vadd.f32 %v352, %v375
    %v377 = vrot.slane %v376, 2
    %v378 = vadd.f32 %v376, %v377
    %v379 = vrot.slane %v378, 1
    %v380 = vadd.f32 %v378, %v379
    %v381 = vrot.slane %v353, 4
    %v382 = vadd.f32 %v353, %v381
    %v383 = vrot.slane %v382, 2
    %v384 = vadd.f32 %v382, %v383
    %v385 = vrot.slane %v384, 1
    %v386 = vadd.f32 %v384, %v385
    %v387 = vrot.slane %v354, 4
    %v388 = vadd.f32 %v354, %v387
    %v389 = vrot.slane %v388, 2
    %v390 = vadd.f32 %v388, %v389
    %v391 = vrot.slane %v390, 1
    %v392 = vadd.f32 %v390, %v391
    %v393 = vrot.slane %v355, 4
    %v394 = vadd.f32 %v355, %v393
    %v395 = vrot.slane %v394, 2
    %v396 = vadd.f32 %v394, %v395
    %v397 = vrot.slane %v396, 1
    %v398 = vadd.f32 %v396, %v397
    %v399 = vrot.slane %v356, 4
    %v400 = vadd.f32 %v356, %v399
    %v401 = vrot.slane %v400, 2
    %v402 = vadd.f32 %v400, %v401
    %v403 = vrot.slane %v402, 1
    %v404 = vadd.f32 %v402, %v403
    %vm405 = vcmask 1040384
    %v406 = vsel %vm405, %v306, %v362
    %v407 = vsel %vm405, %v312, %v368
    %v408 = vsel %vm405, %v318, %v374
    %v409 = vsel %vm405, %v324, %v380
    %v410 = vsel %vm405, %v330, %v386
    %v411 = vsel %vm405, %v336, %v392
    %v412 = vsel %vm405, %v342, %v398
    %v413 = vsel %vm405, %v348, %v404
    %v422 = vcombine.low %v406, %v407
    %v423 = vcombine.low %v408, %v409
    %v425 = vunpack.c.l.s4 1983009808
    %v426 = vunpack.c.0.s8 %v425
    %v427 = vlaneseq
    %v428 = vshrl.u32 %v427, 7
    %v429 = vsub.s32 %v426, %v428
    %v430 = vrot.slane %v422, %v429
    %v432 = vunpack.c.l.s4 1983009808
    %v433 = vunpack.c.0.s8 %v432
    %v434 = vlaneseq
    %v435 = vshrl.u32 %v434, 7
    %v436 = vsub.s32 %v433, %v435
    %v437 = vrot.slane %v423, %v436
    %v438 = vcombine.low %v430, %v437
    %v439 = vcombine.low %v410, %v411
    %v440 = vcombine.low %v412, %v413
    %v442 = vunpack.c.l.s4 1983009808
    %v443 = vunpack.c.0.s8 %v442
    %v444 = vlaneseq
    %v445 = vshrl.u32 %v444, 7
    %v446 = vsub.s32 %v443, %v445
    %v447 = vrot.slane %v439, %v446
    %v449 = vunpack.c.l.s4 1983009808
    %v450 = vunpack.c.0.s8 %v449
    %v451 = vlaneseq
    %v452 = vshrl.u32 %v451, 7
    %v453 = vsub.s32 %v450, %v452
    %v454 = vrot.slane %v440, %v453
    %v455 = vcombine.low %v447, %v454
    %458 = vst [vmem:[%s3] sm:$0xff] %v438
    %459 = vst [vmem:[%s3 + $0x8] sm:$0xff] %v455
    // Predicated region
    $region14: #{forward.9} parent=1 // pred_check
      _
    $region15: #{forward.9} parent=1 // pred_check_branch
      %461 = sbr.rel (0) target = $region17
    $region16: #{forward.9} parent=1 // pred_region
      _
    $region17: #{forward.9} parent=1 // pred_fallthru
      _
    // Predicated region
    $region18: #{forward.9} parent=1 // pred_check
      _
    $region19: #{forward.9} parent=1 // pred_check_branch
      %463 = sbr.rel (0) target = $region21
    $region20: #{forward.9} parent=1 // pred_region
      _
    $region21: #{forward.9} parent=1 // pred_fallthru
      _
    // Predicated region
    $region22: #{forward.9} parent=1 // pred_check
      _
    $region23: #{forward.9} parent=1 // pred_check_branch
      %465 = sbr.rel (0) target = $region25
    $region24: #{forward.9} parent=1 // pred_region
      _
    $region25: #{forward.9} parent=1 // pred_fallthru
      _
    // Predicated region
    $region26: #{forward.9} parent=1 // pred_check
      _
    $region27: #{forward.9} parent=1 // pred_check_branch
      %467 = sbr.rel (0) target = $region29
    $region28: #{forward.9} parent=1 // pred_region
      _
    $region29: #{forward.9} parent=1 // pred_fallthru
      _
    %468 = vsyncpa [#allocation3], 1

// kernel: forward.10
$region0: #{forward.10}
  #allocation0 [shape = 'u32[]', space=smem, size = 0x4, offset = 0x4, fixed_abs, tag = 'smem constant byte address 0x4 - core index']
  #allocation1 [shape = 'u32[144,128]{1,0:T(1,128)}', space=vmem, size = 0x12000, scoped, tag = 'internal scratch']
  %s0 = inlined_call_operand.vmem [shape: f32[1,8,1024], index: 0, kind: input, shape index: {}]
  %s1 = inlined_call_operand.vmem [shape: f32[1,1024], index: 1, kind: input, shape index: {}]
  %s2 = inlined_call_operand.vmem [shape: f32[1,1024], index: 2, kind: input, shape index: {}]
  %s3 = inlined_call_operand.vmem [shape: bf16[1,8,1024], index: 3, kind: output, shape index: {}]
  %s4 = sld [smem:[#allocation0]]
  $region22: #{forward.10} parent=0
    _
  %s6 = ssub.s32 1, %s4
  %s7 = scalar_select 0, %s6, %s4
  // Predicated region
  $region2: #{forward.10} parent=0 // pred_check
    _
  $region3: #{forward.10} parent=0 // pred_check_branch
    %9 = sbr.rel (0) target = $region5
  $region4: #{forward.10} parent=0 // pred_region
    _
  $region5: #{forward.10} parent=0 // pred_fallthru
    _
  // Predicated region
  $region6: #{forward.10} parent=0 // pred_check
    _
  $region7: #{forward.10} parent=0 // pred_check_branch
    %11 = sbr.rel (0) target = $region9
  $region8: #{forward.10} parent=0 // pred_region
    _
  $region9: #{forward.10} parent=0 // pred_fallthru
    _
  // Predicated region
  $region10: #{forward.10} parent=0 // pred_check
    _
  $region11: #{forward.10} parent=0 // pred_check_branch
    %13 = sbr.rel (0) target = $region13
  $region12: #{forward.10} parent=0 // pred_region
    _
  $region13: #{forward.10} parent=0 // pred_fallthru
    _
  %v14 = vld [vmem:[%s0] sm:$0xff]
  %v15 = vld [vmem:[%s0 + $0x8] sm:$0xff]
  %v16 = vld [vmem:[%s0 + $0x10] sm:$0xff]
  %v17 = vld [vmem:[%s0 + $0x18] sm:$0xff]
  %v18 = vld [vmem:[%s0 + $0x20] sm:$0xff]
  %v19 = vld [vmem:[%s0 + $0x28] sm:$0xff]
  %v20 = vld [vmem:[%s0 + $0x30] sm:$0xff]
  %v21 = vld [vmem:[%s0 + $0x38] sm:$0xff]
  %v22 = vld [vmem:[%s1] sm:$0xff]
  %v24 = vlaneseq
  %v25 = vshrl.u32 %v24, 7
  %v26 = vsub.s32 0, %v25
  %v27 = vrot.slane %v22, %v26
  %v28 = vlaneseq
  %v29 = vshrl.u32 %v28, 7
  %v30 = vsub.s32 1, %v29
  %v31 = vrot.slane %v22, %v30
  %v32 = vlaneseq
  %v33 = vshrl.u32 %v32, 7
  %v34 = vsub.s32 2, %v33
  %v35 = vrot.slane %v22, %v34
  %v36 = vlaneseq
  %v37 = vshrl.u32 %v36, 7
  %v38 = vsub.s32 3, %v37
  %v39 = vrot.slane %v22, %v38
  %v40 = vlaneseq
  %v41 = vshrl.u32 %v40, 7
  %v42 = vsub.s32 4, %v41
  %v43 = vrot.slane %v22, %v42
  %v44 = vlaneseq
  %v45 = vshrl.u32 %v44, 7
  %v46 = vsub.s32 5, %v45
  %v47 = vrot.slane %v22, %v46
  %v48 = vlaneseq
  %v49 = vshrl.u32 %v48, 7
  %v50 = vsub.s32 6, %v49
  %v51 = vrot.slane %v22, %v50
  %v52 = vlaneseq
  %v53 = vshrl.u32 %v52, 7
  %v54 = vsub.s32 7, %v53
  %v55 = vrot.slane %v22, %v54
  %v64 = vmul.f32 %v14, %v27
  %v65 = vmul.f32 %v15, %v31
  %v66 = vmul.f32 %v16, %v35
  %v67 = vmul.f32 %v17, %v39
  %v68 = vmul.f32 %v18, %v43
  %v69 = vmul.f32 %v19, %v47
  %v70 = vmul.f32 %v20, %v51
  %v71 = vmul.f32 %v21, %v55
  %v72 = vld [vmem:[%s2] sm:$0xff]
  %v74 = vlaneseq
  %v75 = vshrl.u32 %v74, 7
  %v76 = vsub.s32 0, %v75
  %v77 = vrot.slane %v72, %v76
  %v78 = vlaneseq
  %v79 = vshrl.u32 %v78, 7
  %v80 = vsub.s32 1, %v79
  %v81 = vrot.slane %v72, %v80
  %v82 = vlaneseq
  %v83 = vshrl.u32 %v82, 7
  %v84 = vsub.s32 2, %v83
  %v85 = vrot.slane %v72, %v84
  %v86 = vlaneseq
  %v87 = vshrl.u32 %v86, 7
  %v88 = vsub.s32 3, %v87
  %v89 = vrot.slane %v72, %v88
  %v90 = vlaneseq
  %v91 = vshrl.u32 %v90, 7
  %v92 = vsub.s32 4, %v91
  %v93 = vrot.slane %v72, %v92
  %v94 = vlaneseq
  %v95 = vshrl.u32 %v94, 7
  %v96 = vsub.s32 5, %v95
  %v97 = vrot.slane %v72, %v96
  %v98 = vlaneseq
  %v99 = vshrl.u32 %v98, 7
  %v100 = vsub.s32 6, %v99
  %v101 = vrot.slane %v72, %v100
  %v102 = vlaneseq
  %v103 = vshrl.u32 %v102, 7
  %v104 = vsub.s32 7, %v103
  %v105 = vrot.slane %v72, %v104
  %v114 = vadd.f32 %v64, %v77
  %v115 = vadd.f32 %v65, %v81
  %v116 = vadd.f32 %v66, %v85
  %v117 = vadd.f32 %v67, %v89
  %v118 = vadd.f32 %v68, %v93
  %v119 = vadd.f32 %v69, %v97
  %v120 = vadd.f32 %v70, %v101
  %v121 = vadd.f32 %v71, %v105
  %v122 = vmax.f32 %v114, 0.0
  %v123 = vmax.f32 %v115, 0.0
  %v124 = vmax.f32 %v116, 0.0
  %v125 = vmax.f32 %v117, 0.0
  %v126 = vmax.f32 %v118, 0.0
  %v127 = vmax.f32 %v119, 0.0
  %v128 = vmax.f32 %v120, 0.0
  %v129 = vmax.f32 %v121, 0.0
  %v130 = vpack.c.bf16 %v122, %v122
  %v131 = vpack.c.bf16 %v123, %v123
  %v132 = vpack.c.bf16 %v124, %v124
  %v133 = vpack.c.bf16 %v125, %v125
  %v134 = vpack.c.bf16 %v126, %v126
  %v135 = vpack.c.bf16 %v127, %v127
  %v136 = vpack.c.bf16 %v128, %v128
  %v137 = vpack.c.bf16 %v129, %v129
  %v146 = vunpack.c.l.b16 %v130
  %v147 = vunpack.c.l.b16 %v131
  %v148 = vunpack.c.l.b16 %v132
  %v149 = vunpack.c.l.b16 %v133
  %v150 = vunpack.c.l.b16 %v134
  %v151 = vunpack.c.l.b16 %v135
  %v152 = vunpack.c.l.b16 %v136
  %v153 = vunpack.c.l.b16 %v137
  %v154 = vpack.c.b16 %v147, %v146
  %v155 = vpack.c.b16 %v149, %v148
  %v156 = vpack.c.b16 %v151, %v150
  %v157 = vpack.c.b16 %v153, %v152
  %162 = vst [vmem:[%s3] sm:$0xff] %v154
  %163 = vst [vmem:[%s3 + $0x8] sm:$0xff] %v155
  %164 = vst [vmem:[%s3 + $0x10] sm:$0xff] %v156
  %165 = vst [vmem:[%s3 + $0x18] sm:$0xff] %v157
  // Predicated region
  $region14: #{forward.10} parent=0 // pred_check
    _
  $region15: #{forward.10} parent=0 // pred_check_branch
    %167 = sbr.rel (0) target = $region17
  $region16: #{forward.10} parent=0 // pred_region
    _
  $region17: #{forward.10} parent=0 // pred_fallthru
    _
  // Predicated region
  $region18: #{forward.10} parent=0 // pred_check
    _
  $region19: #{forward.10} parent=0 // pred_check_branch
    %169 = sbr.rel (0) target = $region21
  $region20: #{forward.10} parent=0 // pred_region
    _
  $region21: #{forward.10} parent=0 // pred_fallthru
    _

// kernel: forward.11
$region0: #{forward.11}
  #allocation0 [shape = 'u32[]', space=smem, size = 0x4, offset = 0x4, fixed_abs, tag = 'smem constant byte address 0x4 - core index']
  #allocation1 [shape = 'u32[144,128]{1,0:T(1,128)}', space=vmem, size = 0x12000, scoped, tag = 'internal scratch']
  %s0 = inlined_call_operand.vmem [shape: bf16[4,32,256], index: 0, kind: input, shape index: {}]
  %s1 = inlined_call_operand.hbm [shape: bf16[4,256,128], index: 1, kind: input, shape index: {}]
  %s2 = inlined_call_operand.vmem [shape: f32[4,32,128], index: 2, kind: output, shape index: {0}]
  %s3 = inlined_call_operand.vmem [shape: f32[4,1,2,128], index: 3, kind: output, shape index: {1}]
  %4 = xla_tuple %s2, %s3
  %s5 = sld [smem:[#allocation0]]
  $region53: #{forward.11} parent=0
    _
  %s7 = ssub.s32 1, %s5
  %s8 = scalar_select 0, %s7, %s5
  $region1: #{forward.11} parent=0
    #allocation2 [shape = 'u8[131072]{0}', space=vmem, size = 0x20000, scoped, tag = 'input window, operand 1']
    #allocation3 [shape = 's32[2]{0}', space=sflag, size = 0x8, scoped, tag = 'scoped memory for forward.11']
    %9 = vsyncpa [#allocation3], 0
    %s10 = scalar_lea.sflag [#allocation3], 1
    %11 = vsyncpa %s10, 0
    loop: start=0, step=1, limit=6
    $region2: #{forward.11} parent=1 // loop_pre_header
      _
    $region3: #{forward.11} parent=1 // loop_header
      %s13 = sphi 0, %s17
      %p14 = scmp.ge.s32.totalorder %s13, 6
      %s20 = sphi 0, %s32
      %s21 = sphi 0, %s28
      %s22 = sphi 0, %s20
      %s23 = sphi 0, %s21
      %s24 = sphi 0, %s22
      %s25 = sphi 0, %s23
      %s37 = sphi 0, %s39
      %s40 = sphi 0, %s37
      %s41 = sphi 0, %s40
      %s57 = sphi 0, %s41
      %s63 = sphi 0, %s65
      %s66 = sphi 0, %s63
      %s67 = sphi 0, %s66
      %s83 = sphi 0, %s67
      %s91 = sphi 0, %s93
      %s94 = sphi 0, %s91
      %s95 = sphi 0, %s94
      %s111 = sphi 0, %s95
      %s119 = sphi 0, %s121
      %s122 = sphi 0, %s119
      %s123 = sphi 0, %s122
      %s139 = sphi 0, %s123
    $region4: #{forward.11} parent=1 // loop_header_branch
      %16 = sbr.rel (%p14) target = $region8
    $region5: #{forward.11} parent=1 // loop_body
      %s18 = ssub.s32 %s13, 1
      %s19 = ssub.s32 %s13, 2
      %s26 = sadd.s32 1, %s21
      %p27 = scmp.ge.s32.totalorder %s26, 1
      %s28 = scalar_select %p27, 0, %s26
      %s29 = sadd.s32 1, %s20
      %s30 = scalar_select %p27, %s29, %s20
      %p31 = scmp.ge.s32.totalorder %s30, 4
      %s32 = scalar_select %p31, 0, %s30
      %s33 = ssub.s32 %s20, %s32
      %s34 = ssub.s32 %s21, %s28
      %s35 = sor.u32 %s33, %s34
      %p36 = scmp.eq.s32.totalorder %s35, 0
      %s38 = sadd.s32 %s37, 1
      %s39 = scalar_select %p36, %s37, %s38
      %p42 = pneg %p36
      %p43 = scmp.eq.s32.totalorder %s13, 3
      %p44 = por %p42, %p43
      %p45 = scmp.ne.s32.totalorder %s37, %s40
      %p46 = scmp.eq.s32.totalorder %s13, 0
      %p47 = por %p45, %p46
      %p48 = scmp.ne.s32.totalorder %s37, %s40
      %p49 = scmp.eq.s32.totalorder %s18, 3
      %p50 = por %p48, %p49
      %p51 = scmp.ne.s32.totalorder %s40, %s41
      %p52 = scmp.eq.s32.totalorder %s18, 0
      %p53 = por %p51, %p52
      %p54 = scmp.ne.s32.totalorder %s40, %s41
      %p55 = scmp.eq.s32.totalorder %s19, 3
      %p56 = por %p54, %p55
      %p58 = scmp.ne.s32.totalorder %s41, %s57
      %p59 = scmp.eq.s32.totalorder %s19, 0
      %p60 = por %p58, %p59
      %s61 = ssub.s32 %s20, %s32
      %p62 = scmp.eq.s32.totalorder %s61, 0
      %s64 = sadd.s32 %s63, 1
      %s65 = scalar_select %p62, %s63, %s64
      %p68 = pneg %p62
      %p69 = scmp.eq.s32.totalorder %s13, 3
      %p70 = por %p68, %p69
      %p71 = scmp.ne.s32.totalorder %s63, %s66
      %p72 = scmp.eq.s32.totalorder %s13, 0
      %p73 = por %p71, %p72
      %p74 = scmp.ne.s32.totalorder %s63, %s66
      %p75 = scmp.eq.s32.totalorder %s18, 3
      %p76 = por %p74, %p75
      %p77 = scmp.ne.s32.totalorder %s66, %s67
      %p78 = scmp.eq.s32.totalorder %s18, 0
      %p79 = por %p77, %p78
      %p80 = scmp.ne.s32.totalorder %s66, %s67
      %p81 = scmp.eq.s32.totalorder %s19, 3
      %p82 = por %p80, %p81
      %p84 = scmp.ne.s32.totalorder %s67, %s83
      %p85 = scmp.eq.s32.totalorder %s19, 0
      %p86 = por %p84, %p85
      %s87 = ssub.s32 %s20, %s32
      %s88 = ssub.s32 %s21, %s28
      %s89 = sor.u32 %s87, %s88
      %p90 = scmp.eq.s32.totalorder %s89, 0
      %s92 = sadd.s32 %s91, 1
      %s93 = scalar_select %p90, %s91, %s92
      %p96 = pneg %p90
      %p97 = scmp.eq.s32.totalorder %s13, 3
      %p98 = por %p96, %p97
      %p99 = scmp.ne.s32.totalorder %s91, %s94
      %p100 = scmp.eq.s32.totalorder %s13, 0
      %p101 = por %p99, %p100
      %p102 = scmp.ne.s32.totalorder %s91, %s94
      %p103 = scmp.eq.s32.totalorder %s18, 3
      %p104 = por %p102, %p103
      %p105 = scmp.ne.s32.totalorder %s94, %s95
      %p106 = scmp.eq.s32.totalorder %s18, 0
      %p107 = por %p105, %p106
      %p108 = scmp.ne.s32.totalorder %s94, %s95
      %p109 = scmp.eq.s32.totalorder %s19, 3
      %p110 = por %p108, %p109
      %p112 = scmp.ne.s32.totalorder %s95, %s111
      %p113 = scmp.eq.s32.totalorder %s19, 0
      %p114 = por %p112, %p113
      %s115 = ssub.s32 %s20, %s32
      %s116 = ssub.s32 %s21, %s28
      %s117 = sor.u32 %s115, %s116
      %p118 = scmp.eq.s32.totalorder %s117, 0
      %s120 = sadd.s32 %s119, 1
      %s121 = scalar_select %p118, %s119, %s120
      %p124 = pneg %p118
      %p125 = scmp.eq.s32.totalorder %s13, 3
      %p126 = por %p124, %p125
      %p127 = scmp.ne.s32.totalorder %s119, %s122
      %p128 = scmp.eq.s32.totalorder %s13, 0
      %p129 = por %p127, %p128
      %p130 = scmp.ne.s32.totalorder %s119, %s122
      %p131 = scmp.eq.s32.totalorder %s18, 3
      %p132 = por %p130, %p131
      %p133 = scmp.ne.s32.totalorder %s122, %s123
      %p134 = scmp.eq.s32.totalorder %s18, 0
      %p135 = por %p133, %p134
      %p136 = scmp.ne.s32.totalorder %s122, %s123
      %p137 = scmp.eq.s32.totalorder %s19, 3
      %p138 = por %p136, %p137
      %p140 = scmp.ne.s32.totalorder %s123, %s139
      %p141 = scmp.eq.s32.totalorder %s19, 0
      %p142 = por %p140, %p141
      %p143 = scmp.le.s32.totalorder 1, %s13
      %p144 = scmp.lt.s32.totalorder %s13, 5
      %p145 = pnand %p143, %p144
      %p146 = pneg %p145
      // Predicated region
      $region9: #{forward.11} parent=5 // pred_check
        _
      $region10: #{forward.11} parent=5 // pred_check_branch
        %148 = sbr.rel (%p145) target = $region12
      $region11: #{forward.11} parent=5 // pred_region
        %s149 = ssub.s32 %s13, 1
      $region12: #{forward.11} parent=5 // pred_fallthru
        _
      %p150 = scmp.lt.s32.totalorder %s13, 4
      // Predicated region
      $region13: #{forward.11} parent=5 // pred_check
        %p151 = pneg %p150
      $region14: #{forward.11} parent=5 // pred_check_branch
        %153 = sbr.rel (%p151) target = $region16
      $region15: #{forward.11} parent=5 // pred_region
        // Predicated region
        $region17: #{forward.11} parent=15 // pred_check
          %p154 = pneg %p47
        $region18: #{forward.11} parent=15 // pred_check_branch
          %156 = sbr.rel (%p154) target = $region20
        $region19: #{forward.11} parent=15 // pred_region
          %s157 = smul.u32 4, %s21
          %p158 = scmp.lt.s32.totalorder %s20, 3
          %s159 = scalar_select %p158, %s20, 3
          %p160 = scmp.lt.s32.totalorder %s157, 3
          %s161 = scalar_select %p160, %s157, 3
          %s162 = smul.addr %s161, 2
          %s163 = smul.addr %s159, 8
          %s164 = sadd.s32 %s162, %s163
          %s165 = smul.addr %s164, 4
          %s166 = scalar_lea.vmem %s0, %s165
          %s167 = smul.u32 4, %s21
        $region20: #{forward.11} parent=15 // pred_fallthru
          _
        // Predicated region
        $region21: #{forward.11} parent=15 // pred_check
          %p168 = pneg %p73
        $region22: #{forward.11} parent=15 // pred_check_branch
          %170 = sbr.rel (%p168) target = $region24
        $region23: #{forward.11} parent=15 // pred_region
          %s171 = sand.u32 %s63, 1
          %s172 = scalar_lea.sflag [#allocation3], %s171
          %s173 = sand.u32 %s63, 1
          %s174 = smul.addr %s173, 128
          %s175 = scalar_lea.vmem [#allocation2], %s174
          %s177 = ssub.s32 2048, 2048
          %178 = vsyncadd %s172, %s177
          %s179 = smul.addr %s20, 32
          %s180 = smul.addr %s179, 64
          %s181 = scalar_lea.hbm %s1, %s180
          %s182 = sshll.u32 %s175, 4
          %s183 = int_to_ptr.vmem [resolvable:$true] %s182
          %188 = dma.hbm_to_vmem [thread:$0]  %s181, 2048, %s183, %s172, 64, 64, 4
        $region24: #{forward.11} parent=15 // pred_fallthru
          _
      $region16: #{forward.11} parent=5 // pred_fallthru
        _
      %p189 = scmp.le.s32.totalorder 1, %s13
      %p190 = scmp.lt.s32.totalorder %s13, 5
      %p191 = pnand %p189, %p190
      %p192 = pneg %p191
      // Predicated region
      $region25: #{forward.11} parent=5 // pred_check
        _
      $region26: #{forward.11} parent=5 // pred_check_branch
        %194 = sbr.rel (%p191) target = $region28
      $region27: #{forward.11} parent=5 // pred_region
        %s195 = ssub.s32 %s13, 1
        %s196 = sand.u32 %s66, 1
        %s197 = scalar_lea.sflag [#allocation3], %s196
        %s198 = sand.u32 %s66, 1
        %s199 = smul.addr %s198, 128
        %s200 = scalar_lea.vmem [#allocation2], %s199
        // Predicated region
        $region29: #{forward.11} parent=27 // pred_check
          %p201 = pneg %p79
        $region30: #{forward.11} parent=27 // pred_check_branch
          %203 = sbr.rel (%p201) target = $region32
        $region31: #{forward.11} parent=27 // pred_region
          %204 = dma.done %s197, 2048
        $region32: #{forward.11} parent=27 // pred_fallthru
          _
        %s205 = smul.u32 4, %s23
        %p206 = scmp.lt.s32.totalorder %s22, 3
        %s207 = scalar_select %p206, %s22, 3
        %p208 = scmp.lt.s32.totalorder %s205, 3
        %s209 = scalar_select %p208, %s205, 3
        %s210 = smul.addr %s209, 2
        %s211 = smul.addr %s207, 8
        %s212 = sadd.s32 %s210, %s211
        %s213 = smul.addr %s212, 4
        %s214 = scalar_lea.vmem %s0, %s213
        %p215 = pneg %p53
        %p216 = pneg %p50
        %s217 = sand.u32 %s66, 1
        %s218 = scalar_lea.sflag [#allocation3], %s217
        %s219 = sand.u32 %s66, 1
        %s220 = smul.addr %s219, 128
        %s221 = scalar_lea.vmem [#allocation2], %s220
        %p222 = pneg %p79
        %p223 = pneg %p76
        %p224 = pneg %p107
        %p225 = pneg %p104
        %s226 = smul.u32 4, %s23
        %p227 = scmp.lt.s32.totalorder %s22, 3
        %s228 = scalar_select %p227, %s22, 3
        %p229 = scmp.lt.s32.totalorder %s226, 3
        %s230 = scalar_select %p229, %s226, 3
        %s231 = smul.addr %s228, 4
        %s232 = sadd.s32 %s230, %s231
        %s233 = smul.addr %s232, 8
        %s234 = scalar_lea.vmem %s2, %s233
        %p235 = pneg %p135
        %p236 = pneg %p132
        %p237 = scmp.lt.s32.totalorder %s22, 3
        %s238 = scalar_select %p237, %s22, 3
        %p239 = scmp.lt.s32.totalorder %s23, 0
        %s240 = scalar_select %p239, %s23, 0
        %s241 = sadd.s32 %s240, %s238
        %s242 = smul.addr %s241, 2
        %s243 = scalar_lea.vmem %s3, %s242
        %s244 = smul.u32 4, %s23
        %p245 = scmp.lt.s32.totalorder %s22, 3
        %s246 = scalar_select %p245, %s22, 3
        %p247 = scmp.lt.s32.totalorder %s244, 3
        %s248 = scalar_select %p247, %s244, 3
        %s249 = smul.addr %s248, 2
        %s250 = smul.addr %s246, 8
        %s251 = sadd.s32 %s249, %s250
        %s252 = smul.addr %s251, 4
        %s253 = scalar_lea.vmem %s0, %s252
        %s254 = smul.u32 4, %s23
        %s255 = smul.u32 4, %s23
        %p256 = scmp.lt.s32.totalorder %s22, 3
        %s257 = scalar_select %p256, %s22, 3
        %p258 = scmp.lt.s32.totalorder %s255, 3
        %s259 = scalar_select %p258, %s255, 3
        %s260 = smul.addr %s257, 4
        %s261 = sadd.s32 %s259, %s260
        %s262 = smul.addr %s261, 8
        %s263 = scalar_lea.vmem %s2, %s262
        %s264 = smul.u32 4, %s23
        %p265 = scmp.lt.s32.totalorder %s22, 3
        %s266 = scalar_select %p265, %s22, 3
        %p267 = scmp.lt.s32.totalorder %s23, 0
        %s268 = scalar_select %p267, %s23, 0
        %s269 = sadd.s32 %s268, %s266
        %s270 = smul.addr %s269, 2
        %s271 = scalar_lea.vmem %s3, %s270
        %v273 = vld [vmem:[%s253] sm:$0xff]
        %v274 = vld [vmem:[%s253 + $0x8] sm:$0xff]
        %v275 = vld [vmem:[%s253 + $0x10] sm:$0xff]
        %v276 = vld [vmem:[%s253 + $0x18] sm:$0xff]
        %v277 = vld [vmem:[%s200] sm:$0xf]
        %v278 = vld [vmem:[%s200 + $0x4] sm:$0xf]
        %v279 = vld [vmem:[%s200 + $0x8] sm:$0xf]
        %v280 = vld [vmem:[%s200 + $0xc] sm:$0xf]
        %v281 = vld [vmem:[%s200 + $0x10] sm:$0xf]
        %v282 = vld [vmem:[%s200 + $0x14] sm:$0xf]
        %v283 = vld [vmem:[%s200 + $0x18] sm:$0xf]
        %v284 = vld [vmem:[%s200 + $0x1c] sm:$0xf]
        %v285 = vld [vmem:[%s200 + $0x20] sm:$0xf]
        %v286 = vld [vmem:[%s200 + $0x24] sm:$0xf]
        %v287 = vld [vmem:[%s200 + $0x28] sm:$0xf]
        %v288 = vld [vmem:[%s200 + $0x2c] sm:$0xf]
        %v289 = vld [vmem:[%s200 + $0x30] sm:$0xf]
        %v290 = vld [vmem:[%s200 + $0x34] sm:$0xf]
        %v291 = vld [vmem:[%s200 + $0x38] sm:$0xf]
        %v292 = vld [vmem:[%s200 + $0x3c] sm:$0xf]
        %v293 = vld [vmem:[%s200 + $0x40] sm:$0xf]
        %v294 = vld [vmem:[%s200 + $0x44] sm:$0xf]
        %v295 = vld [vmem:[%s200 + $0x48] sm:$0xf]
        %v296 = vld [vmem:[%s200 + $0x4c] sm:$0xf]
        %v297 = vld [vmem:[%s200 + $0x50] sm:$0xf]
        %v298 = vld [vmem:[%s200 + $0x54] sm:$0xf]
        %v299 = vld [vmem:[%s200 + $0x58] sm:$0xf]
        %v300 = vld [vmem:[%s200 + $0x5c] sm:$0xf]
        %v301 = vld [vmem:[%s200 + $0x60] sm:$0xf]
        %v302 = vld [vmem:[%s200 + $0x64] sm:$0xf]
        %v303 = vld [vmem:[%s200 + $0x68] sm:$0xf]
        %v304 = vld [vmem:[%s200 + $0x6c] sm:$0xf]
        %v305 = vld [vmem:[%s200 + $0x70] sm:$0xf]
        %v306 = vld [vmem:[%s200 + $0x74] sm:$0xf]
        %v307 = vld [vmem:[%s200 + $0x78] sm:$0xf]
        %v308 = vld [vmem:[%s200 + $0x7c] sm:$0xf]
        %v313 = vunpack.c.l.b16 %v273
        %v314 = vunpack.c.h.b16 %v273
        %v315 = vunpack.c.l.b16 %v274
        %v316 = vunpack.c.h.b16 %v274
        %v317 = vunpack.c.l.b16 %v275
        %v318 = vunpack.c.h.b16 %v275
        %v319 = vunpack.c.l.b16 %v276
        %v320 = vunpack.c.h.b16 %v276
        %v321 = vpack.c.b16 %v315, %v313
        %v322 = vpack.c.b16 %v316, %v314
        %v323 = vpack.c.b16 %v319, %v317
        %v324 = vpack.c.b16 %v320, %v318
        %v361 = vunpack.c.l.b16 %v277
        %v362 = vunpack.c.l.b16 %v278
        %v363 = vunpack.c.l.b16 %v279
        %v364 = vunpack.c.l.b16 %v280
        %v365 = vunpack.c.l.b16 %v281
        %v366 = vunpack.c.l.b16 %v282
        %v367 = vunpack.c.l.b16 %v283
        %v368 = vunpack.c.l.b16 %v284
        %v369 = vunpack.c.l.b16 %v285
        %v370 = vunpack.c.l.b16 %v286
        %v371 = vunpack.c.l.b16 %v287
        %v372 = vunpack.c.l.b16 %v288
        %v373 = vunpack.c.l.b16 %v289
        %v374 = vunpack.c.l.b16 %v290
        %v375 = vunpack.c.l.b16 %v291
        %v376 = vunpack.c.l.b16 %v292
        %v377 = vunpack.c.l.b16 %v293
        %v378 = vunpack.c.l.b16 %v294
        %v379 = vunpack.c.l.b16 %v295
        %v380 = vunpack.c.l.b16 %v296
        %v381 = vunpack.c.l.b16 %v297
        %v382 = vunpack.c.l.b16 %v298
        %v383 = vunpack.c.l.b16 %v299
        %v384 = vunpack.c.l.b16 %v300
        %v385 = vunpack.c.l.b16 %v301
        %v386 = vunpack.c.l.b16 %v302
        %v387 = vunpack.c.l.b16 %v303
        %v388 = vunpack.c.l.b16 %v304
        %v389 = vunpack.c.l.b16 %v305
        %v390 = vunpack.c.l.b16 %v306
        %v391 = vunpack.c.l.b16 %v307
        %v392 = vunpack.c.l.b16 %v308
        %v393 = vpack.c.b16 %v362, %v361
        %v394 = vpack.c.b16 %v364, %v363
        %v395 = vpack.c.b16 %v366, %v365
        %v396 = vpack.c.b16 %v368, %v367
        %v397 = vpack.c.b16 %v370, %v369
        %v398 = vpack.c.b16 %v372, %v371
        %v399 = vpack.c.b16 %v374, %v373
        %v400 = vpack.c.b16 %v376, %v375
        %v401 = vpack.c.b16 %v378, %v377
        %v402 = vpack.c.b16 %v380, %v379
        %v403 = vpack.c.b16 %v382, %v381
        %v404 = vpack.c.b16 %v384, %v383
        %v405 = vpack.c.b16 %v386, %v385
        %v406 = vpack.c.b16 %v388, %v387
        %v407 = vpack.c.b16 %v390, %v389
        %v408 = vpack.c.b16 %v392, %v391
        %425 = vmatprep.subr.bf16.mxu0 0
        %426 = vmatpush1.bf16.msra.mxu0 %v400
        %427 = vmatprep.subr.bf16.mxu0 0
        %428 = vmatpush1.bf16.msra.mxu0 %v399
        %429 = vmatprep.subr.bf16.mxu0 0
        %430 = vmatpush1.bf16.msra.mxu0 %v398
        %431 = vmatprep.subr.bf16.mxu0 0
        %432 = vmatpush1.bf16.msra.mxu0 %v397
        %433 = vmatprep.subr.bf16.mxu0 0
        %434 = vmatpush1.bf16.msra.mxu0 %v396
        %435 = vmatprep.subr.bf16.mxu0 0
        %436 = vmatpush1.bf16.msra.mxu0 %v395
        %437 = vmatprep.subr.bf16.mxu0 0
        %438 = vmatpush1.bf16.msra.mxu0 %v394
        %439 = vmatprep.subr.bf16.mxu0 0
        %440 = vmatpush1.bf16.msra.mxu0 %v393
        %441 = vmatprep.subr.bf16.mxu0 0
        %442 = vmatpush2.bf16.msra.mxu0 %v408
        %443 = vmatprep.subr.bf16.mxu0 0
        %444 = vmatpush2.bf16.msra.mxu0 %v407
        %445 = vmatprep.subr.bf16.mxu0 0
        %446 = vmatpush2.bf16.msra.mxu0 %v406
        %447 = vmatprep.subr.bf16.mxu0 0
        %448 = vmatpush2.bf16.msra.mxu0 %v405
        %449 = vmatprep.subr.bf16.mxu0 0
        %450 = vmatpush2.bf16.msra.mxu0 %v404
        %451 = vmatprep.subr.bf16.mxu0 0
        %452 = vmatpush2.bf16.msra.mxu0 %v403
        %453 = vmatprep.subr.bf16.mxu0 0
        %454 = vmatpush2.bf16.msra.mxu0 %v402
        %455 = vmatprep.subr.bf16.mxu0 0
        %456 = vmatpush2.bf16.msra.mxu0 %v401
        %457 = vmatprep.mubr.bf16.mxu0 %v322
        %458 = vmatmul.mubr.bf16.gmra.mxu0 %v321
        %v459 = vpop.f32.mrf.mxu0
        %v460 = vadd.f32 0.0, %v459
        %v461 = vpop.f32.mrf.mxu0
        %v462 = vpop.f32.mrf.mxu0
        %v463 = vadd.f32 0.0, %v462
        %v464 = vpop.f32.mrf.mxu0
        %465 = vmatprep.mubr.bf16.mxu0 %v324
        %466 = vmatmul.mubr.bf16.gmra.mxu0 %v323
        %v467 = vpop.f32.mrf.mxu0
        %v468 = vadd.f32 0.0, %v467
        %v469 = vpop.f32.mrf.mxu0
        %v470 = vpop.f32.mrf.mxu0
        %v471 = vadd.f32 0.0, %v470
        %v472 = vpop.f32.mrf.mxu0
        %473 = vdwg.mxu0
        %474 = vst [vmem:[%s263] sm:$0xff] %v460
        %475 = vst [vmem:[%s263 + $0x8] sm:$0xff] %v463
        %476 = vst [vmem:[%s263 + $0x10] sm:$0xff] %v468
        %477 = vst [vmem:[%s263 + $0x18] sm:$0xff] %v471
        %v478 = vadd.f32 %v460, %v463
        %v479 = vadd.f32 %v478, %v468
        %v480 = vadd.f32 %v479, %v471
        %v481 = vrot.slane %v480, 4
        %v482 = vadd.f32 %v480, %v481
        %v483 = vrot.slane %v482, 2
        %v484 = vadd.f32 %v482, %v483
        %v485 = vrot.slane %v484, 1
        %v486 = vadd.f32 %v484, %v485
        %v487 = vmul.f32 %v460, %v460
        %v488 = vmul.f32 %v463, %v463
        %v489 = vmul.f32 %v468, %v468
        %v490 = vmul.f32 %v471, %v471
        %v491 = vadd.f32 %v487, %v488
        %v492 = vadd.f32 %v491, %v489
        %v493 = vadd.f32 %v492, %v490
        %v494 = vrot.slane %v493, 4
        %v495 = vadd.f32 %v493, %v494
        %v496 = vrot.slane %v495, 2
        %v497 = vadd.f32 %v495, %v496
        %v498 = vrot.slane %v497, 1
        %v499 = vadd.f32 %v497, %v498
        %vm500 = vcmask 1040384
        %v501 = vsel %vm500, %v486, %v499
        %502 = vst [vmem:[%s271] sm:$0x3] %v501
        %s503 = smul.u32 4, %s23
        %p504 = scmp.lt.s32.totalorder %s22, 3
        %s505 = scalar_select %p504, %s22, 3
        %p506 = scmp.lt.s32.totalorder %s503, 3
        %s507 = scalar_select %p506, %s503, 3
        %s508 = smul.addr %s505, 4
        %s509 = sadd.s32 %s507, %s508
        %s510 = smul.addr %s509, 8
        %s511 = scalar_lea.vmem %s2, %s510
        %p512 = scmp.lt.s32.totalorder %s22, 3
        %s513 = scalar_select %p512, %s22, 3
        %p514 = scmp.lt.s32.totalorder %s23, 0
        %s515 = scalar_select %p514, %s23, 0
        %s516 = sadd.s32 %s515, %s513
        %s517 = smul.addr %s516, 2
        %s518 = scalar_lea.vmem %s3, %s517
        // Predicated region
        $region33: #{forward.11} parent=27 // pred_check
          %p519 = pneg %p104
        $region34: #{forward.11} parent=27 // pred_check_branch
          %521 = sbr.rel (%p519) target = $region36
        $region35: #{forward.11} parent=27 // pred_region
          %s522 = smul.u32 4, %s23
        $region36: #{forward.11} parent=27 // pred_fallthru
          _
        // Predicated region
        $region37: #{forward.11} parent=27 // pred_check
          %p523 = pneg %p132
        $region38: #{forward.11} parent=27 // pred_check_branch
          %525 = sbr.rel (%p523) target = $region40
        $region39: #{forward.11} parent=27 // pred_region
          _
        $region40: #{forward.11} parent=27 // pred_fallthru
          _
      $region28: #{forward.11} parent=5 // pred_fallthru
        _
      %p526 = scmp.le.s32.totalorder 2, %s13
      // Predicated region
      $region41: #{forward.11} parent=5 // pred_check
        %p527 = pneg %p526
      $region42: #{forward.11} parent=5 // pred_check_branch
        %529 = sbr.rel (%p527) target = $region44
      $region43: #{forward.11} parent=5 // pred_region
        %s530 = ssub.s32 %s13, 2
        // Predicated region
        $region45: #{forward.11} parent=43 // pred_check
          %p531 = pneg %p110
        $region46: #{forward.11} parent=43 // pred_check_branch
          %533 = sbr.rel (%p531) target = $region48
        $region47: #{forward.11} parent=43 // pred_region
          %s534 = smul.u32 4, %s25
          %p535 = scmp.lt.s32.totalorder %s24, 3
          %s536 = scalar_select %p535, %s24, 3
          %p537 = scmp.lt.s32.totalorder %s534, 3
          %s538 = scalar_select %p537, %s534, 3
          %s539 = smul.addr %s536, 4
          %s540 = sadd.s32 %s538, %s539
          %s541 = smul.addr %s540, 8
          %s542 = scalar_lea.vmem %s2, %s541
        $region48: #{forward.11} parent=43 // pred_fallthru
          _
        // Predicated region
        $region49: #{forward.11} parent=43 // pred_check
          %p543 = pneg %p138
        $region50: #{forward.11} parent=43 // pred_check_branch
          %545 = sbr.rel (%p543) target = $region52
        $region51: #{forward.11} parent=43 // pred_region
          %p546 = scmp.lt.s32.totalorder %s24, 3
          %s547 = scalar_select %p546, %s24, 3
          %p548 = scmp.lt.s32.totalorder %s25, 0
          %s549 = scalar_select %p548, %s25, 0
          %s550 = sadd.s32 %s549, %s547
          %s551 = smul.addr %s550, 2
          %s552 = scalar_lea.vmem %s3, %s551
        $region52: #{forward.11} parent=43 // pred_fallthru
          _
      $region44: #{forward.11} parent=5 // pred_fallthru
        _
    $region6: #{forward.11} parent=1 // loop_footer
      %s17 = sadd.s32 1, %s13
    $region7: #{forward.11} parent=1 // loop_footer_branch
      %12 = sbr.rel target = $region3
    $region8: #{forward.11} parent=1 // loop_exit
      _
    %553 = vsyncpa [#allocation3], 1
    %s554 = scalar_lea.sflag [#allocation3], 1
    %555 = vsyncpa %s554, 1

// kernel: forward.12
$region0: #{forward.12}
  #allocation0 [shape = 'u32[]', space=smem, size = 0x4, offset = 0x4, fixed_abs, tag = 'smem constant byte address 0x4 - core index']
  #allocation1 [shape = 'u32[144,128]{1,0:T(1,128)}', space=vmem, size = 0x12000, scoped, tag = 'internal scratch']
  %s0 = inlined_call_operand.vmem [shape: f32[4,32,128], index: 0, kind: input, shape index: {}]
  %s1 = inlined_call_operand.vmem [shape: f32[1,128], index: 1, kind: input, shape index: {}]
  %s2 = inlined_call_operand.vmem [shape: f32[1,128], index: 2, kind: input, shape index: {}]
  %s3 = inlined_call_operand.vmem [shape: bf16[4,32,128], index: 3, kind: output, shape index: {}]
  %s4 = sld [smem:[#allocation0]]
  $region45: #{forward.12} parent=0
    _
  %s6 = ssub.s32 1, %s4
  %s7 = scalar_select 0, %s6, %s4
  loop: start=0, step=1, limit=6
  $region2: #{forward.12} parent=0 // loop_pre_header
    _
  $region3: #{forward.12} parent=0 // loop_header
    %s9 = sphi 0, %s13
    %p10 = scmp.ge.s32.totalorder %s9, 6
    %s16 = sphi 0, %s28
    %s17 = sphi 0, %s24
    %s18 = sphi 0, %s16
    %s19 = sphi 0, %s17
    %s20 = sphi 0, %s18
    %s21 = sphi 0, %s19
    %s33 = sphi 0, %s35
    %s36 = sphi 0, %s33
    %s37 = sphi 0, %s36
    %s53 = sphi 0, %s37
    %s57 = sphi 0, %s57
    %s59 = sphi 0, %s57
    %s60 = sphi 0, %s59
    %s74 = sphi 0, %s60
    %s78 = sphi 0, %s78
    %s80 = sphi 0, %s78
    %s81 = sphi 0, %s80
    %s95 = sphi 0, %s81
    %s103 = sphi 0, %s105
    %s106 = sphi 0, %s103
    %s107 = sphi 0, %s106
    %s123 = sphi 0, %s107
  $region4: #{forward.12} parent=0 // loop_header_branch
    %12 = sbr.rel (%p10) target = $region8
  $region5: #{forward.12} parent=0 // loop_body
    %s14 = ssub.s32 %s9, 1
    %s15 = ssub.s32 %s9, 2
    %s22 = sadd.s32 1, %s17
    %p23 = scmp.ge.s32.totalorder %s22, 1
    %s24 = scalar_select %p23, 0, %s22
    %s25 = sadd.s32 1, %s16
    %s26 = scalar_select %p23, %s25, %s16
    %p27 = scmp.ge.s32.totalorder %s26, 4
    %s28 = scalar_select %p27, 0, %s26
    %s29 = ssub.s32 %s16, %s28
    %s30 = ssub.s32 %s17, %s24
    %s31 = sor.u32 %s29, %s30
    %p32 = scmp.eq.s32.totalorder %s31, 0
    %s34 = sadd.s32 %s33, 1
    %s35 = scalar_select %p32, %s33, %s34
    %p38 = pneg %p32
    %p39 = scmp.eq.s32.totalorder %s9, 3
    %p40 = por %p38, %p39
    %p41 = scmp.ne.s32.totalorder %s33, %s36
    %p42 = scmp.eq.s32.totalorder %s9, 0
    %p43 = por %p41, %p42
    %p44 = scmp.ne.s32.totalorder %s33, %s36
    %p45 = scmp.eq.s32.totalorder %s14, 3
    %p46 = por %p44, %p45
    %p47 = scmp.ne.s32.totalorder %s36, %s37
    %p48 = scmp.eq.s32.totalorder %s14, 0
    %p49 = por %p47, %p48
    %p50 = scmp.ne.s32.totalorder %s36, %s37
    %p51 = scmp.eq.s32.totalorder %s15, 3
    %p52 = por %p50, %p51
    %p54 = scmp.ne.s32.totalorder %s37, %s53
    %p55 = scmp.eq.s32.totalorder %s15, 0
    %p56 = por %p54, %p55
    %s58 = sadd.s32 %s57, 1
    %p61 = scmp.eq.s32.totalorder %s9, 3
    %p62 = scmp.ne.s32.totalorder %s57, %s59
    %p63 = scmp.eq.s32.totalorder %s9, 0
    %p64 = por %p62, %p63
    %p65 = scmp.ne.s32.totalorder %s57, %s59
    %p66 = scmp.eq.s32.totalorder %s14, 3
    %p67 = por %p65, %p66
    %p68 = scmp.ne.s32.totalorder %s59, %s60
    %p69 = scmp.eq.s32.totalorder %s14, 0
    %p70 = por %p68, %p69
    %p71 = scmp.ne.s32.totalorder %s59, %s60
    %p72 = scmp.eq.s32.totalorder %s15, 3
    %p73 = por %p71, %p72
    %p75 = scmp.ne.s32.totalorder %s60, %s74
    %p76 = scmp.eq.s32.totalorder %s15, 0
    %p77 = por %p75, %p76
    %s79 = sadd.s32 %s78, 1
    %p82 = scmp.eq.s32.totalorder %s9, 3
    %p83 = scmp.ne.s32.totalorder %s78, %s80
    %p84 = scmp.eq.s32.totalorder %s9, 0
    %p85 = por %p83, %p84
    %p86 = scmp.ne.s32.totalorder %s78, %s80
    %p87 = scmp.eq.s32.totalorder %s14, 3
    %p88 = por %p86, %p87
    %p89 = scmp.ne.s32.totalorder %s80, %s81
    %p90 = scmp.eq.s32.totalorder %s14, 0
    %p91 = por %p89, %p90
    %p92 = scmp.ne.s32.totalorder %s80, %s81
    %p93 = scmp.eq.s32.totalorder %s15, 3
    %p94 = por %p92, %p93
    %p96 = scmp.ne.s32.totalorder %s81, %s95
    %p97 = scmp.eq.s32.totalorder %s15, 0
    %p98 = por %p96, %p97
    %s99 = ssub.s32 %s16, %s28
    %s100 = ssub.s32 %s17, %s24
    %s101 = sor.u32 %s99, %s100
    %p102 = scmp.eq.s32.totalorder %s101, 0
    %s104 = sadd.s32 %s103, 1
    %s105 = scalar_select %p102, %s103, %s104
    %p108 = pneg %p102
    %p109 = scmp.eq.s32.totalorder %s9, 3
    %p110 = por %p108, %p109
    %p111 = scmp.ne.s32.totalorder %s103, %s106
    %p112 = scmp.eq.s32.totalorder %s9, 0
    %p113 = por %p111, %p112
    %p114 = scmp.ne.s32.totalorder %s103, %s106
    %p115 = scmp.eq.s32.totalorder %s14, 3
    %p116 = por %p114, %p115
    %p117 = scmp.ne.s32.totalorder %s106, %s107
    %p118 = scmp.eq.s32.totalorder %s14, 0
    %p119 = por %p117, %p118
    %p120 = scmp.ne.s32.totalorder %s106, %s107
    %p121 = scmp.eq.s32.totalorder %s15, 3
    %p122 = por %p120, %p121
    %p124 = scmp.ne.s32.totalorder %s107, %s123
    %p125 = scmp.eq.s32.totalorder %s15, 0
    %p126 = por %p124, %p125
    %p127 = scmp.le.s32.totalorder 1, %s9
    %p128 = scmp.lt.s32.totalorder %s9, 5
    %p129 = pnand %p127, %p128
    %p130 = pneg %p129
    // Predicated region
    $region9: #{forward.12} parent=5 // pred_check
      _
    $region10: #{forward.12} parent=5 // pred_check_branch
      %132 = sbr.rel (%p129) target = $region12
    $region11: #{forward.12} parent=5 // pred_region
      %s133 = ssub.s32 %s9, 1
      // Predicated region
      $region13: #{forward.12} parent=11 // pred_check
        %p134 = pneg %p70
      $region14: #{forward.12} parent=11 // pred_check_branch
        %136 = sbr.rel (%p134) target = $region16
      $region15: #{forward.12} parent=11 // pred_region
        _
      $region16: #{forward.12} parent=11 // pred_fallthru
        _
      // Predicated region
      $region17: #{forward.12} parent=11 // pred_check
        %p137 = pneg %p91
      $region18: #{forward.12} parent=11 // pred_check_branch
        %139 = sbr.rel (%p137) target = $region20
      $region19: #{forward.12} parent=11 // pred_region
        _
      $region20: #{forward.12} parent=11 // pred_fallthru
        _
    $region12: #{forward.12} parent=5 // pred_fallthru
      _
    %p140 = scmp.lt.s32.totalorder %s9, 4
    // Predicated region
    $region21: #{forward.12} parent=5 // pred_check
      %p141 = pneg %p140
    $region22: #{forward.12} parent=5 // pred_check_branch
      %143 = sbr.rel (%p141) target = $region24
    $region23: #{forward.12} parent=5 // pred_region
      // Predicated region
      $region25: #{forward.12} parent=23 // pred_check
        %p144 = pneg %p43
      $region26: #{forward.12} parent=23 // pred_check_branch
        %146 = sbr.rel (%p144) target = $region28
      $region27: #{forward.12} parent=23 // pred_region
        %s147 = smul.u32 4, %s17
        %p148 = scmp.lt.s32.totalorder %s16, 3
        %s149 = scalar_select %p148, %s16, 3
        %p150 = scmp.lt.s32.totalorder %s147, 3
        %s151 = scalar_select %p150, %s147, 3
        %s152 = smul.addr %s149, 4
        %s153 = sadd.s32 %s151, %s152
        %s154 = smul.addr %s153, 8
        %s155 = scalar_lea.vmem %s0, %s154
        %s156 = smul.u32 4, %s17
      $region28: #{forward.12} parent=23 // pred_fallthru
        _
    $region24: #{forward.12} parent=5 // pred_fallthru
      _
    %p157 = scmp.le.s32.totalorder 1, %s9
    %p158 = scmp.lt.s32.totalorder %s9, 5
    %p159 = pnand %p157, %p158
    %p160 = pneg %p159
    // Predicated region
    $region29: #{forward.12} parent=5 // pred_check
      _
    $region30: #{forward.12} parent=5 // pred_check_branch
      %162 = sbr.rel (%p159) target = $region32
    $region31: #{forward.12} parent=5 // pred_region
      %s163 = ssub.s32 %s9, 1
      %s164 = smul.u32 4, %s19
      %p165 = scmp.lt.s32.totalorder %s18, 3
      %s166 = scalar_select %p165, %s18, 3
      %p167 = scmp.lt.s32.totalorder %s164, 3
      %s168 = scalar_select %p167, %s164, 3
      %s169 = smul.addr %s166, 4
      %s170 = sadd.s32 %s168, %s169
      %s171 = smul.addr %s170, 8
      %s172 = scalar_lea.vmem %s0, %s171
      %p173 = pneg %p49
      %p174 = pneg %p46
      %p175 = pneg %p70
      %p176 = pneg %p67
      %p177 = pneg %p91
      %p178 = pneg %p88
      %p179 = pneg %p119
      %p180 = pneg %p116
      %s181 = smul.u32 4, %s19
      %p182 = scmp.lt.s32.totalorder %s18, 3
      %s183 = scalar_select %p182, %s18, 3
      %p184 = scmp.lt.s32.totalorder %s181, 3
      %s185 = scalar_select %p184, %s181, 3
      %s186 = smul.addr %s183, 4
      %s187 = sadd.s32 %s185, %s186
      %s188 = smul.addr %s187, 4
      %s189 = scalar_lea.vmem %s3, %s188
      %s190 = smul.u32 4, %s19
      %p191 = scmp.lt.s32.totalorder %s18, 3
      %s192 = scalar_select %p191, %s18, 3
      %p193 = scmp.lt.s32.totalorder %s190, 3
      %s194 = scalar_select %p193, %s190, 3
      %s195 = smul.addr %s192, 4
      %s196 = sadd.s32 %s194, %s195
      %s197 = smul.addr %s196, 8
      %s198 = scalar_lea.vmem %s0, %s197
      %s199 = smul.u32 4, %s19
      %s200 = smul.u32 4, %s19
      %p201 = scmp.lt.s32.totalorder %s18, 3
      %s202 = scalar_select %p201, %s18, 3
      %p203 = scmp.lt.s32.totalorder %s200, 3
      %s204 = scalar_select %p203, %s200, 3
      %s205 = smul.addr %s202, 4
      %s206 = sadd.s32 %s204, %s205
      %s207 = smul.addr %s206, 4
      %s208 = scalar_lea.vmem %s3, %s207
      %s209 = smul.u32 4, %s19
      %v210 = vld [vmem:[%s198] sm:$0xff]
      %v211 = vld [vmem:[%s198 + $0x8] sm:$0xff]
      %v212 = vld [vmem:[%s198 + $0x10] sm:$0xff]
      %v213 = vld [vmem:[%s198 + $0x18] sm:$0xff]
      %v214 = vld [vmem:[%s1] sm:$0x1]
      %v216 = vlaneseq
      %v217 = vshrl.u32 %v216, 7
      %v218 = vsub.s32 0, %v217
      %v219 = vrot.slane %v214, %v218
      %v221 = vmul.f32 %v210, %v219
      %v222 = vmul.f32 %v211, %v219
      %v223 = vmul.f32 %v212, %v219
      %v224 = vmul.f32 %v213, %v219
      %v225 = vld [vmem:[%s2] sm:$0x1]
      %v227 = vlaneseq
      %v228 = vshrl.u32 %v227, 7
      %v229 = vsub.s32 0, %v228
      %v230 = vrot.slane %v225, %v229
      %v232 = vadd.f32 %v221, %v230
      %v233 = vadd.f32 %v222, %v230
      %v234 = vadd.f32 %v223, %v230
      %v235 = vadd.f32 %v224, %v230
      %v236 = vmax.f32 %v232, 0.0
      %v237 = vmax.f32 %v233, 0.0
      %v238 = vmax.f32 %v234, 0.0
      %v239 = vmax.f32 %v235, 0.0
      %v240 = vpack.c.bf16 %v237, %v236
      %v241 = vpack.c.bf16 %v239, %v238
      %v244 = vunpack.c.l.b16 %v240
      %v245 = vunpack.c.h.b16 %v240
      %v246 = vunpack.c.l.b16 %v241
      %v247 = vunpack.c.h.b16 %v241
      %v248 = vpack.c.b16 %v244, %v244
      %v249 = vpack.c.b16 %v245, %v245
      %v250 = vpack.c.b16 %v246, %v246
      %v251 = vpack.c.b16 %v247, %v247
      %256 = vst [vmem:[%s208] sm:$0xf] %v248
      %257 = vst [vmem:[%s208 + $0x4] sm:$0xf] %v249
      %258 = vst [vmem:[%s208 + $0x8] sm:$0xf] %v250
      %259 = vst [vmem:[%s208 + $0xc] sm:$0xf] %v251
      %s260 = smul.u32 4, %s19
      %p261 = scmp.lt.s32.totalorder %s18, 3
      %s262 = scalar_select %p261, %s18, 3
      %p263 = scmp.lt.s32.totalorder %s260, 3
      %s264 = scalar_select %p263, %s260, 3
      %s265 = smul.addr %s262, 4
      %s266 = sadd.s32 %s264, %s265
      %s267 = smul.addr %s266, 4
      %s268 = scalar_lea.vmem %s3, %s267
      // Predicated region
      $region33: #{forward.12} parent=31 // pred_check
        %p269 = pneg %p116
      $region34: #{forward.12} parent=31 // pred_check_branch
        %271 = sbr.rel (%p269) target = $region36
      $region35: #{forward.12} parent=31 // pred_region
        %s272 = smul.u32 4, %s19
      $region36: #{forward.12} parent=31 // pred_fallthru
        _
    $region32: #{forward.12} parent=5 // pred_fallthru
      _
    %p273 = scmp.le.s32.totalorder 2, %s9
    // Predicated region
    $region37: #{forward.12} parent=5 // pred_check
      %p274 = pneg %p273
    $region38: #{forward.12} parent=5 // pred_check_branch
      %276 = sbr.rel (%p274) target = $region40
    $region39: #{forward.12} parent=5 // pred_region
      %s277 = ssub.s32 %s9, 2
      // Predicated region
      $region41: #{forward.12} parent=39 // pred_check
        %p278 = pneg %p122
      $region42: #{forward.12} parent=39 // pred_check_branch
        %280 = sbr.rel (%p278) target = $region44
      $region43: #{forward.12} parent=39 // pred_region
        %s281 = smul.u32 4, %s21
        %p282 = scmp.lt.s32.totalorder %s20, 3
        %s283 = scalar_select %p282, %s20, 3
        %p284 = scmp.lt.s32.totalorder %s281, 3
        %s285 = scalar_select %p284, %s281, 3
        %s286 = smul.addr %s283, 4
        %s287 = sadd.s32 %s285, %s286
        %s288 = smul.addr %s287, 4
        %s289 = scalar_lea.vmem %s3, %s288
      $region44: #{forward.12} parent=39 // pred_fallthru
        _
    $region40: #{forward.12} parent=5 // pred_fallthru
      _
  $region6: #{forward.12} parent=0 // loop_footer
    %s13 = sadd.s32 1, %s9
  $region7: #{forward.12} parent=0 // loop_footer_branch
    %8 = sbr.rel target = $region3
  $region8: #{forward.12} parent=0 // loop_exit
    _

// kernel: forward.14
$region0: #{forward.14}
  #allocation0 [shape = 'u32[]', space=smem, size = 0x4, offset = 0x4, fixed_abs, tag = 'smem constant byte address 0x4 - core index']
  #allocation1 [shape = 'u32[144,128]{1,0:T(1,128)}', space=vmem, size = 0x12000, scoped, tag = 'internal scratch']
  %s0 = inlined_call_operand.vmem [shape: f32[4,128,128], index: 0, kind: input, shape index: {}]
  %s1 = inlined_call_operand.vmem [shape: f32[1,128], index: 1, kind: input, shape index: {}]
  %s2 = inlined_call_operand.vmem [shape: f32[1,128], index: 2, kind: input, shape index: {}]
  %s3 = inlined_call_operand.vmem [shape: bf16[4,128,128], index: 3, kind: output, shape index: {}]
  %s4 = sld [smem:[#allocation0]]
  $region45: #{forward.14} parent=0
    _
  %s6 = ssub.s32 1, %s4
  %s7 = scalar_select 0, %s6, %s4
  loop: start=0, step=1, limit=6
  $region2: #{forward.14} parent=0 // loop_pre_header
    _
  $region3: #{forward.14} parent=0 // loop_header
    %s9 = sphi 0, %s13
    %p10 = scmp.ge.s32.totalorder %s9, 6
    %s16 = sphi 0, %s28
    %s17 = sphi 0, %s24
    %s18 = sphi 0, %s16
    %s19 = sphi 0, %s17
    %s20 = sphi 0, %s18
    %s21 = sphi 0, %s19
    %s33 = sphi 0, %s35
    %s36 = sphi 0, %s33
    %s37 = sphi 0, %s36
    %s53 = sphi 0, %s37
    %s57 = sphi 0, %s57
    %s59 = sphi 0, %s57
    %s60 = sphi 0, %s59
    %s74 = sphi 0, %s60
    %s78 = sphi 0, %s78
    %s80 = sphi 0, %s78
    %s81 = sphi 0, %s80
    %s95 = sphi 0, %s81
    %s103 = sphi 0, %s105
    %s106 = sphi 0, %s103
    %s107 = sphi 0, %s106
    %s123 = sphi 0, %s107
  $region4: #{forward.14} parent=0 // loop_header_branch
    %12 = sbr.rel (%p10) target = $region8
  $region5: #{forward.14} parent=0 // loop_body
    %s14 = ssub.s32 %s9, 1
    %s15 = ssub.s32 %s9, 2
    %s22 = sadd.s32 1, %s17
    %p23 = scmp.ge.s32.totalorder %s22, 1
    %s24 = scalar_select %p23, 0, %s22
    %s25 = sadd.s32 1, %s16
    %s26 = scalar_select %p23, %s25, %s16
    %p27 = scmp.ge.s32.totalorder %s26, 4
    %s28 = scalar_select %p27, 0, %s26
    %s29 = ssub.s32 %s16, %s28
    %s30 = ssub.s32 %s17, %s24
    %s31 = sor.u32 %s29, %s30
    %p32 = scmp.eq.s32.totalorder %s31, 0
    %s34 = sadd.s32 %s33, 1
    %s35 = scalar_select %p32, %s33, %s34
    %p38 = pneg %p32
    %p39 = scmp.eq.s32.totalorder %s9, 3
    %p40 = por %p38, %p39
    %p41 = scmp.ne.s32.totalorder %s33, %s36
    %p42 = scmp.eq.s32.totalorder %s9, 0
    %p43 = por %p41, %p42
    %p44 = scmp.ne.s32.totalorder %s33, %s36
    %p45 = scmp.eq.s32.totalorder %s14, 3
    %p46 = por %p44, %p45
    %p47 = scmp.ne.s32.totalorder %s36, %s37
    %p48 = scmp.eq.s32.totalorder %s14, 0
    %p49 = por %p47, %p48
    %p50 = scmp.ne.s32.totalorder %s36, %s37
    %p51 = scmp.eq.s32.totalorder %s15, 3
    %p52 = por %p50, %p51
    %p54 = scmp.ne.s32.totalorder %s37, %s53
    %p55 = scmp.eq.s32.totalorder %s15, 0
    %p56 = por %p54, %p55
    %s58 = sadd.s32 %s57, 1
    %p61 = scmp.eq.s32.totalorder %s9, 3
    %p62 = scmp.ne.s32.totalorder %s57, %s59
    %p63 = scmp.eq.s32.totalorder %s9, 0
    %p64 = por %p62, %p63
    %p65 = scmp.ne.s32.totalorder %s57, %s59
    %p66 = scmp.eq.s32.totalorder %s14, 3
    %p67 = por %p65, %p66
    %p68 = scmp.ne.s32.totalorder %s59, %s60
    %p69 = scmp.eq.s32.totalorder %s14, 0
    %p70 = por %p68, %p69
    %p71 = scmp.ne.s32.totalorder %s59, %s60
    %p72 = scmp.eq.s32.totalorder %s15, 3
    %p73 = por %p71, %p72
    %p75 = scmp.ne.s32.totalorder %s60, %s74
    %p76 = scmp.eq.s32.totalorder %s15, 0
    %p77 = por %p75, %p76
    %s79 = sadd.s32 %s78, 1
    %p82 = scmp.eq.s32.totalorder %s9, 3
    %p83 = scmp.ne.s32.totalorder %s78, %s80
    %p84 = scmp.eq.s32.totalorder %s9, 0
    %p85 = por %p83, %p84
    %p86 = scmp.ne.s32.totalorder %s78, %s80
    %p87 = scmp.eq.s32.totalorder %s14, 3
    %p88 = por %p86, %p87
    %p89 = scmp.ne.s32.totalorder %s80, %s81
    %p90 = scmp.eq.s32.totalorder %s14, 0
    %p91 = por %p89, %p90
    %p92 = scmp.ne.s32.totalorder %s80, %s81
    %p93 = scmp.eq.s32.totalorder %s15, 3
    %p94 = por %p92, %p93
    %p96 = scmp.ne.s32.totalorder %s81, %s95
    %p97 = scmp.eq.s32.totalorder %s15, 0
    %p98 = por %p96, %p97
    %s99 = ssub.s32 %s16, %s28
    %s100 = ssub.s32 %s17, %s24
    %s101 = sor.u32 %s99, %s100
    %p102 = scmp.eq.s32.totalorder %s101, 0
    %s104 = sadd.s32 %s103, 1
    %s105 = scalar_select %p102, %s103, %s104
    %p108 = pneg %p102
    %p109 = scmp.eq.s32.totalorder %s9, 3
    %p110 = por %p108, %p109
    %p111 = scmp.ne.s32.totalorder %s103, %s106
    %p112 = scmp.eq.s32.totalorder %s9, 0
    %p113 = por %p111, %p112
    %p114 = scmp.ne.s32.totalorder %s103, %s106
    %p115 = scmp.eq.s32.totalorder %s14, 3
    %p116 = por %p114, %p115
    %p117 = scmp.ne.s32.totalorder %s106, %s107
    %p118 = scmp.eq.s32.totalorder %s14, 0
    %p119 = por %p117, %p118
    %p120 = scmp.ne.s32.totalorder %s106, %s107
    %p121 = scmp.eq.s32.totalorder %s15, 3
    %p122 = por %p120, %p121
    %p124 = scmp.ne.s32.totalorder %s107, %s123
    %p125 = scmp.eq.s32.totalorder %s15, 0
    %p126 = por %p124, %p125
    %p127 = scmp.le.s32.totalorder 1, %s9
    %p128 = scmp.lt.s32.totalorder %s9, 5
    %p129 = pnand %p127, %p128
    %p130 = pneg %p129
    // Predicated region
    $region9: #{forward.14} parent=5 // pred_check
      _
    $region10: #{forward.14} parent=5 // pred_check_branch
      %132 = sbr.rel (%p129) target = $region12
    $region11: #{forward.14} parent=5 // pred_region
      %s133 = ssub.s32 %s9, 1
      // Predicated region
      $region13: #{forward.14} parent=11 // pred_check
        %p134 = pneg %p70
      $region14: #{forward.14} parent=11 // pred_check_branch
        %136 = sbr.rel (%p134) target = $region16
      $region15: #{forward.14} parent=11 // pred_region
        _
      $region16: #{forward.14} parent=11 // pred_fallthru
        _
      // Predicated region
      $region17: #{forward.14} parent=11 // pred_check
        %p137 = pneg %p91
      $region18: #{forward.14} parent=11 // pred_check_branch
        %139 = sbr.rel (%p137) target = $region20
      $region19: #{forward.14} parent=11 // pred_region
        _
      $region20: #{forward.14} parent=11 // pred_fallthru
        _
    $region12: #{forward.14} parent=5 // pred_fallthru
      _
    %p140 = scmp.lt.s32.totalorder %s9, 4
    // Predicated region
    $region21: #{forward.14} parent=5 // pred_check
      %p141 = pneg %p140
    $region22: #{forward.14} parent=5 // pred_check_branch
      %143 = sbr.rel (%p141) target = $region24
    $region23: #{forward.14} parent=5 // pred_region
      // Predicated region
      $region25: #{forward.14} parent=23 // pred_check
        %p144 = pneg %p43
      $region26: #{forward.14} parent=23 // pred_check_branch
        %146 = sbr.rel (%p144) target = $region28
      $region27: #{forward.14} parent=23 // pred_region
        %s147 = smul.u32 16, %s17
        %p148 = scmp.lt.s32.totalorder %s16, 3
        %s149 = scalar_select %p148, %s16, 3
        %p150 = scmp.lt.s32.totalorder %s147, 15
        %s151 = scalar_select %p150, %s147, 15
        %s152 = smul.addr %s149, 16
        %s153 = sadd.s32 %s151, %s152
        %s154 = smul.addr %s153, 8
        %s155 = scalar_lea.vmem %s0, %s154
        %s156 = smul.u32 16, %s17
      $region28: #{forward.14} parent=23 // pred_fallthru
        _
    $region24: #{forward.14} parent=5 // pred_fallthru
      _
    %p157 = scmp.le.s32.totalorder 1, %s9
    %p158 = scmp.lt.s32.totalorder %s9, 5
    %p159 = pnand %p157, %p158
    %p160 = pneg %p159
    // Predicated region
    $region29: #{forward.14} parent=5 // pred_check
      _
    $region30: #{forward.14} parent=5 // pred_check_branch
      %162 = sbr.rel (%p159) target = $region32
    $region31: #{forward.14} parent=5 // pred_region
      %s163 = ssub.s32 %s9, 1
      %s164 = smul.u32 16, %s19
      %p165 = scmp.lt.s32.totalorder %s18, 3
      %s166 = scalar_select %p165, %s18, 3
      %p167 = scmp.lt.s32.totalorder %s164, 15
      %s168 = scalar_select %p167, %s164, 15
      %s169 = smul.addr %s166, 16
      %s170 = sadd.s32 %s168, %s169
      %s171 = smul.addr %s170, 8
      %s172 = scalar_lea.vmem %s0, %s171
      %p173 = pneg %p49
      %p174 = pneg %p46
      %p175 = pneg %p70
      %p176 = pneg %p67
      %p177 = pneg %p91
      %p178 = pneg %p88
      %p179 = pneg %p119
      %p180 = pneg %p116
      %s181 = smul.u32 16, %s19
      %p182 = scmp.lt.s32.totalorder %s18, 3
      %s183 = scalar_select %p182, %s18, 3
      %p184 = scmp.lt.s32.totalorder %s181, 15
      %s185 = scalar_select %p184, %s181, 15
      %s186 = smul.addr %s183, 16
      %s187 = sadd.s32 %s185, %s186
      %s188 = smul.addr %s187, 4
      %s189 = scalar_lea.vmem %s3, %s188
      %s190 = smul.u32 16, %s19
      %p191 = scmp.lt.s32.totalorder %s18, 3
      %s192 = scalar_select %p191, %s18, 3
      %p193 = scmp.lt.s32.totalorder %s190, 15
      %s194 = scalar_select %p193, %s190, 15
      %s195 = smul.addr %s192, 16
      %s196 = sadd.s32 %s194, %s195
      %s197 = smul.addr %s196, 8
      %s198 = scalar_lea.vmem %s0, %s197
      %s199 = smul.u32 16, %s19
      %s200 = smul.u32 16, %s19
      %p201 = scmp.lt.s32.totalorder %s18, 3
      %s202 = scalar_select %p201, %s18, 3
      %p203 = scmp.lt.s32.totalorder %s200, 15
      %s204 = scalar_select %p203, %s200, 15
      %s205 = smul.addr %s202, 16
      %s206 = sadd.s32 %s204, %s205
      %s207 = smul.addr %s206, 4
      %s208 = scalar_lea.vmem %s3, %s207
      %s209 = smul.u32 16, %s19
      %v210 = vld [vmem:[%s198] sm:$0xff]
      %v211 = vld [vmem:[%s198 + $0x8] sm:$0xff]
      %v212 = vld [vmem:[%s198 + $0x10] sm:$0xff]
      %v213 = vld [vmem:[%s198 + $0x18] sm:$0xff]
      %v214 = vld [vmem:[%s198 + $0x20] sm:$0xff]
      %v215 = vld [vmem:[%s198 + $0x28] sm:$0xff]
      %v216 = vld [vmem:[%s198 + $0x30] sm:$0xff]
      %v217 = vld [vmem:[%s198 + $0x38] sm:$0xff]
      %v218 = vld [vmem:[%s198 + $0x40] sm:$0xff]
      %v219 = vld [vmem:[%s198 + $0x48] sm:$0xff]
      %v220 = vld [vmem:[%s198 + $0x50] sm:$0xff]
      %v221 = vld [vmem:[%s198 + $0x58] sm:$0xff]
      %v222 = vld [vmem:[%s198 + $0x60] sm:$0xff]
      %v223 = vld [vmem:[%s198 + $0x68] sm:$0xff]
      %v224 = vld [vmem:[%s198 + $0x70] sm:$0xff]
      %v225 = vld [vmem:[%s198 + $0x78] sm:$0xff]
      %v226 = vld [vmem:[%s1] sm:$0x1]
      %v228 = vlaneseq
      %v229 = vshrl.u32 %v228, 7
      %v230 = vsub.s32 0, %v229
      %v231 = vrot.slane %v226, %v230
      %v233 = vmul.f32 %v210, %v231
      %v234 = vmul.f32 %v211, %v231
      %v235 = vmul.f32 %v212, %v231
      %v236 = vmul.f32 %v213, %v231
      %v237 = vmul.f32 %v214, %v231
      %v238 = vmul.f32 %v215, %v231
      %v239 = vmul.f32 %v216, %v231
      %v240 = vmul.f32 %v217, %v231
      %v241 = vmul.f32 %v218, %v231
      %v242 = vmul.f32 %v219, %v231
      %v243 = vmul.f32 %v220, %v231
      %v244 = vmul.f32 %v221, %v231
      %v245 = vmul.f32 %v222, %v231
      %v246 = vmul.f32 %v223, %v231
      %v247 = vmul.f32 %v224, %v231
      %v248 = vmul.f32 %v225, %v231
      %v249 = vld [vmem:[%s2] sm:$0x1]
      %v251 = vlaneseq
      %v252 = vshrl.u32 %v251, 7
      %v253 = vsub.s32 0, %v252
      %v254 = vrot.slane %v249, %v253
      %v256 = vadd.f32 %v233, %v254
      %v257 = vadd.f32 %v234, %v254
      %v258 = vadd.f32 %v235, %v254
      %v259 = vadd.f32 %v236, %v254
      %v260 = vadd.f32 %v237, %v254
      %v261 = vadd.f32 %v238, %v254
      %v262 = vadd.f32 %v239, %v254
      %v263 = vadd.f32 %v240, %v254
      %v264 = vadd.f32 %v241, %v254
      %v265 = vadd.f32 %v242, %v254
      %v266 = vadd.f32 %v243, %v254
      %v267 = vadd.f32 %v244, %v254
      %v268 = vadd.f32 %v245, %v254
      %v269 = vadd.f32 %v246, %v254
      %v270 = vadd.f32 %v247, %v254
      %v271 = vadd.f32 %v248, %v254
      %v272 = vmax.f32 %v256, 0.0
      %v273 = vmax.f32 %v257, 0.0
      %v274 = vmax.f32 %v258, 0.0
      %v275 = vmax.f32 %v259, 0.0
      %v276 = vmax.f32 %v260, 0.0
      %v277 = vmax.f32 %v261, 0.0
      %v278 = vmax.f32 %v262, 0.0
      %v279 = vmax.f32 %v263, 0.0
      %v280 = vmax.f32 %v264, 0.0
      %v281 = vmax.f32 %v265, 0.0
      %v282 = vmax.f32 %v266, 0.0
      %v283 = vmax.f32 %v267, 0.0
      %v284 = vmax.f32 %v268, 0.0
      %v285 = vmax.f32 %v269, 0.0
      %v286 = vmax.f32 %v270, 0.0
      %v287 = vmax.f32 %v271, 0.0
      %v288 = vpack.c.bf16 %v273, %v272
      %v289 = vpack.c.bf16 %v275, %v274
      %v290 = vpack.c.bf16 %v277, %v276
      %v291 = vpack.c.bf16 %v279, %v278
      %v292 = vpack.c.bf16 %v281, %v280
      %v293 = vpack.c.bf16 %v283, %v282
      %v294 = vpack.c.bf16 %v285, %v284
      %v295 = vpack.c.bf16 %v287, %v286
      %v304 = vunpack.c.l.b16 %v288
      %v305 = vunpack.c.h.b16 %v288
      %v306 = vunpack.c.l.b16 %v289
      %v307 = vunpack.c.h.b16 %v289
      %v308 = vunpack.c.l.b16 %v290
      %v309 = vunpack.c.h.b16 %v290
      %v310 = vunpack.c.l.b16 %v291
      %v311 = vunpack.c.h.b16 %v291
      %v312 = vunpack.c.l.b16 %v292
      %v313 = vunpack.c.h.b16 %v292
      %v314 = vunpack.c.l.b16 %v293
      %v315 = vunpack.c.h.b16 %v293
      %v316 = vunpack.c.l.b16 %v294
      %v317 = vunpack.c.h.b16 %v294
      %v318 = vunpack.c.l.b16 %v295
      %v319 = vunpack.c.h.b16 %v295
      %v320 = vpack.c.b16 %v304, %v304
      %v321 = vpack.c.b16 %v305, %v305
      %v322 = vpack.c.b16 %v306, %v306
      %v323 = vpack.c.b16 %v307, %v307
      %v324 = vpack.c.b16 %v308, %v308
      %v325 = vpack.c.b16 %v309, %v309
      %v326 = vpack.c.b16 %v310, %v310
      %v327 = vpack.c.b16 %v311, %v311
      %v328 = vpack.c.b16 %v312, %v312
      %v329 = vpack.c.b16 %v313, %v313
      %v330 = vpack.c.b16 %v314, %v314
      %v331 = vpack.c.b16 %v315, %v315
      %v332 = vpack.c.b16 %v316, %v316
      %v333 = vpack.c.b16 %v317, %v317
      %v334 = vpack.c.b16 %v318, %v318
      %v335 = vpack.c.b16 %v319, %v319
      %352 = vst [vmem:[%s208] sm:$0xf] %v320
      %353 = vst [vmem:[%s208 + $0x4] sm:$0xf] %v321
      %354 = vst [vmem:[%s208 + $0x8] sm:$0xf] %v322
      %355 = vst [vmem:[%s208 + $0xc] sm:$0xf] %v323
      %356 = vst [vmem:[%s208 + $0x10] sm:$0xf] %v324
      %357 = vst [vmem:[%s208 + $0x14] sm:$0xf] %v325
      %358 = vst [vmem:[%s208 + $0x18] sm:$0xf] %v326
      %359 = vst [vmem:[%s208 + $0x1c] sm:$0xf] %v327
      %360 = vst [vmem:[%s208 + $0x20] sm:$0xf] %v328
      %361 = vst [vmem:[%s208 + $0x24] sm:$0xf] %v329
      %362 = vst [vmem:[%s208 + $0x28] sm:$0xf] %v330
      %363 = vst [vmem:[%s208 + $0x2c] sm:$0xf] %v331
      %364 = vst [vmem:[%s208 + $0x30] sm:$0xf] %v332
      %365 = vst [vmem:[%s208 + $0x34] sm:$0xf] %v333
      %366 = vst [vmem:[%s208 + $0x38] sm:$0xf] %v334
      %367 = vst [vmem:[%s208 + $0x3c] sm:$0xf] %v335
      %s368 = smul.u32 16, %s19
      %p369 = scmp.lt.s32.totalorder %s18, 3
      %s370 = scalar_select %p369, %s18, 3
      %p371 = scmp.lt.s32.totalorder %s368, 15
      %s372 = scalar_select %p371, %s368, 15
      %s373 = smul.addr %s370, 16
      %s374 = sadd.s32 %s372, %s373
      %s375 = smul.addr %s374, 4
      %s376 = scalar_lea.vmem %s3, %s375
      // Predicated region
      $region33: #{forward.14} parent=31 // pred_check
        %p377 = pneg %p116
      $region34: #{forward.14} parent=31 // pred_check_branch
        %379 = sbr.rel (%p377) target = $region36
      $region35: #{forward.14} parent=31 // pred_region
        %s380 = smul.u32 16, %s19
      $region36: #{forward.14} parent=31 // pred_fallthru
        _
    $region32: #{forward.14} parent=5 // pred_fallthru
      _
    %p381 = scmp.le.s32.totalorder 2, %s9
    // Predicated region
    $region37: #{forward.14} parent=5 // pred_check
      %p382 = pneg %p381
    $region38: #{forward.14} parent=5 // pred_check_branch
      %384 = sbr.rel (%p382) target = $region40
    $region39: #{forward.14} parent=5 // pred_region
      %s385 = ssub.s32 %s9, 2
      // Predicated region
      $region41: #{forward.14} parent=39 // pred_check
        %p386 = pneg %p122
      $region42: #{forward.14} parent=39 // pred_check_branch
        %388 = sbr.rel (%p386) target = $region44
      $region43: #{forward.14} parent=39 // pred_region
        %s389 = smul.u32 16, %s21
        %p390 = scmp.lt.s32.totalorder %s20, 3
        %s391 = scalar_select %p390, %s20, 3
        %p392 = scmp.lt.s32.totalorder %s389, 15
        %s393 = scalar_select %p392, %s389, 15
        %s394 = smul.addr %s391, 16
        %s395 = sadd.s32 %s393, %s394
        %s396 = smul.addr %s395, 4
        %s397 = scalar_lea.vmem %s3, %s396
      $region44: #{forward.14} parent=39 // pred_fallthru
        _
    $region40: #{forward.14} parent=5 // pred_fallthru
      _
  $region6: #{forward.14} parent=0 // loop_footer
    %s13 = sadd.s32 1, %s9
  $region7: #{forward.14} parent=0 // loop_footer_branch
    %8 = sbr.rel target = $region3
  $region8: #{forward.14} parent=0 // loop_exit
    _

// kernel: forward.13
$region0: #{forward.13}
  #allocation0 [shape = 'u32[]', space=smem, size = 0x4, offset = 0x4, fixed_abs, tag = 'smem constant byte address 0x4 - core index']
  #allocation1 [shape = 'u32[144,128]{1,0:T(1,128)}', space=vmem, size = 0x12000, scoped, tag = 'internal scratch']
  %s0 = inlined_call_operand.vmem [shape: bf16[4,128,128], index: 0, kind: input, shape index: {}]
  %s1 = inlined_call_operand.vmem [shape: bf16[4,128,128], index: 1, kind: input, shape index: {}]
  %s2 = inlined_call_operand.vmem [shape: f32[4,128,128], index: 2, kind: output, shape index: {0}]
  %s3 = inlined_call_operand.vmem [shape: f32[4,1,2,128], index: 3, kind: output, shape index: {1}]
  %4 = xla_tuple %s2, %s3
  %s5 = sld [smem:[#allocation0]]
  $region49: #{forward.13} parent=0
    _
  %s7 = ssub.s32 1, %s5
  %s8 = scalar_select 0, %s7, %s5
  loop: start=0, step=1, limit=6
  $region2: #{forward.13} parent=0 // loop_pre_header
    _
  $region3: #{forward.13} parent=0 // loop_header
    %s10 = sphi 0, %s14
    %p11 = scmp.ge.s32.totalorder %s10, 6
    %s17 = sphi 0, %s29
    %s18 = sphi 0, %s25
    %s19 = sphi 0, %s17
    %s20 = sphi 0, %s18
    %s21 = sphi 0, %s19
    %s22 = sphi 0, %s20
    %s34 = sphi 0, %s36
    %s37 = sphi 0, %s34
    %s38 = sphi 0, %s37
    %s54 = sphi 0, %s38
    %s60 = sphi 0, %s62
    %s63 = sphi 0, %s60
    %s64 = sphi 0, %s63
    %s80 = sphi 0, %s64
    %s88 = sphi 0, %s90
    %s91 = sphi 0, %s88
    %s92 = sphi 0, %s91
    %s108 = sphi 0, %s92
    %s116 = sphi 0, %s118
    %s119 = sphi 0, %s116
    %s120 = sphi 0, %s119
    %s136 = sphi 0, %s120
  $region4: #{forward.13} parent=0 // loop_header_branch
    %13 = sbr.rel (%p11) target = $region8
  $region5: #{forward.13} parent=0 // loop_body
    %s15 = ssub.s32 %s10, 1
    %s16 = ssub.s32 %s10, 2
    %s23 = sadd.s32 1, %s18
    %p24 = scmp.ge.s32.totalorder %s23, 1
    %s25 = scalar_select %p24, 0, %s23
    %s26 = sadd.s32 1, %s17
    %s27 = scalar_select %p24, %s26, %s17
    %p28 = scmp.ge.s32.totalorder %s27, 4
    %s29 = scalar_select %p28, 0, %s27
    %s30 = ssub.s32 %s17, %s29
    %s31 = ssub.s32 %s18, %s25
    %s32 = sor.u32 %s30, %s31
    %p33 = scmp.eq.s32.totalorder %s32, 0
    %s35 = sadd.s32 %s34, 1
    %s36 = scalar_select %p33, %s34, %s35
    %p39 = pneg %p33
    %p40 = scmp.eq.s32.totalorder %s10, 3
    %p41 = por %p39, %p40
    %p42 = scmp.ne.s32.totalorder %s34, %s37
    %p43 = scmp.eq.s32.totalorder %s10, 0
    %p44 = por %p42, %p43
    %p45 = scmp.ne.s32.totalorder %s34, %s37
    %p46 = scmp.eq.s32.totalorder %s15, 3
    %p47 = por %p45, %p46
    %p48 = scmp.ne.s32.totalorder %s37, %s38
    %p49 = scmp.eq.s32.totalorder %s15, 0
    %p50 = por %p48, %p49
    %p51 = scmp.ne.s32.totalorder %s37, %s38
    %p52 = scmp.eq.s32.totalorder %s16, 3
    %p53 = por %p51, %p52
    %p55 = scmp.ne.s32.totalorder %s38, %s54
    %p56 = scmp.eq.s32.totalorder %s16, 0
    %p57 = por %p55, %p56
    %s58 = ssub.s32 %s17, %s29
    %p59 = scmp.eq.s32.totalorder %s58, 0
    %s61 = sadd.s32 %s60, 1
    %s62 = scalar_select %p59, %s60, %s61
    %p65 = pneg %p59
    %p66 = scmp.eq.s32.totalorder %s10, 3
    %p67 = por %p65, %p66
    %p68 = scmp.ne.s32.totalorder %s60, %s63
    %p69 = scmp.eq.s32.totalorder %s10, 0
    %p70 = por %p68, %p69
    %p71 = scmp.ne.s32.totalorder %s60, %s63
    %p72 = scmp.eq.s32.totalorder %s15, 3
    %p73 = por %p71, %p72
    %p74 = scmp.ne.s32.totalorder %s63, %s64
    %p75 = scmp.eq.s32.totalorder %s15, 0
    %p76 = por %p74, %p75
    %p77 = scmp.ne.s32.totalorder %s63, %s64
    %p78 = scmp.eq.s32.totalorder %s16, 3
    %p79 = por %p77, %p78
    %p81 = scmp.ne.s32.totalorder %s64, %s80
    %p82 = scmp.eq.s32.totalorder %s16, 0
    %p83 = por %p81, %p82
    %s84 = ssub.s32 %s17, %s29
    %s85 = ssub.s32 %s18, %s25
    %s86 = sor.u32 %s84, %s85
    %p87 = scmp.eq.s32.totalorder %s86, 0
    %s89 = sadd.s32 %s88, 1
    %s90 = scalar_select %p87, %s88, %s89
    %p93 = pneg %p87
    %p94 = scmp.eq.s32.totalorder %s10, 3
    %p95 = por %p93, %p94
    %p96 = scmp.ne.s32.totalorder %s88, %s91
    %p97 = scmp.eq.s32.totalorder %s10, 0
    %p98 = por %p96, %p97
    %p99 = scmp.ne.s32.totalorder %s88, %s91
    %p100 = scmp.eq.s32.totalorder %s15, 3
    %p101 = por %p99, %p100
    %p102 = scmp.ne.s32.totalorder %s91, %s92
    %p103 = scmp.eq.s32.totalorder %s15, 0
    %p104 = por %p102, %p103
    %p105 = scmp.ne.s32.totalorder %s91, %s92
    %p106 = scmp.eq.s32.totalorder %s16, 3
    %p107 = por %p105, %p106
    %p109 = scmp.ne.s32.totalorder %s92, %s108
    %p110 = scmp.eq.s32.totalorder %s16, 0
    %p111 = por %p109, %p110
    %s112 = ssub.s32 %s17, %s29
    %s113 = ssub.s32 %s18, %s25
    %s114 = sor.u32 %s112, %s113
    %p115 = scmp.eq.s32.totalorder %s114, 0
    %s117 = sadd.s32 %s116, 1
    %s118 = scalar_select %p115, %s116, %s117
    %p121 = pneg %p115
    %p122 = scmp.eq.s32.totalorder %s10, 3
    %p123 = por %p121, %p122
    %p124 = scmp.ne.s32.totalorder %s116, %s119
    %p125 = scmp.eq.s32.totalorder %s10, 0
    %p126 = por %p124, %p125
    %p127 = scmp.ne.s32.totalorder %s116, %s119
    %p128 = scmp.eq.s32.totalorder %s15, 3
    %p129 = por %p127, %p128
    %p130 = scmp.ne.s32.totalorder %s119, %s120
    %p131 = scmp.eq.s32.totalorder %s15, 0
    %p132 = por %p130, %p131
    %p133 = scmp.ne.s32.totalorder %s119, %s120
    %p134 = scmp.eq.s32.totalorder %s16, 3
    %p135 = por %p133, %p134
    %p137 = scmp.ne.s32.totalorder %s120, %s136
    %p138 = scmp.eq.s32.totalorder %s16, 0
    %p139 = por %p137, %p138
    %p140 = scmp.le.s32.totalorder 1, %s10
    %p141 = scmp.lt.s32.totalorder %s10, 5
    %p142 = pnand %p140, %p141
    %p143 = pneg %p142
    // Predicated region
    $region9: #{forward.13} parent=5 // pred_check
      _
    $region10: #{forward.13} parent=5 // pred_check_branch
      %145 = sbr.rel (%p142) target = $region12
    $region11: #{forward.13} parent=5 // pred_region
      %s146 = ssub.s32 %s10, 1
    $region12: #{forward.13} parent=5 // pred_fallthru
      _
    %p147 = scmp.lt.s32.totalorder %s10, 4
    // Predicated region
    $region13: #{forward.13} parent=5 // pred_check
      %p148 = pneg %p147
    $region14: #{forward.13} parent=5 // pred_check_branch
      %150 = sbr.rel (%p148) target = $region16
    $region15: #{forward.13} parent=5 // pred_region
      // Predicated region
      $region17: #{forward.13} parent=15 // pred_check
        %p151 = pneg %p44
      $region18: #{forward.13} parent=15 // pred_check_branch
        %153 = sbr.rel (%p151) target = $region20
      $region19: #{forward.13} parent=15 // pred_region
        %s154 = smul.u32 16, %s18
        %p155 = scmp.lt.s32.totalorder %s17, 3
        %s156 = scalar_select %p155, %s17, 3
        %p157 = scmp.lt.s32.totalorder %s154, 15
        %s158 = scalar_select %p157, %s154, 15
        %s159 = smul.addr %s156, 16
        %s160 = sadd.s32 %s158, %s159
        %s161 = smul.addr %s160, 4
        %s162 = scalar_lea.vmem %s0, %s161
        %s163 = smul.u32 16, %s18
      $region20: #{forward.13} parent=15 // pred_fallthru
        _
      // Predicated region
      $region21: #{forward.13} parent=15 // pred_check
        %p164 = pneg %p70
      $region22: #{forward.13} parent=15 // pred_check_branch
        %166 = sbr.rel (%p164) target = $region24
      $region23: #{forward.13} parent=15 // pred_region
        %p167 = scmp.lt.s32.totalorder %s17, 3
        %s168 = scalar_select %p167, %s17, 3
        %s169 = smul.addr %s168, 16
        %s170 = smul.addr %s169, 4
        %s171 = scalar_lea.vmem %s1, %s170
      $region24: #{forward.13} parent=15 // pred_fallthru
        _
    $region16: #{forward.13} parent=5 // pred_fallthru
      _
    %p172 = scmp.le.s32.totalorder 1, %s10
    %p173 = scmp.lt.s32.totalorder %s10, 5
    %p174 = pnand %p172, %p173
    %p175 = pneg %p174
    // Predicated region
    $region25: #{forward.13} parent=5 // pred_check
      _
    $region26: #{forward.13} parent=5 // pred_check_branch
      %177 = sbr.rel (%p174) target = $region28
    $region27: #{forward.13} parent=5 // pred_region
      %s178 = ssub.s32 %s10, 1
      %s179 = smul.u32 16, %s20
      %p180 = scmp.lt.s32.totalorder %s19, 3
      %s181 = scalar_select %p180, %s19, 3
      %p182 = scmp.lt.s32.totalorder %s179, 15
      %s183 = scalar_select %p182, %s179, 15
      %s184 = smul.addr %s181, 16
      %s185 = sadd.s32 %s183, %s184
      %s186 = smul.addr %s185, 4
      %s187 = scalar_lea.vmem %s0, %s186
      %p188 = pneg %p50
      %p189 = pneg %p47
      %p190 = scmp.lt.s32.totalorder %s19, 3
      %s191 = scalar_select %p190, %s19, 3
      %s192 = smul.addr %s191, 16
      %s193 = smul.addr %s192, 4
      %s194 = scalar_lea.vmem %s1, %s193
      %p195 = pneg %p76
      %p196 = pneg %p73
      %p197 = pneg %p104
      %p198 = pneg %p101
      %s199 = smul.u32 16, %s20
      %p200 = scmp.lt.s32.totalorder %s19, 3
      %s201 = scalar_select %p200, %s19, 3
      %p202 = scmp.lt.s32.totalorder %s199, 15
      %s203 = scalar_select %p202, %s199, 15
      %s204 = smul.addr %s201, 16
      %s205 = sadd.s32 %s203, %s204
      %s206 = smul.addr %s205, 8
      %s207 = scalar_lea.vmem %s2, %s206
      %p208 = pneg %p132
      %p209 = pneg %p129
      %p210 = scmp.lt.s32.totalorder %s19, 3
      %s211 = scalar_select %p210, %s19, 3
      %p212 = scmp.lt.s32.totalorder %s20, 0
      %s213 = scalar_select %p212, %s20, 0
      %s214 = sadd.s32 %s213, %s211
      %s215 = smul.addr %s214, 2
      %s216 = scalar_lea.vmem %s3, %s215
      %s217 = smul.u32 16, %s20
      %p218 = scmp.lt.s32.totalorder %s19, 3
      %s219 = scalar_select %p218, %s19, 3
      %p220 = scmp.lt.s32.totalorder %s217, 15
      %s221 = scalar_select %p220, %s217, 15
      %s222 = smul.addr %s219, 16
      %s223 = sadd.s32 %s221, %s222
      %s224 = smul.addr %s223, 4
      %s225 = scalar_lea.vmem %s0, %s224
      %s226 = smul.u32 16, %s20
      %p227 = scmp.lt.s32.totalorder %s19, 3
      %s228 = scalar_select %p227, %s19, 3
      %s229 = smul.addr %s228, 16
      %s230 = smul.addr %s229, 4
      %s231 = scalar_lea.vmem %s1, %s230
      %s232 = smul.u32 16, %s20
      %p233 = scmp.lt.s32.totalorder %s19, 3
      %s234 = scalar_select %p233, %s19, 3
      %p235 = scmp.lt.s32.totalorder %s232, 15
      %s236 = scalar_select %p235, %s232, 15
      %s237 = smul.addr %s234, 16
      %s238 = sadd.s32 %s236, %s237
      %s239 = smul.addr %s238, 8
      %s240 = scalar_lea.vmem %s2, %s239
      %s241 = smul.u32 16, %s20
      %p242 = scmp.lt.s32.totalorder %s19, 3
      %s243 = scalar_select %p242, %s19, 3
      %p244 = scmp.lt.s32.totalorder %s20, 0
      %s245 = scalar_select %p244, %s20, 0
      %s246 = sadd.s32 %s245, %s243
      %s247 = smul.addr %s246, 2
      %s248 = scalar_lea.vmem %s3, %s247
      %v250 = vld [vmem:[%s225] sm:$0xf]
      %v251 = vld [vmem:[%s225 + $0x4] sm:$0xf]
      %v252 = vld [vmem:[%s225 + $0x8] sm:$0xf]
      %v253 = vld [vmem:[%s225 + $0xc] sm:$0xf]
      %v254 = vld [vmem:[%s225 + $0x10] sm:$0xf]
      %v255 = vld [vmem:[%s225 + $0x14] sm:$0xf]
      %v256 = vld [vmem:[%s225 + $0x18] sm:$0xf]
      %v257 = vld [vmem:[%s225 + $0x1c] sm:$0xf]
      %v258 = vld [vmem:[%s225 + $0x20] sm:$0xf]
      %v259 = vld [vmem:[%s225 + $0x24] sm:$0xf]
      %v260 = vld [vmem:[%s225 + $0x28] sm:$0xf]
      %v261 = vld [vmem:[%s225 + $0x2c] sm:$0xf]
      %v262 = vld [vmem:[%s225 + $0x30] sm:$0xf]
      %v263 = vld [vmem:[%s225 + $0x34] sm:$0xf]
      %v264 = vld [vmem:[%s225 + $0x38] sm:$0xf]
      %v265 = vld [vmem:[%s225 + $0x3c] sm:$0xf]
      %v266 = vld [vmem:[%s231] sm:$0xf]
      %v267 = vld [vmem:[%s231 + $0x4] sm:$0xf]
      %v268 = vld [vmem:[%s231 + $0x8] sm:$0xf]
      %v269 = vld [vmem:[%s231 + $0xc] sm:$0xf]
      %v270 = vld [vmem:[%s231 + $0x10] sm:$0xf]
      %v271 = vld [vmem:[%s231 + $0x14] sm:$0xf]
      %v272 = vld [vmem:[%s231 + $0x18] sm:$0xf]
      %v273 = vld [vmem:[%s231 + $0x1c] sm:$0xf]
      %v274 = vld [vmem:[%s231 + $0x20] sm:$0xf]
      %v275 = vld [vmem:[%s231 + $0x24] sm:$0xf]
      %v276 = vld [vmem:[%s231 + $0x28] sm:$0xf]
      %v277 = vld [vmem:[%s231 + $0x2c] sm:$0xf]
      %v278 = vld [vmem:[%s231 + $0x30] sm:$0xf]
      %v279 = vld [vmem:[%s231 + $0x34] sm:$0xf]
      %v280 = vld [vmem:[%s231 + $0x38] sm:$0xf]
      %v281 = vld [vmem:[%s231 + $0x3c] sm:$0xf]
      %v298 = vunpack.c.l.b16 %v250
      %v299 = vunpack.c.l.b16 %v251
      %v300 = vunpack.c.l.b16 %v252
      %v301 = vunpack.c.l.b16 %v253
      %v302 = vunpack.c.l.b16 %v254
      %v303 = vunpack.c.l.b16 %v255
      %v304 = vunpack.c.l.b16 %v256
      %v305 = vunpack.c.l.b16 %v257
      %v306 = vunpack.c.l.b16 %v258
      %v307 = vunpack.c.l.b16 %v259
      %v308 = vunpack.c.l.b16 %v260
      %v309 = vunpack.c.l.b16 %v261
      %v310 = vunpack.c.l.b16 %v262
      %v311 = vunpack.c.l.b16 %v263
      %v312 = vunpack.c.l.b16 %v264
      %v313 = vunpack.c.l.b16 %v265
      %v314 = vpack.c.b16 %v299, %v298
      %v315 = vpack.c.b16 %v301, %v300
      %v316 = vpack.c.b16 %v303, %v302
      %v317 = vpack.c.b16 %v305, %v304
      %v318 = vpack.c.b16 %v307, %v306
      %v319 = vpack.c.b16 %v309, %v308
      %v320 = vpack.c.b16 %v311, %v310
      %v321 = vpack.c.b16 %v313, %v312
      %v346 = vunpack.c.l.b16 %v266
      %v347 = vunpack.c.l.b16 %v267
      %v348 = vunpack.c.l.b16 %v268
      %v349 = vunpack.c.l.b16 %v269
      %v350 = vunpack.c.l.b16 %v270
      %v351 = vunpack.c.l.b16 %v271
      %v352 = vunpack.c.l.b16 %v272
      %v353 = vunpack.c.l.b16 %v273
      %v354 = vunpack.c.l.b16 %v274
      %v355 = vunpack.c.l.b16 %v275
      %v356 = vunpack.c.l.b16 %v276
      %v357 = vunpack.c.l.b16 %v277
      %v358 = vunpack.c.l.b16 %v278
      %v359 = vunpack.c.l.b16 %v279
      %v360 = vunpack.c.l.b16 %v280
      %v361 = vunpack.c.l.b16 %v281
      %v362 = vpack.c.b16 %v347, %v346
      %v363 = vpack.c.b16 %v349, %v348
      %v364 = vpack.c.b16 %v351, %v350
      %v365 = vpack.c.b16 %v353, %v352
      %v366 = vpack.c.b16 %v355, %v354
      %v367 = vpack.c.b16 %v357, %v356
      %v368 = vpack.c.b16 %v359, %v358
      %v369 = vpack.c.b16 %v361, %v360
      %378 = vmatprep.subr.bf16.mxu0 0
      %379 = vmatpush1.bf16.msra.mxu0 %v369
      %380 = vmatprep.subr.bf16.mxu0 0
      %381 = vmatpush1.bf16.msra.mxu0 %v368
      %382 = vmatprep.subr.bf16.mxu0 0
      %383 = vmatpush1.bf16.msra.mxu0 %v367
      %384 = vmatprep.subr.bf16.mxu0 0
      %385 = vmatpush1.bf16.msra.mxu0 %v366
      %386 = vmatprep.subr.bf16.mxu0 0
      %387 = vmatpush1.bf16.msra.mxu0 %v365
      %388 = vmatprep.subr.bf16.mxu0 0
      %389 = vmatpush1.bf16.msra.mxu0 %v364
      %390 = vmatprep.subr.bf16.mxu0 0
      %391 = vmatpush1.bf16.msra.mxu0 %v363
      %392 = vmatprep.subr.bf16.mxu0 0
      %393 = vmatpush1.bf16.msra.mxu0 %v362
      %394 = vmatprep.subr.bf16.mxu0 0
      %395 = vmatpush2.bf16.msra.mxu0 0
      %396 = vmatprep.subr.bf16.mxu0 0
      %397 = vmatpush2.bf16.msra.mxu0 0
      %398 = vmatprep.subr.bf16.mxu0 0
      %399 = vmatpush2.bf16.msra.mxu0 0
      %400 = vmatprep.subr.bf16.mxu0 0
      %401 = vmatpush2.bf16.msra.mxu0 0
      %402 = vmatprep.subr.bf16.mxu0 0
      %403 = vmatpush2.bf16.msra.mxu0 0
      %404 = vmatprep.subr.bf16.mxu0 0
      %405 = vmatpush2.bf16.msra.mxu0 0
      %406 = vmatprep.subr.bf16.mxu0 0
      %407 = vmatpush2.bf16.msra.mxu0 0
      %408 = vmatprep.subr.bf16.mxu0 0
      %409 = vmatpush2.bf16.msra.mxu0 0
      %410 = vmatprep.mubr.bf16.mxu0 0
      %411 = vmatmul.mubr.bf16.gmra.mxu0 %v314
      %v412 = vpop.f32.mrf.mxu0
      %v413 = vadd.f32 0.0, %v412
      %v414 = vpop.f32.mrf.mxu0
      %v415 = vpop.f32.mrf.mxu0
      %v416 = vadd.f32 0.0, %v415
      %v417 = vpop.f32.mrf.mxu0
      %418 = vmatprep.mubr.bf16.mxu0 0
      %419 = vmatmul.mubr.bf16.gmra.mxu0 %v315
      %v420 = vpop.f32.mrf.mxu0
      %v421 = vadd.f32 0.0, %v420
      %v422 = vpop.f32.mrf.mxu0
      %v423 = vpop.f32.mrf.mxu0
      %v424 = vadd.f32 0.0, %v423
      %v425 = vpop.f32.mrf.mxu0
      %426 = vmatprep.mubr.bf16.mxu0 0
      %427 = vmatmul.mubr.bf16.gmra.mxu0 %v316
      %v428 = vpop.f32.mrf.mxu0
      %v429 = vadd.f32 0.0, %v428
      %v430 = vpop.f32.mrf.mxu0
      %v431 = vpop.f32.mrf.mxu0
      %v432 = vadd.f32 0.0, %v431
      %v433 = vpop.f32.mrf.mxu0
      %434 = vmatprep.mubr.bf16.mxu0 0
      %435 = vmatmul.mubr.bf16.gmra.mxu0 %v317
      %v436 = vpop.f32.mrf.mxu0
      %v437 = vadd.f32 0.0, %v436
      %v438 = vpop.f32.mrf.mxu0
      %v439 = vpop.f32.mrf.mxu0
      %v440 = vadd.f32 0.0, %v439
      %v441 = vpop.f32.mrf.mxu0
      %442 = vmatprep.mubr.bf16.mxu0 0
      %443 = vmatmul.mubr.bf16.gmra.mxu0 %v318
      %v444 = vpop.f32.mrf.mxu0
      %v445 = vadd.f32 0.0, %v444
      %v446 = vpop.f32.mrf.mxu0
      %v447 = vpop.f32.mrf.mxu0
      %v448 = vadd.f32 0.0, %v447
      %v449 = vpop.f32.mrf.mxu0
      %450 = vmatprep.mubr.bf16.mxu0 0
      %451 = vmatmul.mubr.bf16.gmra.mxu0 %v319
      %v452 = vpop.f32.mrf.mxu0
      %v453 = vadd.f32 0.0, %v452
      %v454 = vpop.f32.mrf.mxu0
      %v455 = vpop.f32.mrf.mxu0
      %v456 = vadd.f32 0.0, %v455
      %v457 = vpop.f32.mrf.mxu0
      %458 = vmatprep.mubr.bf16.mxu0 0
      %459 = vmatmul.mubr.bf16.gmra.mxu0 %v320
      %v460 = vpop.f32.mrf.mxu0
      %v461 = vadd.f32 0.0, %v460
      %v462 = vpop.f32.mrf.mxu0
      %v463 = vpop.f32.mrf.mxu0
      %v464 = vadd.f32 0.0, %v463
      %v465 = vpop.f32.mrf.mxu0
      %466 = vmatprep.mubr.bf16.mxu0 0
      %467 = vmatmul.mubr.bf16.gmra.mxu0 %v321
      %v468 = vpop.f32.mrf.mxu0
      %v469 = vadd.f32 0.0, %v468
      %v470 = vpop.f32.mrf.mxu0
      %v471 = vpop.f32.mrf.mxu0
      %v472 = vadd.f32 0.0, %v471
      %v473 = vpop.f32.mrf.mxu0
      %474 = vdwg.mxu0
      %475 = vst [vmem:[%s240] sm:$0xff] %v413
      %476 = vst [vmem:[%s240 + $0x8] sm:$0xff] %v416
      %477 = vst [vmem:[%s240 + $0x10] sm:$0xff] %v421
      %478 = vst [vmem:[%s240 + $0x18] sm:$0xff] %v424
      %479 = vst [vmem:[%s240 + $0x20] sm:$0xff] %v429
      %480 = vst [vmem:[%s240 + $0x28] sm:$0xff] %v432
      %481 = vst [vmem:[%s240 + $0x30] sm:$0xff] %v437
      %482 = vst [vmem:[%s240 + $0x38] sm:$0xff] %v440
      %483 = vst [vmem:[%s240 + $0x40] sm:$0xff] %v445
      %484 = vst [vmem:[%s240 + $0x48] sm:$0xff] %v448
      %485 = vst [vmem:[%s240 + $0x50] sm:$0xff] %v453
      %486 = vst [vmem:[%s240 + $0x58] sm:$0xff] %v456
      %487 = vst [vmem:[%s240 + $0x60] sm:$0xff] %v461
      %488 = vst [vmem:[%s240 + $0x68] sm:$0xff] %v464
      %489 = vst [vmem:[%s240 + $0x70] sm:$0xff] %v469
      %490 = vst [vmem:[%s240 + $0x78] sm:$0xff] %v472
      %v491 = vadd.f32 %v413, %v416
      %v492 = vadd.f32 %v491, %v421
      %v493 = vadd.f32 %v492, %v424
      %v494 = vadd.f32 %v493, %v429
      %v495 = vadd.f32 %v494, %v432
      %v496 = vadd.f32 %v495, %v437
      %v497 = vadd.f32 %v496, %v440
      %v498 = vadd.f32 %v497, %v445
      %v499 = vadd.f32 %v498, %v448
      %v500 = vadd.f32 %v499, %v453
      %v501 = vadd.f32 %v500, %v456
      %v502 = vadd.f32 %v501, %v461
      %v503 = vadd.f32 %v502, %v464
      %v504 = vadd.f32 %v503, %v469
      %v505 = vadd.f32 %v504, %v472
      %v506 = vrot.slane %v505, 4
      %v507 = vadd.f32 %v505, %v506
      %v508 = vrot.slane %v507, 2
      %v509 = vadd.f32 %v507, %v508
      %v510 = vrot.slane %v509, 1
      %v511 = vadd.f32 %v509, %v510
      %v512 = vmul.f32 %v413, %v413
      %v513 = vmul.f32 %v416, %v416
      %v514 = vmul.f32 %v421, %v421
      %v515 = vmul.f32 %v424, %v424
      %v516 = vmul.f32 %v429, %v429
      %v517 = vmul.f32 %v432, %v432
      %v518 = vmul.f32 %v437, %v437
      %v519 = vmul.f32 %v440, %v440
      %v520 = vmul.f32 %v445, %v445
      %v521 = vmul.f32 %v448, %v448
      %v522 = vmul.f32 %v453, %v453
      %v523 = vmul.f32 %v456, %v456
      %v524 = vmul.f32 %v461, %v461
      %v525 = vmul.f32 %v464, %v464
      %v526 = vmul.f32 %v469, %v469
      %v527 = vmul.f32 %v472, %v472
      %v528 = vadd.f32 %v512, %v513
      %v529 = vadd.f32 %v528, %v514
      %v530 = vadd.f32 %v529, %v515
      %v531 = vadd.f32 %v530, %v516
      %v532 = vadd.f32 %v531, %v517
      %v533 = vadd.f32 %v532, %v518
      %v534 = vadd.f32 %v533, %v519
      %v535 = vadd.f32 %v534, %v520
      %v536 = vadd.f32 %v535, %v521
      %v537 = vadd.f32 %v536, %v522
      %v538 = vadd.f32 %v537, %v523
      %v539 = vadd.f32 %v538, %v524
      %v540 = vadd.f32 %v539, %v525
      %v541 = vadd.f32 %v540, %v526
      %v542 = vadd.f32 %v541, %v527
      %v543 = vrot.slane %v542, 4
      %v544 = vadd.f32 %v542, %v543
      %v545 = vrot.slane %v544, 2
      %v546 = vadd.f32 %v544, %v545
      %v547 = vrot.slane %v546, 1
      %v548 = vadd.f32 %v546, %v547
      %vm549 = vcmask 1040384
      %v550 = vsel %vm549, %v511, %v548
      %551 = vst [vmem:[%s248] sm:$0x3] %v550
      %s552 = smul.u32 16, %s20
      %p553 = scmp.lt.s32.totalorder %s19, 3
      %s554 = scalar_select %p553, %s19, 3
      %p555 = scmp.lt.s32.totalorder %s552, 15
      %s556 = scalar_select %p555, %s552, 15
      %s557 = smul.addr %s554, 16
      %s558 = sadd.s32 %s556, %s557
      %s559 = smul.addr %s558, 8
      %s560 = scalar_lea.vmem %s2, %s559
      %p561 = scmp.lt.s32.totalorder %s19, 3
      %s562 = scalar_select %p561, %s19, 3
      %p563 = scmp.lt.s32.totalorder %s20, 0
      %s564 = scalar_select %p563, %s20, 0
      %s565 = sadd.s32 %s564, %s562
      %s566 = smul.addr %s565, 2
      %s567 = scalar_lea.vmem %s3, %s566
      // Predicated region
      $region29: #{forward.13} parent=27 // pred_check
        %p568 = pneg %p101
      $region30: #{forward.13} parent=27 // pred_check_branch
        %570 = sbr.rel (%p568) target = $region32
      $region31: #{forward.13} parent=27 // pred_region
        %s571 = smul.u32 16, %s20
      $region32: #{forward.13} parent=27 // pred_fallthru
        _
      // Predicated region
      $region33: #{forward.13} parent=27 // pred_check
        %p572 = pneg %p129
      $region34: #{forward.13} parent=27 // pred_check_branch
        %574 = sbr.rel (%p572) target = $region36
      $region35: #{forward.13} parent=27 // pred_region
        _
      $region36: #{forward.13} parent=27 // pred_fallthru
        _
    $region28: #{forward.13} parent=5 // pred_fallthru
      _
    %p575 = scmp.le.s32.totalorder 2, %s10
    // Predicated region
    $region37: #{forward.13} parent=5 // pred_check
      %p576 = pneg %p575
    $region38: #{forward.13} parent=5 // pred_check_branch
      %578 = sbr.rel (%p576) target = $region40
    $region39: #{forward.13} parent=5 // pred_region
      %s579 = ssub.s32 %s10, 2
      // Predicated region
      $region41: #{forward.13} parent=39 // pred_check
        %p580 = pneg %p107
      $region42: #{forward.13} parent=39 // pred_check_branch
        %582 = sbr.rel (%p580) target = $region44
      $region43: #{forward.13} parent=39 // pred_region
        %s583 = smul.u32 16, %s22
        %p584 = scmp.lt.s32.totalorder %s21, 3
        %s585 = scalar_select %p584, %s21, 3
        %p586 = scmp.lt.s32.totalorder %s583, 15
        %s587 = scalar_select %p586, %s583, 15
        %s588 = smul.addr %s585, 16
        %s589 = sadd.s32 %s587, %s588
        %s590 = smul.addr %s589, 8
        %s591 = scalar_lea.vmem %s2, %s590
      $region44: #{forward.13} parent=39 // pred_fallthru
        _
      // Predicated region
      $region45: #{forward.13} parent=39 // pred_check
        %p592 = pneg %p135
      $region46: #{forward.13} parent=39 // pred_check_branch
        %594 = sbr.rel (%p592) target = $region48
      $region47: #{forward.13} parent=39 // pred_region
        %p595 = scmp.lt.s32.totalorder %s21, 3
        %s596 = scalar_select %p595, %s21, 3
        %p597 = scmp.lt.s32.totalorder %s22, 0
        %s598 = scalar_select %p597, %s22, 0
        %s599 = sadd.s32 %s598, %s596
        %s600 = smul.addr %s599, 2
        %s601 = scalar_lea.vmem %s3, %s600
      $region48: #{forward.13} parent=39 // pred_fallthru
        _
    $region40: #{forward.13} parent=5 // pred_fallthru
      _
  $region6: #{forward.13} parent=0 // loop_footer
    %s14 = sadd.s32 1, %s10
  $region7: #{forward.13} parent=0 // loop_footer_branch
    %9 = sbr.rel target = $region3
  $region8: #{forward.13} parent=0 // loop_exit
    _

// kernel: forward.15
$region0: #{forward.15}
  #allocation0 [shape = 'u32[]', space=smem, size = 0x4, offset = 0x4, fixed_abs, tag = 'smem constant byte address 0x4 - core index']
  #allocation1 [shape = 'u32[144,128]{1,0:T(1,128)}', space=vmem, size = 0x12000, scoped, tag = 'internal scratch']
  %s0 = inlined_call_operand.vmem [shape: bf16[4,512,64], index: 0, kind: input, shape index: {}]
  %s1 = inlined_call_operand.vmem [shape: bf16[4,64,128], index: 1, kind: input, shape index: {}]
  %s2 = inlined_call_operand.vmem [shape: f32[4,512,128], index: 2, kind: output, shape index: {0}]
  %s3 = inlined_call_operand.vmem [shape: f32[4,1,2,128], index: 3, kind: output, shape index: {1}]
  %4 = xla_tuple %s2, %s3
  %s5 = sld [smem:[#allocation0]]
  $region49: #{forward.15} parent=0
    _
  %s7 = ssub.s32 1, %s5
  %s8 = scalar_select 0, %s7, %s5
  loop: start=0, step=1, limit=6
  $region2: #{forward.15} parent=0 // loop_pre_header
    _
  $region3: #{forward.15} parent=0 // loop_header
    %s10 = sphi 0, %s14
    %p11 = scmp.ge.s32.totalorder %s10, 6
    %s17 = sphi 0, %s29
    %s18 = sphi 0, %s25
    %s19 = sphi 0, %s17
    %s20 = sphi 0, %s18
    %s21 = sphi 0, %s19
    %s22 = sphi 0, %s20
    %s34 = sphi 0, %s36
    %s37 = sphi 0, %s34
    %s38 = sphi 0, %s37
    %s54 = sphi 0, %s38
    %s60 = sphi 0, %s62
    %s63 = sphi 0, %s60
    %s64 = sphi 0, %s63
    %s80 = sphi 0, %s64
    %s88 = sphi 0, %s90
    %s91 = sphi 0, %s88
    %s92 = sphi 0, %s91
    %s108 = sphi 0, %s92
    %s116 = sphi 0, %s118
    %s119 = sphi 0, %s116
    %s120 = sphi 0, %s119
    %s136 = sphi 0, %s120
  $region4: #{forward.15} parent=0 // loop_header_branch
    %13 = sbr.rel (%p11) target = $region8
  $region5: #{forward.15} parent=0 // loop_body
    %s15 = ssub.s32 %s10, 1
    %s16 = ssub.s32 %s10, 2
    %s23 = sadd.s32 1, %s18
    %p24 = scmp.ge.s32.totalorder %s23, 1
    %s25 = scalar_select %p24, 0, %s23
    %s26 = sadd.s32 1, %s17
    %s27 = scalar_select %p24, %s26, %s17
    %p28 = scmp.ge.s32.totalorder %s27, 4
    %s29 = scalar_select %p28, 0, %s27
    %s30 = ssub.s32 %s17, %s29
    %s31 = ssub.s32 %s18, %s25
    %s32 = sor.u32 %s30, %s31
    %p33 = scmp.eq.s32.totalorder %s32, 0
    %s35 = sadd.s32 %s34, 1
    %s36 = scalar_select %p33, %s34, %s35
    %p39 = pneg %p33
    %p40 = scmp.eq.s32.totalorder %s10, 3
    %p41 = por %p39, %p40
    %p42 = scmp.ne.s32.totalorder %s34, %s37
    %p43 = scmp.eq.s32.totalorder %s10, 0
    %p44 = por %p42, %p43
    %p45 = scmp.ne.s32.totalorder %s34, %s37
    %p46 = scmp.eq.s32.totalorder %s15, 3
    %p47 = por %p45, %p46
    %p48 = scmp.ne.s32.totalorder %s37, %s38
    %p49 = scmp.eq.s32.totalorder %s15, 0
    %p50 = por %p48, %p49
    %p51 = scmp.ne.s32.totalorder %s37, %s38
    %p52 = scmp.eq.s32.totalorder %s16, 3
    %p53 = por %p51, %p52
    %p55 = scmp.ne.s32.totalorder %s38, %s54
    %p56 = scmp.eq.s32.totalorder %s16, 0
    %p57 = por %p55, %p56
    %s58 = ssub.s32 %s17, %s29
    %p59 = scmp.eq.s32.totalorder %s58, 0
    %s61 = sadd.s32 %s60, 1
    %s62 = scalar_select %p59, %s60, %s61
    %p65 = pneg %p59
    %p66 = scmp.eq.s32.totalorder %s10, 3
    %p67 = por %p65, %p66
    %p68 = scmp.ne.s32.totalorder %s60, %s63
    %p69 = scmp.eq.s32.totalorder %s10, 0
    %p70 = por %p68, %p69
    %p71 = scmp.ne.s32.totalorder %s60, %s63
    %p72 = scmp.eq.s32.totalorder %s15, 3
    %p73 = por %p71, %p72
    %p74 = scmp.ne.s32.totalorder %s63, %s64
    %p75 = scmp.eq.s32.totalorder %s15, 0
    %p76 = por %p74, %p75
    %p77 = scmp.ne.s32.totalorder %s63, %s64
    %p78 = scmp.eq.s32.totalorder %s16, 3
    %p79 = por %p77, %p78
    %p81 = scmp.ne.s32.totalorder %s64, %s80
    %p82 = scmp.eq.s32.totalorder %s16, 0
    %p83 = por %p81, %p82
    %s84 = ssub.s32 %s17, %s29
    %s85 = ssub.s32 %s18, %s25
    %s86 = sor.u32 %s84, %s85
    %p87 = scmp.eq.s32.totalorder %s86, 0
    %s89 = sadd.s32 %s88, 1
    %s90 = scalar_select %p87, %s88, %s89
    %p93 = pneg %p87
    %p94 = scmp.eq.s32.totalorder %s10, 3
    %p95 = por %p93, %p94
    %p96 = scmp.ne.s32.totalorder %s88, %s91
    %p97 = scmp.eq.s32.totalorder %s10, 0
    %p98 = por %p96, %p97
    %p99 = scmp.ne.s32.totalorder %s88, %s91
    %p100 = scmp.eq.s32.totalorder %s15, 3
    %p101 = por %p99, %p100
    %p102 = scmp.ne.s32.totalorder %s91, %s92
    %p103 = scmp.eq.s32.totalorder %s15, 0
    %p104 = por %p102, %p103
    %p105 = scmp.ne.s32.totalorder %s91, %s92
    %p106 = scmp.eq.s32.totalorder %s16, 3
    %p107 = por %p105, %p106
    %p109 = scmp.ne.s32.totalorder %s92, %s108
    %p110 = scmp.eq.s32.totalorder %s16, 0
    %p111 = por %p109, %p110
    %s112 = ssub.s32 %s17, %s29
    %s113 = ssub.s32 %s18, %s25
    %s114 = sor.u32 %s112, %s113
    %p115 = scmp.eq.s32.totalorder %s114, 0
    %s117 = sadd.s32 %s116, 1
    %s118 = scalar_select %p115, %s116, %s117
    %p121 = pneg %p115
    %p122 = scmp.eq.s32.totalorder %s10, 3
    %p123 = por %p121, %p122
    %p124 = scmp.ne.s32.totalorder %s116, %s119
    %p125 = scmp.eq.s32.totalorder %s10, 0
    %p126 = por %p124, %p125
    %p127 = scmp.ne.s32.totalorder %s116, %s119
    %p128 = scmp.eq.s32.totalorder %s15, 3
    %p129 = por %p127, %p128
    %p130 = scmp.ne.s32.totalorder %s119, %s120
    %p131 = scmp.eq.s32.totalorder %s15, 0
    %p132 = por %p130, %p131
    %p133 = scmp.ne.s32.totalorder %s119, %s120
    %p134 = scmp.eq.s32.totalorder %s16, 3
    %p135 = por %p133, %p134
    %p137 = scmp.ne.s32.totalorder %s120, %s136
    %p138 = scmp.eq.s32.totalorder %s16, 0
    %p139 = por %p137, %p138
    %p140 = scmp.le.s32.totalorder 1, %s10
    %p141 = scmp.lt.s32.totalorder %s10, 5
    %p142 = pnand %p140, %p141
    %p143 = pneg %p142
    // Predicated region
    $region9: #{forward.15} parent=5 // pred_check
      _
    $region10: #{forward.15} parent=5 // pred_check_branch
      %145 = sbr.rel (%p142) target = $region12
    $region11: #{forward.15} parent=5 // pred_region
      %s146 = ssub.s32 %s10, 1
    $region12: #{forward.15} parent=5 // pred_fallthru
      _
    %p147 = scmp.lt.s32.totalorder %s10, 4
    // Predicated region
    $region13: #{forward.15} parent=5 // pred_check
      %p148 = pneg %p147
    $region14: #{forward.15} parent=5 // pred_check_branch
      %150 = sbr.rel (%p148) target = $region16
    $region15: #{forward.15} parent=5 // pred_region
      // Predicated region
      $region17: #{forward.15} parent=15 // pred_check
        %p151 = pneg %p44
      $region18: #{forward.15} parent=15 // pred_check_branch
        %153 = sbr.rel (%p151) target = $region20
      $region19: #{forward.15} parent=15 // pred_region
        %s154 = smul.u32 64, %s18
        %p155 = scmp.lt.s32.totalorder %s17, 3
        %s156 = scalar_select %p155, %s17, 3
        %p157 = scmp.lt.s32.totalorder %s154, 63
        %s158 = scalar_select %p157, %s154, 63
        %s159 = smul.addr %s156, 64
        %s160 = sadd.s32 %s158, %s159
        %s161 = smul.addr %s160, 4
        %s162 = scalar_lea.vmem %s0, %s161
        %s163 = smul.u32 64, %s18
      $region20: #{forward.15} parent=15 // pred_fallthru
        _
      // Predicated region
      $region21: #{forward.15} parent=15 // pred_check
        %p164 = pneg %p70
      $region22: #{forward.15} parent=15 // pred_check_branch
        %166 = sbr.rel (%p164) target = $region24
      $region23: #{forward.15} parent=15 // pred_region
        %p167 = scmp.lt.s32.totalorder %s17, 3
        %s168 = scalar_select %p167, %s17, 3
        %s169 = smul.addr %s168, 8
        %s170 = smul.addr %s169, 4
        %s171 = scalar_lea.vmem %s1, %s170
      $region24: #{forward.15} parent=15 // pred_fallthru
        _
    $region16: #{forward.15} parent=5 // pred_fallthru
      _
    %p172 = scmp.le.s32.totalorder 1, %s10
    %p173 = scmp.lt.s32.totalorder %s10, 5
    %p174 = pnand %p172, %p173
    %p175 = pneg %p174
    // Predicated region
    $region25: #{forward.15} parent=5 // pred_check
      _
    $region26: #{forward.15} parent=5 // pred_check_branch
      %177 = sbr.rel (%p174) target = $region28
    $region27: #{forward.15} parent=5 // pred_region
      %s178 = ssub.s32 %s10, 1
      %s179 = smul.u32 64, %s20
      %p180 = scmp.lt.s32.totalorder %s19, 3
      %s181 = scalar_select %p180, %s19, 3
      %p182 = scmp.lt.s32.totalorder %s179, 63
      %s183 = scalar_select %p182, %s179, 63
      %s184 = smul.addr %s181, 64
      %s185 = sadd.s32 %s183, %s184
      %s186 = smul.addr %s185, 4
      %s187 = scalar_lea.vmem %s0, %s186
      %p188 = pneg %p50
      %p189 = pneg %p47
      %p190 = scmp.lt.s32.totalorder %s19, 3
      %s191 = scalar_select %p190, %s19, 3
      %s192 = smul.addr %s191, 8
      %s193 = smul.addr %s192, 4
      %s194 = scalar_lea.vmem %s1, %s193
      %p195 = pneg %p76
      %p196 = pneg %p73
      %p197 = pneg %p104
      %p198 = pneg %p101
      %s199 = smul.u32 64, %s20
      %p200 = scmp.lt.s32.totalorder %s19, 3
      %s201 = scalar_select %p200, %s19, 3
      %p202 = scmp.lt.s32.totalorder %s199, 63
      %s203 = scalar_select %p202, %s199, 63
      %s204 = smul.addr %s201, 64
      %s205 = sadd.s32 %s203, %s204
      %s206 = smul.addr %s205, 8
      %s207 = scalar_lea.vmem %s2, %s206
      %p208 = pneg %p132
      %p209 = pneg %p129
      %p210 = scmp.lt.s32.totalorder %s19, 3
      %s211 = scalar_select %p210, %s19, 3
      %p212 = scmp.lt.s32.totalorder %s20, 0
      %s213 = scalar_select %p212, %s20, 0
      %s214 = sadd.s32 %s213, %s211
      %s215 = smul.addr %s214, 2
      %s216 = scalar_lea.vmem %s3, %s215
      %s217 = smul.u32 64, %s20
      %p218 = scmp.lt.s32.totalorder %s19, 3
      %s219 = scalar_select %p218, %s19, 3
      %p220 = scmp.lt.s32.totalorder %s217, 63
      %s221 = scalar_select %p220, %s217, 63
      %s222 = smul.addr %s219, 64
      %s223 = sadd.s32 %s221, %s222
      %s224 = smul.addr %s223, 4
      %s225 = scalar_lea.vmem %s0, %s224
      %s226 = smul.u32 64, %s20
      %p227 = scmp.lt.s32.totalorder %s19, 3
      %s228 = scalar_select %p227, %s19, 3
      %s229 = smul.addr %s228, 8
      %s230 = smul.addr %s229, 4
      %s231 = scalar_lea.vmem %s1, %s230
      %s232 = smul.u32 64, %s20
      %p233 = scmp.lt.s32.totalorder %s19, 3
      %s234 = scalar_select %p233, %s19, 3
      %p235 = scmp.lt.s32.totalorder %s232, 63
      %s236 = scalar_select %p235, %s232, 63
      %s237 = smul.addr %s234, 64
      %s238 = sadd.s32 %s236, %s237
      %s239 = smul.addr %s238, 8
      %s240 = scalar_lea.vmem %s2, %s239
      %s241 = smul.u32 64, %s20
      %p242 = scmp.lt.s32.totalorder %s19, 3
      %s243 = scalar_select %p242, %s19, 3
      %p244 = scmp.lt.s32.totalorder %s20, 0
      %s245 = scalar_select %p244, %s20, 0
      %s246 = sadd.s32 %s245, %s243
      %s247 = smul.addr %s246, 2
      %s248 = scalar_lea.vmem %s3, %s247
      %v250 = vld [vmem:[%s225] sm:$0xf]
      %v251 = vld [vmem:[%s225 + $0x4] sm:$0xf]
      %v252 = vld [vmem:[%s225 + $0x8] sm:$0xf]
      %v253 = vld [vmem:[%s225 + $0xc] sm:$0xf]
      %v254 = vld [vmem:[%s225 + $0x10] sm:$0xf]
      %v255 = vld [vmem:[%s225 + $0x14] sm:$0xf]
      %v256 = vld [vmem:[%s225 + $0x18] sm:$0xf]
      %v257 = vld [vmem:[%s225 + $0x1c] sm:$0xf]
      %v258 = vld [vmem:[%s225 + $0x20] sm:$0xf]
      %v259 = vld [vmem:[%s225 + $0x24] sm:$0xf]
      %v260 = vld [vmem:[%s225 + $0x28] sm:$0xf]
      %v261 = vld [vmem:[%s225 + $0x2c] sm:$0xf]
      %v262 = vld [vmem:[%s225 + $0x30] sm:$0xf]
      %v263 = vld [vmem:[%s225 + $0x34] sm:$0xf]
      %v264 = vld [vmem:[%s225 + $0x38] sm:$0xf]
      %v265 = vld [vmem:[%s225 + $0x3c] sm:$0xf]
      %v266 = vld [vmem:[%s225 + $0x40] sm:$0xf]
      %v267 = vld [vmem:[%s225 + $0x44] sm:$0xf]
      %v268 = vld [vmem:[%s225 + $0x48] sm:$0xf]
      %v269 = vld [vmem:[%s225 + $0x4c] sm:$0xf]
      %v270 = vld [vmem:[%s225 + $0x50] sm:$0xf]
      %v271 = vld [vmem:[%s225 + $0x54] sm:$0xf]
      %v272 = vld [vmem:[%s225 + $0x58] sm:$0xf]
      %v273 = vld [vmem:[%s225 + $0x5c] sm:$0xf]
      %v274 = vld [vmem:[%s225 + $0x60] sm:$0xf]
      %v275 = vld [vmem:[%s225 + $0x64] sm:$0xf]
      %v276 = vld [vmem:[%s225 + $0x68] sm:$0xf]
      %v277 = vld [vmem:[%s225 + $0x6c] sm:$0xf]
      %v278 = vld [vmem:[%s225 + $0x70] sm:$0xf]
      %v279 = vld [vmem:[%s225 + $0x74] sm:$0xf]
      %v280 = vld [vmem:[%s225 + $0x78] sm:$0xf]
      %v281 = vld [vmem:[%s225 + $0x7c] sm:$0xf]
      %v282 = vld [vmem:[%s225 + $0x80] sm:$0xf]
      %v283 = vld [vmem:[%s225 + $0x84] sm:$0xf]
      %v284 = vld [vmem:[%s225 + $0x88] sm:$0xf]
      %v285 = vld [vmem:[%s225 + $0x8c] sm:$0xf]
      %v286 = vld [vmem:[%s225 + $0x90] sm:$0xf]
      %v287 = vld [vmem:[%s225 + $0x94] sm:$0xf]
      %v288 = vld [vmem:[%s225 + $0x98] sm:$0xf]
      %v289 = vld [vmem:[%s225 + $0x9c] sm:$0xf]
      %v290 = vld [vmem:[%s225 + $0xa0] sm:$0xf]
      %v291 = vld [vmem:[%s225 + $0xa4] sm:$0xf]
      %v292 = vld [vmem:[%s225 + $0xa8] sm:$0xf]
      %v293 = vld [vmem:[%s225 + $0xac] sm:$0xf]
      %v294 = vld [vmem:[%s225 + $0xb0] sm:$0xf]
      %v295 = vld [vmem:[%s225 + $0xb4] sm:$0xf]
      %v296 = vld [vmem:[%s225 + $0xb8] sm:$0xf]
      %v297 = vld [vmem:[%s225 + $0xbc] sm:$0xf]
      %v298 = vld [vmem:[%s225 + $0xc0] sm:$0xf]
      %v299 = vld [vmem:[%s225 + $0xc4] sm:$0xf]
      %v300 = vld [vmem:[%s225 + $0xc8] sm:$0xf]
      %v301 = vld [vmem:[%s225 + $0xcc] sm:$0xf]
      %v302 = vld [vmem:[%s225 + $0xd0] sm:$0xf]
      %v303 = vld [vmem:[%s225 + $0xd4] sm:$0xf]
      %v304 = vld [vmem:[%s225 + $0xd8] sm:$0xf]
      %v305 = vld [vmem:[%s225 + $0xdc] sm:$0xf]
      %v306 = vld [vmem:[%s225 + $0xe0] sm:$0xf]
      %v307 = vld [vmem:[%s225 + $0xe4] sm:$0xf]
      %v308 = vld [vmem:[%s225 + $0xe8] sm:$0xf]
      %v309 = vld [vmem:[%s225 + $0xec] sm:$0xf]
      %v310 = vld [vmem:[%s225 + $0xf0] sm:$0xf]
      %v311 = vld [vmem:[%s225 + $0xf4] sm:$0xf]
      %v312 = vld [vmem:[%s225 + $0xf8] sm:$0xf]
      %v313 = vld [vmem:[%s225 + $0xfc] sm:$0xf]
      %v314 = vld [vmem:[%s231] sm:$0xf]
      %v315 = vld [vmem:[%s231 + $0x4] sm:$0xf]
      %v316 = vld [vmem:[%s231 + $0x8] sm:$0xf]
      %v317 = vld [vmem:[%s231 + $0xc] sm:$0xf]
      %v318 = vld [vmem:[%s231 + $0x10] sm:$0xf]
      %v319 = vld [vmem:[%s231 + $0x14] sm:$0xf]
      %v320 = vld [vmem:[%s231 + $0x18] sm:$0xf]
      %v321 = vld [vmem:[%s231 + $0x1c] sm:$0xf]
      %v386 = vunpack.c.l.b16 %v250
      %v387 = vunpack.c.l.b16 %v251
      %v388 = vunpack.c.l.b16 %v252
      %v389 = vunpack.c.l.b16 %v253
      %v390 = vunpack.c.l.b16 %v254
      %v391 = vunpack.c.l.b16 %v255
      %v392 = vunpack.c.l.b16 %v256
      %v393 = vunpack.c.l.b16 %v257
      %v394 = vunpack.c.l.b16 %v258
      %v395 = vunpack.c.l.b16 %v259
      %v396 = vunpack.c.l.b16 %v260
      %v397 = vunpack.c.l.b16 %v261
      %v398 = vunpack.c.l.b16 %v262
      %v399 = vunpack.c.l.b16 %v263
      %v400 = vunpack.c.l.b16 %v264
      %v401 = vunpack.c.l.b16 %v265
      %v402 = vunpack.c.l.b16 %v266
      %v403 = vunpack.c.l.b16 %v267
      %v404 = vunpack.c.l.b16 %v268
      %v405 = vunpack.c.l.b16 %v269
      %v406 = vunpack.c.l.b16 %v270
      %v407 = vunpack.c.l.b16 %v271
      %v408 = vunpack.c.l.b16 %v272
      %v409 = vunpack.c.l.b16 %v273
      %v410 = vunpack.c.l.b16 %v274
      %v411 = vunpack.c.l.b16 %v275
      %v412 = vunpack.c.l.b16 %v276
      %v413 = vunpack.c.l.b16 %v277
      %v414 = vunpack.c.l.b16 %v278
      %v415 = vunpack.c.l.b16 %v279
      %v416 = vunpack.c.l.b16 %v280
      %v417 = vunpack.c.l.b16 %v281
      %v418 = vunpack.c.l.b16 %v282
      %v419 = vunpack.c.l.b16 %v283
      %v420 = vunpack.c.l.b16 %v284
      %v421 = vunpack.c.l.b16 %v285
      %v422 = vunpack.c.l.b16 %v286
      %v423 = vunpack.c.l.b16 %v287
      %v424 = vunpack.c.l.b16 %v288
      %v425 = vunpack.c.l.b16 %v289
      %v426 = vunpack.c.l.b16 %v290
      %v427 = vunpack.c.l.b16 %v291
      %v428 = vunpack.c.l.b16 %v292
      %v429 = vunpack.c.l.b16 %v293
      %v430 = vunpack.c.l.b16 %v294
      %v431 = vunpack.c.l.b16 %v295
      %v432 = vunpack.c.l.b16 %v296
      %v433 = vunpack.c.l.b16 %v297
      %v434 = vunpack.c.l.b16 %v298
      %v435 = vunpack.c.l.b16 %v299
      %v436 = vunpack.c.l.b16 %v300
      %v437 = vunpack.c.l.b16 %v301
      %v438 = vunpack.c.l.b16 %v302
      %v439 = vunpack.c.l.b16 %v303
      %v440 = vunpack.c.l.b16 %v304
      %v441 = vunpack.c.l.b16 %v305
      %v442 = vunpack.c.l.b16 %v306
      %v443 = vunpack.c.l.b16 %v307
      %v444 = vunpack.c.l.b16 %v308
      %v445 = vunpack.c.l.b16 %v309
      %v446 = vunpack.c.l.b16 %v310
      %v447 = vunpack.c.l.b16 %v311
      %v448 = vunpack.c.l.b16 %v312
      %v449 = vunpack.c.l.b16 %v313
      %v450 = vpack.c.b16 %v387, %v386
      %v451 = vpack.c.b16 %v389, %v388
      %v452 = vpack.c.b16 %v391, %v390
      %v453 = vpack.c.b16 %v393, %v392
      %v454 = vpack.c.b16 %v395, %v394
      %v455 = vpack.c.b16 %v397, %v396
      %v456 = vpack.c.b16 %v399, %v398
      %v457 = vpack.c.b16 %v401, %v400
      %v458 = vpack.c.b16 %v403, %v402
      %v459 = vpack.c.b16 %v405, %v404
      %v460 = vpack.c.b16 %v407, %v406
      %v461 = vpack.c.b16 %v409, %v408
      %v462 = vpack.c.b16 %v411, %v410
      %v463 = vpack.c.b16 %v413, %v412
      %v464 = vpack.c.b16 %v415, %v414
      %v465 = vpack.c.b16 %v417, %v416
      %v466 = vpack.c.b16 %v419, %v418
      %v467 = vpack.c.b16 %v421, %v420
      %v468 = vpack.c.b16 %v423, %v422
      %v469 = vpack.c.b16 %v425, %v424
      %v470 = vpack.c.b16 %v427, %v426
      %v471 = vpack.c.b16 %v429, %v428
      %v472 = vpack.c.b16 %v431, %v430
      %v473 = vpack.c.b16 %v433, %v432
      %v474 = vpack.c.b16 %v435, %v434
      %v475 = vpack.c.b16 %v437, %v436
      %v476 = vpack.c.b16 %v439, %v438
      %v477 = vpack.c.b16 %v441, %v440
      %v478 = vpack.c.b16 %v443, %v442
      %v479 = vpack.c.b16 %v445, %v444
      %v480 = vpack.c.b16 %v447, %v446
      %v481 = vpack.c.b16 %v449, %v448
      %v490 = vunpack.c.l.b16 %v314
      %v491 = vunpack.c.l.b16 %v315
      %v492 = vunpack.c.l.b16 %v316
      %v493 = vunpack.c.l.b16 %v317
      %v494 = vunpack.c.l.b16 %v318
      %v495 = vunpack.c.l.b16 %v319
      %v496 = vunpack.c.l.b16 %v320
      %v497 = vunpack.c.l.b16 %v321
      %v498 = vpack.c.b16 %v491, %v490
      %v499 = vpack.c.b16 %v493, %v492
      %v500 = vpack.c.b16 %v495, %v494
      %v501 = vpack.c.b16 %v497, %v496
      %vm506 = vcmask 523264
      %v508 = vsel %vm506, %v450, 0
      %v511 = vsel %vm506, %v451, 0
      %v514 = vsel %vm506, %v452, 0
      %v517 = vsel %vm506, %v453, 0
      %v520 = vsel %vm506, %v454, 0
      %v523 = vsel %vm506, %v455, 0
      %v526 = vsel %vm506, %v456, 0
      %v529 = vsel %vm506, %v457, 0
      %v532 = vsel %vm506, %v458, 0
      %v535 = vsel %vm506, %v459, 0
      %v538 = vsel %vm506, %v460, 0
      %v541 = vsel %vm506, %v461, 0
      %v544 = vsel %vm506, %v462, 0
      %v547 = vsel %vm506, %v463, 0
      %v550 = vsel %vm506, %v464, 0
      %v553 = vsel %vm506, %v465, 0
      %v556 = vsel %vm506, %v466, 0
      %v559 = vsel %vm506, %v467, 0
      %v562 = vsel %vm506, %v468, 0
      %v565 = vsel %vm506, %v469, 0
      %v568 = vsel %vm506, %v470, 0
      %v571 = vsel %vm506, %v471, 0
      %v574 = vsel %vm506, %v472, 0
      %v577 = vsel %vm506, %v473, 0
      %v580 = vsel %vm506, %v474, 0
      %v583 = vsel %vm506, %v475, 0
      %v586 = vsel %vm506, %v476, 0
      %v589 = vsel %vm506, %v477, 0
      %v592 = vsel %vm506, %v478, 0
      %v595 = vsel %vm506, %v479, 0
      %v598 = vsel %vm506, %v480, 0
      %v601 = vsel %vm506, %v481, 0
      %603 = vmatprep.subr.bf16.mxu0 0
      %604 = vmatpush1.bf16.msra.mxu0 0
      %605 = vmatprep.subr.bf16.mxu0 0
      %606 = vmatpush1.bf16.msra.mxu0 0
      %607 = vmatprep.subr.bf16.mxu0 0
      %608 = vmatpush1.bf16.msra.mxu0 0
      %609 = vmatprep.subr.bf16.mxu0 0
      %610 = vmatpush1.bf16.msra.mxu0 0
      %611 = vmatprep.subr.bf16.mxu0 0
      %612 = vmatpush1.bf16.msra.mxu0 %v501
      %613 = vmatprep.subr.bf16.mxu0 0
      %614 = vmatpush1.bf16.msra.mxu0 %v500
      %615 = vmatprep.subr.bf16.mxu0 0
      %616 = vmatpush1.bf16.msra.mxu0 %v499
      %617 = vmatprep.subr.bf16.mxu0 0
      %618 = vmatpush1.bf16.msra.mxu0 %v498
      %619 = vmatprep.subr.bf16.mxu0 0
      %620 = vmatpush2.bf16.msra.mxu0 0
      %621 = vmatprep.subr.bf16.mxu0 0
      %622 = vmatpush2.bf16.msra.mxu0 0
      %623 = vmatprep.subr.bf16.mxu0 0
      %624 = vmatpush2.bf16.msra.mxu0 0
      %625 = vmatprep.subr.bf16.mxu0 0
      %626 = vmatpush2.bf16.msra.mxu0 0
      %627 = vmatprep.subr.bf16.mxu0 0
      %628 = vmatpush2.bf16.msra.mxu0 0
      %629 = vmatprep.subr.bf16.mxu0 0
      %630 = vmatpush2.bf16.msra.mxu0 0
      %631 = vmatprep.subr.bf16.mxu0 0
      %632 = vmatpush2.bf16.msra.mxu0 0
      %633 = vmatprep.subr.bf16.mxu0 0
      %634 = vmatpush2.bf16.msra.mxu0 0
      %635 = vmatprep.mubr.bf16.mxu0 0
      %636 = vmatmul.mubr.bf16.gmra.mxu0 %v508
      %v637 = vpop.f32.mrf.mxu0
      %v638 = vadd.f32 0.0, %v637
      %v639 = vpop.f32.mrf.mxu0
      %v640 = vpop.f32.mrf.mxu0
      %v641 = vadd.f32 0.0, %v640
      %v642 = vpop.f32.mrf.mxu0
      %643 = vmatprep.mubr.bf16.mxu0 0
      %644 = vmatmul.mubr.bf16.gmra.mxu0 %v511
      %v645 = vpop.f32.mrf.mxu0
      %v646 = vadd.f32 0.0, %v645
      %v647 = vpop.f32.mrf.mxu0
      %v648 = vpop.f32.mrf.mxu0
      %v649 = vadd.f32 0.0, %v648
      %v650 = vpop.f32.mrf.mxu0
      %651 = vmatprep.mubr.bf16.mxu0 0
      %652 = vmatmul.mubr.bf16.gmra.mxu0 %v514
      %v653 = vpop.f32.mrf.mxu0
      %v654 = vadd.f32 0.0, %v653
      %v655 = vpop.f32.mrf.mxu0
      %v656 = vpop.f32.mrf.mxu0
      %v657 = vadd.f32 0.0, %v656
      %v658 = vpop.f32.mrf.mxu0
      %659 = vmatprep.mubr.bf16.mxu0 0
      %660 = vmatmul.mubr.bf16.gmra.mxu0 %v517
      %v661 = vpop.f32.mrf.mxu0
      %v662 = vadd.f32 0.0, %v661
      %v663 = vpop.f32.mrf.mxu0
      %v664 = vpop.f32.mrf.mxu0
      %v665 = vadd.f32 0.0, %v664
      %v666 = vpop.f32.mrf.mxu0
      %667 = vmatprep.mubr.bf16.mxu0 0
      %668 = vmatmul.mubr.bf16.gmra.mxu0 %v520
      %v669 = vpop.f32.mrf.mxu0
      %v670 = vadd.f32 0.0, %v669
      %v671 = vpop.f32.mrf.mxu0
      %v672 = vpop.f32.mrf.mxu0
      %v673 = vadd.f32 0.0, %v672
      %v674 = vpop.f32.mrf.mxu0
      %675 = vmatprep.mubr.bf16.mxu0 0
      %676 = vmatmul.mubr.bf16.gmra.mxu0 %v523
      %v677 = vpop.f32.mrf.mxu0
      %v678 = vadd.f32 0.0, %v677
      %v679 = vpop.f32.mrf.mxu0
      %v680 = vpop.f32.mrf.mxu0
      %v681 = vadd.f32 0.0, %v680
      %v682 = vpop.f32.mrf.mxu0
      %683 = vmatprep.mubr.bf16.mxu0 0
      %684 = vmatmul.mubr.bf16.gmra.mxu0 %v526
      %v685 = vpop.f32.mrf.mxu0
      %v686 = vadd.f32 0.0, %v685
      %v687 = vpop.f32.mrf.mxu0
      %v688 = vpop.f32.mrf.mxu0
      %v689 = vadd.f32 0.0, %v688
      %v690 = vpop.f32.mrf.mxu0
      %691 = vmatprep.mubr.bf16.mxu0 0
      %692 = vmatmul.mubr.bf16.gmra.mxu0 %v529
      %v693 = vpop.f32.mrf.mxu0
      %v694 = vadd.f32 0.0, %v693
      %v695 = vpop.f32.mrf.mxu0
      %v696 = vpop.f32.mrf.mxu0
      %v697 = vadd.f32 0.0, %v696
      %v698 = vpop.f32.mrf.mxu0
      %699 = vmatprep.mubr.bf16.mxu0 0
      %700 = vmatmul.mubr.bf16.gmra.mxu0 %v532
      %v701 = vpop.f32.mrf.mxu0
      %v702 = vadd.f32 0.0, %v701
      %v703 = vpop.f32.mrf.mxu0
      %v704 = vpop.f32.mrf.mxu0
      %v705 = vadd.f32 0.0, %v704
      %v706 = vpop.f32.mrf.mxu0
      %707 = vmatprep.mubr.bf16.mxu0 0
      %708 = vmatmul.mubr.bf16.gmra.mxu0 %v535
      %v709 = vpop.f32.mrf.mxu0
      %v710 = vadd.f32 0.0, %v709
      %v711 = vpop.f32.mrf.mxu0
      %v712 = vpop.f32.mrf.mxu0
      %v713 = vadd.f32 0.0, %v712
      %v714 = vpop.f32.mrf.mxu0
      %715 = vmatprep.mubr.bf16.mxu0 0
      %716 = vmatmul.mubr.bf16.gmra.mxu0 %v538
      %v717 = vpop.f32.mrf.mxu0
      %v718 = vadd.f32 0.0, %v717
      %v719 = vpop.f32.mrf.mxu0
      %v720 = vpop.f32.mrf.mxu0
      %v721 = vadd.f32 0.0, %v720
      %v722 = vpop.f32.mrf.mxu0
      %723 = vmatprep.mubr.bf16.mxu0 0
      %724 = vmatmul.mubr.bf16.gmra.mxu0 %v541
      %v725 = vpop.f32.mrf.mxu0
      %v726 = vadd.f32 0.0, %v725
      %v727 = vpop.f32.mrf.mxu0
      %v728 = vpop.f32.mrf.mxu0
      %v729 = vadd.f32 0.0, %v728
      %v730 = vpop.f32.mrf.mxu0
      %731 = vmatprep.mubr.bf16.mxu0 0
      %732 = vmatmul.mubr.bf16.gmra.mxu0 %v544
      %v733 = vpop.f32.mrf.mxu0
      %v734 = vadd.f32 0.0, %v733
      %v735 = vpop.f32.mrf.mxu0
      %v736 = vpop.f32.mrf.mxu0
      %v737 = vadd.f32 0.0, %v736
      %v738 = vpop.f32.mrf.mxu0
      %739 = vmatprep.mubr.bf16.mxu0 0
      %740 = vmatmul.mubr.bf16.gmra.mxu0 %v547
      %v741 = vpop.f32.mrf.mxu0
      %v742 = vadd.f32 0.0, %v741
      %v743 = vpop.f32.mrf.mxu0
      %v744 = vpop.f32.mrf.mxu0
      %v745 = vadd.f32 0.0, %v744
      %v746 = vpop.f32.mrf.mxu0
      %747 = vmatprep.mubr.bf16.mxu0 0
      %748 = vmatmul.mubr.bf16.gmra.mxu0 %v550
      %v749 = vpop.f32.mrf.mxu0
      %v750 = vadd.f32 0.0, %v749
      %v751 = vpop.f32.mrf.mxu0
      %v752 = vpop.f32.mrf.mxu0
      %v753 = vadd.f32 0.0, %v752
      %v754 = vpop.f32.mrf.mxu0
      %755 = vmatprep.mubr.bf16.mxu0 0
      %756 = vmatmul.mubr.bf16.gmra.mxu0 %v553
      %v757 = vpop.f32.mrf.mxu0
      %v758 = vadd.f32 0.0, %v757
      %v759 = vpop.f32.mrf.mxu0
      %v760 = vpop.f32.mrf.mxu0
      %v761 = vadd.f32 0.0, %v760
      %v762 = vpop.f32.mrf.mxu0
      %763 = vmatprep.mubr.bf16.mxu0 0
      %764 = vmatmul.mubr.bf16.gmra.mxu0 %v556
      %v765 = vpop.f32.mrf.mxu0
      %v766 = vadd.f32 0.0, %v765
      %v767 = vpop.f32.mrf.mxu0
      %v768 = vpop.f32.mrf.mxu0
      %v769 = vadd.f32 0.0, %v768
      %v770 = vpop.f32.mrf.mxu0
      %771 = vmatprep.mubr.bf16.mxu0 0
      %772 = vmatmul.mubr.bf16.gmra.mxu0 %v559
      %v773 = vpop.f32.mrf.mxu0
      %v774 = vadd.f32 0.0, %v773
      %v775 = vpop.f32.mrf.mxu0
      %v776 = vpop.f32.mrf.mxu0
      %v777 = vadd.f32 0.0, %v776
      %v778 = vpop.f32.mrf.mxu0
      %779 = vmatprep.mubr.bf16.mxu0 0
      %780 = vmatmul.mubr.bf16.gmra.mxu0 %v562
      %v781 = vpop.f32.mrf.mxu0
      %v782 = vadd.f32 0.0, %v781
      %v783 = vpop.f32.mrf.mxu0
      %v784 = vpop.f32.mrf.mxu0
      %v785 = vadd.f32 0.0, %v784
      %v786 = vpop.f32.mrf.mxu0
      %787 = vmatprep.mubr.bf16.mxu0 0
      %788 = vmatmul.mubr.bf16.gmra.mxu0 %v565
      %v789 = vpop.f32.mrf.mxu0
      %v790 = vadd.f32 0.0, %v789
      %v791 = vpop.f32.mrf.mxu0
      %v792 = vpop.f32.mrf.mxu0
      %v793 = vadd.f32 0.0, %v792
      %v794 = vpop.f32.mrf.mxu0
      %795 = vmatprep.mubr.bf16.mxu0 0
      %796 = vmatmul.mubr.bf16.gmra.mxu0 %v568
      %v797 = vpop.f32.mrf.mxu0
      %v798 = vadd.f32 0.0, %v797
      %v799 = vpop.f32.mrf.mxu0
      %v800 = vpop.f32.mrf.mxu0
      %v801 = vadd.f32 0.0, %v800
      %v802 = vpop.f32.mrf.mxu0
      %803 = vmatprep.mubr.bf16.mxu0 0
      %804 = vmatmul.mubr.bf16.gmra.mxu0 %v571
      %v805 = vpop.f32.mrf.mxu0
      %v806 = vadd.f32 0.0, %v805
      %v807 = vpop.f32.mrf.mxu0
      %v808 = vpop.f32.mrf.mxu0
      %v809 = vadd.f32 0.0, %v808
      %v810 = vpop.f32.mrf.mxu0
      %811 = vmatprep.mubr.bf16.mxu0 0
      %812 = vmatmul.mubr.bf16.gmra.mxu0 %v574
      %v813 = vpop.f32.mrf.mxu0
      %v814 = vadd.f32 0.0, %v813
      %v815 = vpop.f32.mrf.mxu0
      %v816 = vpop.f32.mrf.mxu0
      %v817 = vadd.f32 0.0, %v816
      %v818 = vpop.f32.mrf.mxu0
      %819 = vmatprep.mubr.bf16.mxu0 0
      %820 = vmatmul.mubr.bf16.gmra.mxu0 %v577
      %v821 = vpop.f32.mrf.mxu0
      %v822 = vadd.f32 0.0, %v821
      %v823 = vpop.f32.mrf.mxu0
      %v824 = vpop.f32.mrf.mxu0
      %v825 = vadd.f32 0.0, %v824
      %v826 = vpop.f32.mrf.mxu0
      %827 = vmatprep.mubr.bf16.mxu0 0
      %828 = vmatmul.mubr.bf16.gmra.mxu0 %v580
      %v829 = vpop.f32.mrf.mxu0
      %v830 = vadd.f32 0.0, %v829
      %v831 = vpop.f32.mrf.mxu0
      %v832 = vpop.f32.mrf.mxu0
      %v833 = vadd.f32 0.0, %v832
      %v834 = vpop.f32.mrf.mxu0
      %835 = vmatprep.mubr.bf16.mxu0 0
      %836 = vmatmul.mubr.bf16.gmra.mxu0 %v583
      %v837 = vpop.f32.mrf.mxu0
      %v838 = vadd.f32 0.0, %v837
      %v839 = vpop.f32.mrf.mxu0
      %v840 = vpop.f32.mrf.mxu0
      %v841 = vadd.f32 0.0, %v840
      %v842 = vpop.f32.mrf.mxu0
      %843 = vmatprep.mubr.bf16.mxu0 0
      %844 = vmatmul.mubr.bf16.gmra.mxu0 %v586
      %v845 = vpop.f32.mrf.mxu0
      %v846 = vadd.f32 0.0, %v845
      %v847 = vpop.f32.mrf.mxu0
      %v848 = vpop.f32.mrf.mxu0
      %v849 = vadd.f32 0.0, %v848
      %v850 = vpop.f32.mrf.mxu0
      %851 = vmatprep.mubr.bf16.mxu0 0
      %852 = vmatmul.mubr.bf16.gmra.mxu0 %v589
      %v853 = vpop.f32.mrf.mxu0
      %v854 = vadd.f32 0.0, %v853
      %v855 = vpop.f32.mrf.mxu0
      %v856 = vpop.f32.mrf.mxu0
      %v857 = vadd.f32 0.0, %v856
      %v858 = vpop.f32.mrf.mxu0
      %859 = vmatprep.mubr.bf16.mxu0 0
      %860 = vmatmul.mubr.bf16.gmra.mxu0 %v592
      %v861 = vpop.f32.mrf.mxu0
      %v862 = vadd.f32 0.0, %v861
      %v863 = vpop.f32.mrf.mxu0
      %v864 = vpop.f32.mrf.mxu0
      %v865 = vadd.f32 0.0, %v864
      %v866 = vpop.f32.mrf.mxu0
      %867 = vmatprep.mubr.bf16.mxu0 0
      %868 = vmatmul.mubr.bf16.gmra.mxu0 %v595
      %v869 = vpop.f32.mrf.mxu0
      %v870 = vadd.f32 0.0, %v869
      %v871 = vpop.f32.mrf.mxu0
      %v872 = vpop.f32.mrf.mxu0
      %v873 = vadd.f32 0.0, %v872
      %v874 = vpop.f32.mrf.mxu0
      %875 = vmatprep.mubr.bf16.mxu0 0
      %876 = vmatmul.mubr.bf16.gmra.mxu0 %v598
      %v877 = vpop.f32.mrf.mxu0
      %v878 = vadd.f32 0.0, %v877
      %v879 = vpop.f32.mrf.mxu0
      %v880 = vpop.f32.mrf.mxu0
      %v881 = vadd.f32 0.0, %v880
      %v882 = vpop.f32.mrf.mxu0
      %883 = vmatprep.mubr.bf16.mxu0 0
      %884 = vmatmul.mubr.bf16.gmra.mxu0 %v601
      %v885 = vpop.f32.mrf.mxu0
      %v886 = vadd.f32 0.0, %v885
      %v887 = vpop.f32.mrf.mxu0
      %v888 = vpop.f32.mrf.mxu0
      %v889 = vadd.f32 0.0, %v888
      %v890 = vpop.f32.mrf.mxu0
      %891 = vdwg.mxu0
      %892 = vst [vmem:[%s240] sm:$0xff] %v638
      %893 = vst [vmem:[%s240 + $0x8] sm:$0xff] %v641
      %894 = vst [vmem:[%s240 + $0x10] sm:$0xff] %v646
      %895 = vst [vmem:[%s240 + $0x18] sm:$0xff] %v649
      %896 = vst [vmem:[%s240 + $0x20] sm:$0xff] %v654
      %897 = vst [vmem:[%s240 + $0x28] sm:$0xff] %v657
      %898 = vst [vmem:[%s240 + $0x30] sm:$0xff] %v662
      %899 = vst [vmem:[%s240 + $0x38] sm:$0xff] %v665
      %900 = vst [vmem:[%s240 + $0x40] sm:$0xff] %v670
      %901 = vst [vmem:[%s240 + $0x48] sm:$0xff] %v673
      %902 = vst [vmem:[%s240 + $0x50] sm:$0xff] %v678
      %903 = vst [vmem:[%s240 + $0x58] sm:$0xff] %v681
      %904 = vst [vmem:[%s240 + $0x60] sm:$0xff] %v686
      %905 = vst [vmem:[%s240 + $0x68] sm:$0xff] %v689
      %906 = vst [vmem:[%s240 + $0x70] sm:$0xff] %v694
      %907 = vst [vmem:[%s240 + $0x78] sm:$0xff] %v697
      %908 = vst [vmem:[%s240 + $0x80] sm:$0xff] %v702
      %909 = vst [vmem:[%s240 + $0x88] sm:$0xff] %v705
      %910 = vst [vmem:[%s240 + $0x90] sm:$0xff] %v710
      %911 = vst [vmem:[%s240 + $0x98] sm:$0xff] %v713
      %912 = vst [vmem:[%s240 + $0xa0] sm:$0xff] %v718
      %913 = vst [vmem:[%s240 + $0xa8] sm:$0xff] %v721
      %914 = vst [vmem:[%s240 + $0xb0] sm:$0xff] %v726
      %915 = vst [vmem:[%s240 + $0xb8] sm:$0xff] %v729
      %916 = vst [vmem:[%s240 + $0xc0] sm:$0xff] %v734
      %917 = vst [vmem:[%s240 + $0xc8] sm:$0xff] %v737
      %918 = vst [vmem:[%s240 + $0xd0] sm:$0xff] %v742
      %919 = vst [vmem:[%s240 + $0xd8] sm:$0xff] %v745
      %920 = vst [vmem:[%s240 + $0xe0] sm:$0xff] %v750
      %921 = vst [vmem:[%s240 + $0xe8] sm:$0xff] %v753
      %922 = vst [vmem:[%s240 + $0xf0] sm:$0xff] %v758
      %923 = vst [vmem:[%s240 + $0xf8] sm:$0xff] %v761
      %924 = vst [vmem:[%s240 + $0x100] sm:$0xff] %v766
      %925 = vst [vmem:[%s240 + $0x108] sm:$0xff] %v769
      %926 = vst [vmem:[%s240 + $0x110] sm:$0xff] %v774
      %927 = vst [vmem:[%s240 + $0x118] sm:$0xff] %v777
      %928 = vst [vmem:[%s240 + $0x120] sm:$0xff] %v782
      %929 = vst [vmem:[%s240 + $0x128] sm:$0xff] %v785
      %930 = vst [vmem:[%s240 + $0x130] sm:$0xff] %v790
      %931 = vst [vmem:[%s240 + $0x138] sm:$0xff] %v793
      %932 = vst [vmem:[%s240 + $0x140] sm:$0xff] %v798
      %933 = vst [vmem:[%s240 + $0x148] sm:$0xff] %v801
      %934 = vst [vmem:[%s240 + $0x150] sm:$0xff] %v806
      %935 = vst [vmem:[%s240 + $0x158] sm:$0xff] %v809
      %936 = vst [vmem:[%s240 + $0x160] sm:$0xff] %v814
      %937 = vst [vmem:[%s240 + $0x168] sm:$0xff] %v817
      %938 = vst [vmem:[%s240 + $0x170] sm:$0xff] %v822
      %939 = vst [vmem:[%s240 + $0x178] sm:$0xff] %v825
      %940 = vst [vmem:[%s240 + $0x180] sm:$0xff] %v830
      %941 = vst [vmem:[%s240 + $0x188] sm:$0xff] %v833
      %942 = vst [vmem:[%s240 + $0x190] sm:$0xff] %v838
      %943 = vst [vmem:[%s240 + $0x198] sm:$0xff] %v841
      %944 = vst [vmem:[%s240 + $0x1a0] sm:$0xff] %v846
      %945 = vst [vmem:[%s240 + $0x1a8] sm:$0xff] %v849
      %946 = vst [vmem:[%s240 + $0x1b0] sm:$0xff] %v854
      %947 = vst [vmem:[%s240 + $0x1b8] sm:$0xff] %v857
      %948 = vst [vmem:[%s240 + $0x1c0] sm:$0xff] %v862
      %949 = vst [vmem:[%s240 + $0x1c8] sm:$0xff] %v865
      %950 = vst [vmem:[%s240 + $0x1d0] sm:$0xff] %v870
      %951 = vst [vmem:[%s240 + $0x1d8] sm:$0xff] %v873
      %952 = vst [vmem:[%s240 + $0x1e0] sm:$0xff] %v878
      %953 = vst [vmem:[%s240 + $0x1e8] sm:$0xff] %v881
      %954 = vst [vmem:[%s240 + $0x1f0] sm:$0xff] %v886
      %955 = vst [vmem:[%s240 + $0x1f8] sm:$0xff] %v889
      %v956 = vadd.f32 %v638, %v641
      %v957 = vadd.f32 %v956, %v646
      %v958 = vadd.f32 %v957, %v649
      %v959 = vadd.f32 %v958, %v654
      %v960 = vadd.f32 %v959, %v657
      %v961 = vadd.f32 %v960, %v662
      %v962 = vadd.f32 %v961, %v665
      %v963 = vadd.f32 %v962, %v670
      %v964 = vadd.f32 %v963, %v673
      %v965 = vadd.f32 %v964, %v678
      %v966 = vadd.f32 %v965, %v681
      %v967 = vadd.f32 %v966, %v686
      %v968 = vadd.f32 %v967, %v689
      %v969 = vadd.f32 %v968, %v694
      %v970 = vadd.f32 %v969, %v697
      %v971 = vadd.f32 %v970, %v702
      %v972 = vadd.f32 %v971, %v705
      %v973 = vadd.f32 %v972, %v710
      %v974 = vadd.f32 %v973, %v713
      %v975 = vadd.f32 %v974, %v718
      %v976 = vadd.f32 %v975, %v721
      %v977 = vadd.f32 %v976, %v726
      %v978 = vadd.f32 %v977, %v729
      %v979 = vadd.f32 %v978, %v734
      %v980 = vadd.f32 %v979, %v737
      %v981 = vadd.f32 %v980, %v742
      %v982 = vadd.f32 %v981, %v745
      %v983 = vadd.f32 %v982, %v750
      %v984 = vadd.f32 %v983, %v753
      %v985 = vadd.f32 %v984, %v758
      %v986 = vadd.f32 %v985, %v761
      %v987 = vadd.f32 %v986, %v766
      %v988 = vadd.f32 %v987, %v769
      %v989 = vadd.f32 %v988, %v774
      %v990 = vadd.f32 %v989, %v777
      %v991 = vadd.f32 %v990, %v782
      %v992 = vadd.f32 %v991, %v785
      %v993 = vadd.f32 %v992, %v790
      %v994 = vadd.f32 %v993, %v793
      %v995 = vadd.f32 %v994, %v798
      %v996 = vadd.f32 %v995, %v801
      %v997 = vadd.f32 %v996, %v806
      %v998 = vadd.f32 %v997, %v809
      %v999 = vadd.f32 %v998, %v814
      %v1000 = vadd.f32 %v999, %v817
      %v1001 = vadd.f32 %v1000, %v822
      %v1002 = vadd.f32 %v1001, %v825
      %v1003 = vadd.f32 %v1002, %v830
      %v1004 = vadd.f32 %v1003, %v833
      %v1005 = vadd.f32 %v1004, %v838
      %v1006 = vadd.f32 %v1005, %v841
      %v1007 = vadd.f32 %v1006, %v846
      %v1008 = vadd.f32 %v1007, %v849
      %v1009 = vadd.f32 %v1008, %v854
      %v1010 = vadd.f32 %v1009, %v857
      %v1011 = vadd.f32 %v1010, %v862
      %v1012 = vadd.f32 %v1011, %v865
      %v1013 = vadd.f32 %v1012, %v870
      %v1014 = vadd.f32 %v1013, %v873
      %v1015 = vadd.f32 %v1014, %v878
      %v1016 = vadd.f32 %v1015, %v881
      %v1017 = vadd.f32 %v1016, %v886
      %v1018 = vadd.f32 %v1017, %v889
      %v1019 = vrot.slane %v1018, 4
      %v1020 = vadd.f32 %v1018, %v1019
      %v1021 = vrot.slane %v1020, 2
      %v1022 = vadd.f32 %v1020, %v1021
      %v1023 = vrot.slane %v1022, 1
      %v1024 = vadd.f32 %v1022, %v1023
      %v1025 = vmul.f32 %v638, %v638
      %v1026 = vmul.f32 %v641, %v641
      %v1027 = vmul.f32 %v646, %v646
      %v1028 = vmul.f32 %v649, %v649
      %v1029 = vmul.f32 %v654, %v654
      %v1030 = vmul.f32 %v657, %v657
      %v1031 = vmul.f32 %v662, %v662
      %v1032 = vmul.f32 %v665, %v665
      %v1033 = vmul.f32 %v670, %v670
      %v1034 = vmul.f32 %v673, %v673
      %v1035 = vmul.f32 %v678, %v678
      %v1036 = vmul.f32 %v681, %v681
      %v1037 = vmul.f32 %v686, %v686
      %v1038 = vmul.f32 %v689, %v689
      %v1039 = vmul.f32 %v694, %v694
      %v1040 = vmul.f32 %v697, %v697
      %v1041 = vmul.f32 %v702, %v702
      %v1042 = vmul.f32 %v705, %v705
      %v1043 = vmul.f32 %v710, %v710
      %v1044 = vmul.f32 %v713, %v713
      %v1045 = vmul.f32 %v718, %v718
      %v1046 = vmul.f32 %v721, %v721
      %v1047 = vmul.f32 %v726, %v726
      %v1048 = vmul.f32 %v729, %v729
      %v1049 = vmul.f32 %v734, %v734
      %v1050 = vmul.f32 %v737, %v737
      %v1051 = vmul.f32 %v742, %v742
      %v1052 = vmul.f32 %v745, %v745
      %v1053 = vmul.f32 %v750, %v750
      %v1054 = vmul.f32 %v753, %v753
      %v1055 = vmul.f32 %v758, %v758
      %v1056 = vmul.f32 %v761, %v761
      %v1057 = vmul.f32 %v766, %v766
      %v1058 = vmul.f32 %v769, %v769
      %v1059 = vmul.f32 %v774, %v774
      %v1060 = vmul.f32 %v777, %v777
      %v1061 = vmul.f32 %v782, %v782
      %v1062 = vmul.f32 %v785, %v785
      %v1063 = vmul.f32 %v790, %v790
      %v1064 = vmul.f32 %v793, %v793
      %v1065 = vmul.f32 %v798, %v798
      %v1066 = vmul.f32 %v801, %v801
      %v1067 = vmul.f32 %v806, %v806
      %v1068 = vmul.f32 %v809, %v809
      %v1069 = vmul.f32 %v814, %v814
      %v1070 = vmul.f32 %v817, %v817
      %v1071 = vmul.f32 %v822, %v822
      %v1072 = vmul.f32 %v825, %v825
      %v1073 = vmul.f32 %v830, %v830
      %v1074 = vmul.f32 %v833, %v833
      %v1075 = vmul.f32 %v838, %v838
      %v1076 = vmul.f32 %v841, %v841
      %v1077 = vmul.f32 %v846, %v846
      %v1078 = vmul.f32 %v849, %v849
      %v1079 = vmul.f32 %v854, %v854
      %v1080 = vmul.f32 %v857, %v857
      %v1081 = vmul.f32 %v862, %v862
      %v1082 = vmul.f32 %v865, %v865
      %v1083 = vmul.f32 %v870, %v870
      %v1084 = vmul.f32 %v873, %v873
      %v1085 = vmul.f32 %v878, %v878
      %v1086 = vmul.f32 %v881, %v881
      %v1087 = vmul.f32 %v886, %v886
      %v1088 = vmul.f32 %v889, %v889
      %v1089 = vadd.f32 %v1025, %v1026
      %v1090 = vadd.f32 %v1089, %v1027
      %v1091 = vadd.f32 %v1090, %v1028
      %v1092 = vadd.f32 %v1091, %v1029
      %v1093 = vadd.f32 %v1092, %v1030
      %v1094 = vadd.f32 %v1093, %v1031
      %v1095 = vadd.f32 %v1094, %v1032
      %v1096 = vadd.f32 %v1095, %v1033
      %v1097 = vadd.f32 %v1096, %v1034
      %v1098 = vadd.f32 %v1097, %v1035
      %v1099 = vadd.f32 %v1098, %v1036
      %v1100 = vadd.f32 %v1099, %v1037
      %v1101 = vadd.f32 %v1100, %v1038
      %v1102 = vadd.f32 %v1101, %v1039
      %v1103 = vadd.f32 %v1102, %v1040
      %v1104 = vadd.f32 %v1103, %v1041
      %v1105 = vadd.f32 %v1104, %v1042
      %v1106 = vadd.f32 %v1105, %v1043
      %v1107 = vadd.f32 %v1106, %v1044
      %v1108 = vadd.f32 %v1107, %v1045
      %v1109 = vadd.f32 %v1108, %v1046
      %v1110 = vadd.f32 %v1109, %v1047
      %v1111 = vadd.f32 %v1110, %v1048
      %v1112 = vadd.f32 %v1111, %v1049
      %v1113 = vadd.f32 %v1112, %v1050
      %v1114 = vadd.f32 %v1113, %v1051
      %v1115 = vadd.f32 %v1114, %v1052
      %v1116 = vadd.f32 %v1115, %v1053
      %v1117 = vadd.f32 %v1116, %v1054
      %v1118 = vadd.f32 %v1117, %v1055
      %v1119 = vadd.f32 %v1118, %v1056
      %v1120 = vadd.f32 %v1119, %v1057
      %v1121 = vadd.f32 %v1120, %v1058
      %v1122 = vadd.f32 %v1121, %v1059
      %v1123 = vadd.f32 %v1122, %v1060
      %v1124 = vadd.f32 %v1123, %v1061
      %v1125 = vadd.f32 %v1124, %v1062
      %v1126 = vadd.f32 %v1125, %v1063
      %v1127 = vadd.f32 %v1126, %v1064
      %v1128 = vadd.f32 %v1127, %v1065
      %v1129 = vadd.f32 %v1128, %v1066
      %v1130 = vadd.f32 %v1129, %v1067
      %v1131 = vadd.f32 %v1130, %v1068
      %v1132 = vadd.f32 %v1131, %v1069
      %v1133 = vadd.f32 %v1132, %v1070
      %v1134 = vadd.f32 %v1133, %v1071
      %v1135 = vadd.f32 %v1134, %v1072
      %v1136 = vadd.f32 %v1135, %v1073
      %v1137 = vadd.f32 %v1136, %v1074
      %v1138 = vadd.f32 %v1137, %v1075
      %v1139 = vadd.f32 %v1138, %v1076
      %v1140 = vadd.f32 %v1139, %v1077
      %v1141 = vadd.f32 %v1140, %v1078
      %v1142 = vadd.f32 %v1141, %v1079
      %v1143 = vadd.f32 %v1142, %v1080
      %v1144 = vadd.f32 %v1143, %v1081
      %v1145 = vadd.f32 %v1144, %v1082
      %v1146 = vadd.f32 %v1145, %v1083
      %v1147 = vadd.f32 %v1146, %v1084
      %v1148 = vadd.f32 %v1147, %v1085
      %v1149 = vadd.f32 %v1148, %v1086
      %v1150 = vadd.f32 %v1149, %v1087
      %v1151 = vadd.f32 %v1150, %v1088
      %v1152 = vrot.slane %v1151, 4
      %v1153 = vadd.f32 %v1151, %v1152
      %v1154 = vrot.slane %v1153, 2
      %v1155 = vadd.f32 %v1153, %v1154
      %v1156 = vrot.slane %v1155, 1
      %v1157 = vadd.f32 %v1155, %v1156
      %vm1158 = vcmask 1040384
      %v1159 = vsel %vm1158, %v1024, %v1157
      %1160 = vst [vmem:[%s248] sm:$0x3] %v1159
      %s1161 = smul.u32 64, %s20
      %p1162 = scmp.lt.s32.totalorder %s19, 3
      %s1163 = scalar_select %p1162, %s19, 3
      %p1164 = scmp.lt.s32.totalorder %s1161, 63
      %s1165 = scalar_select %p1164, %s1161, 63
      %s1166 = smul.addr %s1163, 64
      %s1167 = sadd.s32 %s1165, %s1166
      %s1168 = smul.addr %s1167, 8
      %s1169 = scalar_lea.vmem %s2, %s1168
      %p1170 = scmp.lt.s32.totalorder %s19, 3
      %s1171 = scalar_select %p1170, %s19, 3
      %p1172 = scmp.lt.s32.totalorder %s20, 0
      %s1173 = scalar_select %p1172, %s20, 0
      %s1174 = sadd.s32 %s1173, %s1171
      %s1175 = smul.addr %s1174, 2
      %s1176 = scalar_lea.vmem %s3, %s1175
      // Predicated region
      $region29: #{forward.15} parent=27 // pred_check
        %p1177 = pneg %p101
      $region30: #{forward.15} parent=27 // pred_check_branch
        %1179 = sbr.rel (%p1177) target = $region32
      $region31: #{forward.15} parent=27 // pred_region
        %s1180 = smul.u32 64, %s20
      $region32: #{forward.15} parent=27 // pred_fallthru
        _
      // Predicated region
      $region33: #{forward.15} parent=27 // pred_check
        %p1181 = pneg %p129
      $region34: #{forward.15} parent=27 // pred_check_branch
        %1183 = sbr.rel (%p1181) target = $region36
      $region35: #{forward.15} parent=27 // pred_region
        _
      $region36: #{forward.15} parent=27 // pred_fallthru
        _
    $region28: #{forward.15} parent=5 // pred_fallthru
      _
    %p1184 = scmp.le.s32.totalorder 2, %s10
    // Predicated region
    $region37: #{forward.15} parent=5 // pred_check
      %p1185 = pneg %p1184
    $region38: #{forward.15} parent=5 // pred_check_branch
      %1187 = sbr.rel (%p1185) target = $region40
    $region39: #{forward.15} parent=5 // pred_region
      %s1188 = ssub.s32 %s10, 2
      // Predicated region
      $region41: #{forward.15} parent=39 // pred_check
        %p1189 = pneg %p107
      $region42: #{forward.15} parent=39 // pred_check_branch
        %1191 = sbr.rel (%p1189) target = $region44
      $region43: #{forward.15} parent=39 // pred_region
        %s1192 = smul.u32 64, %s22
        %p1193 = scmp.lt.s32.totalorder %s21, 3
        %s1194 = scalar_select %p1193, %s21, 3
        %p1195 = scmp.lt.s32.totalorder %s1192, 63
        %s1196 = scalar_select %p1195, %s1192, 63
        %s1197 = smul.addr %s1194, 64
        %s1198 = sadd.s32 %s1196, %s1197
        %s1199 = smul.addr %s1198, 8
        %s1200 = scalar_lea.vmem %s2, %s1199
      $region44: #{forward.15} parent=39 // pred_fallthru
        _
      // Predicated region
      $region45: #{forward.15} parent=39 // pred_check
        %p1201 = pneg %p135
      $region46: #{forward.15} parent=39 // pred_check_branch
        %1203 = sbr.rel (%p1201) target = $region48
      $region47: #{forward.15} parent=39 // pred_region
        %p1204 = scmp.lt.s32.totalorder %s21, 3
        %s1205 = scalar_select %p1204, %s21, 3
        %p1206 = scmp.lt.s32.totalorder %s22, 0
        %s1207 = scalar_select %p1206, %s22, 0
        %s1208 = sadd.s32 %s1207, %s1205
        %s1209 = smul.addr %s1208, 2
        %s1210 = scalar_lea.vmem %s3, %s1209
      $region48: #{forward.15} parent=39 // pred_fallthru
        _
    $region40: #{forward.15} parent=5 // pred_fallthru
      _
  $region6: #{forward.15} parent=0 // loop_footer
    %s14 = sadd.s32 1, %s10
  $region7: #{forward.15} parent=0 // loop_footer_branch
    %9 = sbr.rel target = $region3
  $region8: #{forward.15} parent=0 // loop_exit
    _

// kernel: forward.16
$region0: #{forward.16}
  #allocation0 [shape = 'u32[]', space=smem, size = 0x4, offset = 0x4, fixed_abs, tag = 'smem constant byte address 0x4 - core index']
  #allocation1 [shape = 'u32[144,128]{1,0:T(1,128)}', space=vmem, size = 0x12000, scoped, tag = 'internal scratch']
  %s0 = inlined_call_operand.vmem [shape: f32[4,512,128], index: 0, kind: input, shape index: {}]
  %s1 = inlined_call_operand.vmem [shape: f32[1,128], index: 1, kind: input, shape index: {}]
  %s2 = inlined_call_operand.vmem [shape: f32[1,128], index: 2, kind: input, shape index: {}]
  %s3 = inlined_call_operand.vmem [shape: bf16[4,512,128], index: 3, kind: output, shape index: {}]
  %s4 = sld [smem:[#allocation0]]
  $region45: #{forward.16} parent=0
    _
  %s6 = ssub.s32 1, %s4
  %s7 = scalar_select 0, %s6, %s4
  loop: start=0, step=1, limit=6
  $region2: #{forward.16} parent=0 // loop_pre_header
    _
  $region3: #{forward.16} parent=0 // loop_header
    %s9 = sphi 0, %s13
    %p10 = scmp.ge.s32.totalorder %s9, 6
    %s16 = sphi 0, %s28
    %s17 = sphi 0, %s24
    %s18 = sphi 0, %s16
    %s19 = sphi 0, %s17
    %s20 = sphi 0, %s18
    %s21 = sphi 0, %s19
    %s33 = sphi 0, %s35
    %s36 = sphi 0, %s33
    %s37 = sphi 0, %s36
    %s53 = sphi 0, %s37
    %s57 = sphi 0, %s57
    %s59 = sphi 0, %s57
    %s60 = sphi 0, %s59
    %s74 = sphi 0, %s60
    %s78 = sphi 0, %s78
    %s80 = sphi 0, %s78
    %s81 = sphi 0, %s80
    %s95 = sphi 0, %s81
    %s103 = sphi 0, %s105
    %s106 = sphi 0, %s103
    %s107 = sphi 0, %s106
    %s123 = sphi 0, %s107
  $region4: #{forward.16} parent=0 // loop_header_branch
    %12 = sbr.rel (%p10) target = $region8
  $region5: #{forward.16} parent=0 // loop_body
    %s14 = ssub.s32 %s9, 1
    %s15 = ssub.s32 %s9, 2
    %s22 = sadd.s32 1, %s17
    %p23 = scmp.ge.s32.totalorder %s22, 1
    %s24 = scalar_select %p23, 0, %s22
    %s25 = sadd.s32 1, %s16
    %s26 = scalar_select %p23, %s25, %s16
    %p27 = scmp.ge.s32.totalorder %s26, 4
    %s28 = scalar_select %p27, 0, %s26
    %s29 = ssub.s32 %s16, %s28
    %s30 = ssub.s32 %s17, %s24
    %s31 = sor.u32 %s29, %s30
    %p32 = scmp.eq.s32.totalorder %s31, 0
    %s34 = sadd.s32 %s33, 1
    %s35 = scalar_select %p32, %s33, %s34
    %p38 = pneg %p32
    %p39 = scmp.eq.s32.totalorder %s9, 3
    %p40 = por %p38, %p39
    %p41 = scmp.ne.s32.totalorder %s33, %s36
    %p42 = scmp.eq.s32.totalorder %s9, 0
    %p43 = por %p41, %p42
    %p44 = scmp.ne.s32.totalorder %s33, %s36
    %p45 = scmp.eq.s32.totalorder %s14, 3
    %p46 = por %p44, %p45
    %p47 = scmp.ne.s32.totalorder %s36, %s37
    %p48 = scmp.eq.s32.totalorder %s14, 0
    %p49 = por %p47, %p48
    %p50 = scmp.ne.s32.totalorder %s36, %s37
    %p51 = scmp.eq.s32.totalorder %s15, 3
    %p52 = por %p50, %p51
    %p54 = scmp.ne.s32.totalorder %s37, %s53
    %p55 = scmp.eq.s32.totalorder %s15, 0
    %p56 = por %p54, %p55
    %s58 = sadd.s32 %s57, 1
    %p61 = scmp.eq.s32.totalorder %s9, 3
    %p62 = scmp.ne.s32.totalorder %s57, %s59
    %p63 = scmp.eq.s32.totalorder %s9, 0
    %p64 = por %p62, %p63
    %p65 = scmp.ne.s32.totalorder %s57, %s59
    %p66 = scmp.eq.s32.totalorder %s14, 3
    %p67 = por %p65, %p66
    %p68 = scmp.ne.s32.totalorder %s59, %s60
    %p69 = scmp.eq.s32.totalorder %s14, 0
    %p70 = por %p68, %p69
    %p71 = scmp.ne.s32.totalorder %s59, %s60
    %p72 = scmp.eq.s32.totalorder %s15, 3
    %p73 = por %p71, %p72
    %p75 = scmp.ne.s32.totalorder %s60, %s74
    %p76 = scmp.eq.s32.totalorder %s15, 0
    %p77 = por %p75, %p76
    %s79 = sadd.s32 %s78, 1
    %p82 = scmp.eq.s32.totalorder %s9, 3
    %p83 = scmp.ne.s32.totalorder %s78, %s80
    %p84 = scmp.eq.s32.totalorder %s9, 0
    %p85 = por %p83, %p84
    %p86 = scmp.ne.s32.totalorder %s78, %s80
    %p87 = scmp.eq.s32.totalorder %s14, 3
    %p88 = por %p86, %p87
    %p89 = scmp.ne.s32.totalorder %s80, %s81
    %p90 = scmp.eq.s32.totalorder %s14, 0
    %p91 = por %p89, %p90
    %p92 = scmp.ne.s32.totalorder %s80, %s81
    %p93 = scmp.eq.s32.totalorder %s15, 3
    %p94 = por %p92, %p93
    %p96 = scmp.ne.s32.totalorder %s81, %s95
    %p97 = scmp.eq.s32.totalorder %s15, 0
    %p98 = por %p96, %p97
    %s99 = ssub.s32 %s16, %s28
    %s100 = ssub.s32 %s17, %s24
    %s101 = sor.u32 %s99, %s100
    %p102 = scmp.eq.s32.totalorder %s101, 0
    %s104 = sadd.s32 %s103, 1
    %s105 = scalar_select %p102, %s103, %s104
    %p108 = pneg %p102
    %p109 = scmp.eq.s32.totalorder %s9, 3
    %p110 = por %p108, %p109
    %p111 = scmp.ne.s32.totalorder %s103, %s106
    %p112 = scmp.eq.s32.totalorder %s9, 0
    %p113 = por %p111, %p112
    %p114 = scmp.ne.s32.totalorder %s103, %s106
    %p115 = scmp.eq.s32.totalorder %s14, 3
    %p116 = por %p114, %p115
    %p117 = scmp.ne.s32.totalorder %s106, %s107
    %p118 = scmp.eq.s32.totalorder %s14, 0
    %p119 = por %p117, %p118
    %p120 = scmp.ne.s32.totalorder %s106, %s107
    %p121 = scmp.eq.s32.totalorder %s15, 3
    %p122 = por %p120, %p121
    %p124 = scmp.ne.s32.totalorder %s107, %s123
    %p125 = scmp.eq.s32.totalorder %s15, 0
    %p126 = por %p124, %p125
    %p127 = scmp.le.s32.totalorder 1, %s9
    %p128 = scmp.lt.s32.totalorder %s9, 5
    %p129 = pnand %p127, %p128
    %p130 = pneg %p129
    // Predicated region
    $region9: #{forward.16} parent=5 // pred_check
      _
    $region10: #{forward.16} parent=5 // pred_check_branch
      %132 = sbr.rel (%p129) target = $region12
    $region11: #{forward.16} parent=5 // pred_region
      %s133 = ssub.s32 %s9, 1
      // Predicated region
      $region13: #{forward.16} parent=11 // pred_check
        %p134 = pneg %p70
      $region14: #{forward.16} parent=11 // pred_check_branch
        %136 = sbr.rel (%p134) target = $region16
      $region15: #{forward.16} parent=11 // pred_region
        _
      $region16: #{forward.16} parent=11 // pred_fallthru
        _
      // Predicated region
      $region17: #{forward.16} parent=11 // pred_check
        %p137 = pneg %p91
      $region18: #{forward.16} parent=11 // pred_check_branch
        %139 = sbr.rel (%p137) target = $region20
      $region19: #{forward.16} parent=11 // pred_region
        _
      $region20: #{forward.16} parent=11 // pred_fallthru
        _
    $region12: #{forward.16} parent=5 // pred_fallthru
      _
    %p140 = scmp.lt.s32.totalorder %s9, 4
    // Predicated region
    $region21: #{forward.16} parent=5 // pred_check
      %p141 = pneg %p140
    $region22: #{forward.16} parent=5 // pred_check_branch
      %143 = sbr.rel (%p141) target = $region24
    $region23: #{forward.16} parent=5 // pred_region
      // Predicated region
      $region25: #{forward.16} parent=23 // pred_check
        %p144 = pneg %p43
      $region26: #{forward.16} parent=23 // pred_check_branch
        %146 = sbr.rel (%p144) target = $region28
      $region27: #{forward.16} parent=23 // pred_region
        %s147 = smul.u32 64, %s17
        %p148 = scmp.lt.s32.totalorder %s16, 3
        %s149 = scalar_select %p148, %s16, 3
        %p150 = scmp.lt.s32.totalorder %s147, 63
        %s151 = scalar_select %p150, %s147, 63
        %s152 = smul.addr %s149, 64
        %s153 = sadd.s32 %s151, %s152
        %s154 = smul.addr %s153, 8
        %s155 = scalar_lea.vmem %s0, %s154
        %s156 = smul.u32 64, %s17
      $region28: #{forward.16} parent=23 // pred_fallthru
        _
    $region24: #{forward.16} parent=5 // pred_fallthru
      _
    %p157 = scmp.le.s32.totalorder 1, %s9
    %p158 = scmp.lt.s32.totalorder %s9, 5
    %p159 = pnand %p157, %p158
    %p160 = pneg %p159
    // Predicated region
    $region29: #{forward.16} parent=5 // pred_check
      _
    $region30: #{forward.16} parent=5 // pred_check_branch
      %162 = sbr.rel (%p159) target = $region32
    $region31: #{forward.16} parent=5 // pred_region
      %s163 = ssub.s32 %s9, 1
      %s164 = smul.u32 64, %s19
      %p165 = scmp.lt.s32.totalorder %s18, 3
      %s166 = scalar_select %p165, %s18, 3
      %p167 = scmp.lt.s32.totalorder %s164, 63
      %s168 = scalar_select %p167, %s164, 63
      %s169 = smul.addr %s166, 64
      %s170 = sadd.s32 %s168, %s169
      %s171 = smul.addr %s170, 8
      %s172 = scalar_lea.vmem %s0, %s171
      %p173 = pneg %p49
      %p174 = pneg %p46
      %p175 = pneg %p70
      %p176 = pneg %p67
      %p177 = pneg %p91
      %p178 = pneg %p88
      %p179 = pneg %p119
      %p180 = pneg %p116
      %s181 = smul.u32 64, %s19
      %p182 = scmp.lt.s32.totalorder %s18, 3
      %s183 = scalar_select %p182, %s18, 3
      %p184 = scmp.lt.s32.totalorder %s181, 63
      %s185 = scalar_select %p184, %s181, 63
      %s186 = smul.addr %s183, 64
      %s187 = sadd.s32 %s185, %s186
      %s188 = smul.addr %s187, 4
      %s189 = scalar_lea.vmem %s3, %s188
      %s190 = smul.u32 64, %s19
      %p191 = scmp.lt.s32.totalorder %s18, 3
      %s192 = scalar_select %p191, %s18, 3
      %p193 = scmp.lt.s32.totalorder %s190, 63
      %s194 = scalar_select %p193, %s190, 63
      %s195 = smul.addr %s192, 64
      %s196 = sadd.s32 %s194, %s195
      %s197 = smul.addr %s196, 8
      %s198 = scalar_lea.vmem %s0, %s197
      %s199 = smul.u32 64, %s19
      %s200 = smul.u32 64, %s19
      %p201 = scmp.lt.s32.totalorder %s18, 3
      %s202 = scalar_select %p201, %s18, 3
      %p203 = scmp.lt.s32.totalorder %s200, 63
      %s204 = scalar_select %p203, %s200, 63
      %s205 = smul.addr %s202, 64
      %s206 = sadd.s32 %s204, %s205
      %s207 = smul.addr %s206, 4
      %s208 = scalar_lea.vmem %s3, %s207
      %s209 = smul.u32 64, %s19
      %v210 = vld [vmem:[%s198] sm:$0xff]
      %v211 = vld [vmem:[%s198 + $0x8] sm:$0xff]
      %v212 = vld [vmem:[%s198 + $0x10] sm:$0xff]
      %v213 = vld [vmem:[%s198 + $0x18] sm:$0xff]
      %v214 = vld [vmem:[%s198 + $0x20] sm:$0xff]
      %v215 = vld [vmem:[%s198 + $0x28] sm:$0xff]
      %v216 = vld [vmem:[%s198 + $0x30] sm:$0xff]
      %v217 = vld [vmem:[%s198 + $0x38] sm:$0xff]
      %v218 = vld [vmem:[%s198 + $0x40] sm:$0xff]
      %v219 = vld [vmem:[%s198 + $0x48] sm:$0xff]
      %v220 = vld [vmem:[%s198 + $0x50] sm:$0xff]
      %v221 = vld [vmem:[%s198 + $0x58] sm:$0xff]
      %v222 = vld [vmem:[%s198 + $0x60] sm:$0xff]
      %v223 = vld [vmem:[%s198 + $0x68] sm:$0xff]
      %v224 = vld [vmem:[%s198 + $0x70] sm:$0xff]
      %v225 = vld [vmem:[%s198 + $0x78] sm:$0xff]
      %v226 = vld [vmem:[%s198 + $0x80] sm:$0xff]
      %v227 = vld [vmem:[%s198 + $0x88] sm:$0xff]
      %v228 = vld [vmem:[%s198 + $0x90] sm:$0xff]
      %v229 = vld [vmem:[%s198 + $0x98] sm:$0xff]
      %v230 = vld [vmem:[%s198 + $0xa0] sm:$0xff]
      %v231 = vld [vmem:[%s198 + $0xa8] sm:$0xff]
      %v232 = vld [vmem:[%s198 + $0xb0] sm:$0xff]
      %v233 = vld [vmem:[%s198 + $0xb8] sm:$0xff]
      %v234 = vld [vmem:[%s198 + $0xc0] sm:$0xff]
      %v235 = vld [vmem:[%s198 + $0xc8] sm:$0xff]
      %v236 = vld [vmem:[%s198 + $0xd0] sm:$0xff]
      %v237 = vld [vmem:[%s198 + $0xd8] sm:$0xff]
      %v238 = vld [vmem:[%s198 + $0xe0] sm:$0xff]
      %v239 = vld [vmem:[%s198 + $0xe8] sm:$0xff]
      %v240 = vld [vmem:[%s198 + $0xf0] sm:$0xff]
      %v241 = vld [vmem:[%s198 + $0xf8] sm:$0xff]
      %v242 = vld [vmem:[%s198 + $0x100] sm:$0xff]
      %v243 = vld [vmem:[%s198 + $0x108] sm:$0xff]
      %v244 = vld [vmem:[%s198 + $0x110] sm:$0xff]
      %v245 = vld [vmem:[%s198 + $0x118] sm:$0xff]
      %v246 = vld [vmem:[%s198 + $0x120] sm:$0xff]
      %v247 = vld [vmem:[%s198 + $0x128] sm:$0xff]
      %v248 = vld [vmem:[%s198 + $0x130] sm:$0xff]
      %v249 = vld [vmem:[%s198 + $0x138] sm:$0xff]
      %v250 = vld [vmem:[%s198 + $0x140] sm:$0xff]
      %v251 = vld [vmem:[%s198 + $0x148] sm:$0xff]
      %v252 = vld [vmem:[%s198 + $0x150] sm:$0xff]
      %v253 = vld [vmem:[%s198 + $0x158] sm:$0xff]
      %v254 = vld [vmem:[%s198 + $0x160] sm:$0xff]
      %v255 = vld [vmem:[%s198 + $0x168] sm:$0xff]
      %v256 = vld [vmem:[%s198 + $0x170] sm:$0xff]
      %v257 = vld [vmem:[%s198 + $0x178] sm:$0xff]
      %v258 = vld [vmem:[%s198 + $0x180] sm:$0xff]
      %v259 = vld [vmem:[%s198 + $0x188] sm:$0xff]
      %v260 = vld [vmem:[%s198 + $0x190] sm:$0xff]
      %v261 = vld [vmem:[%s198 + $0x198] sm:$0xff]
      %v262 = vld [vmem:[%s198 + $0x1a0] sm:$0xff]
      %v263 = vld [vmem:[%s198 + $0x1a8] sm:$0xff]
      %v264 = vld [vmem:[%s198 + $0x1b0] sm:$0xff]
      %v265 = vld [vmem:[%s198 + $0x1b8] sm:$0xff]
      %v266 = vld [vmem:[%s198 + $0x1c0] sm:$0xff]
      %v267 = vld [vmem:[%s198 + $0x1c8] sm:$0xff]
      %v268 = vld [vmem:[%s198 + $0x1d0] sm:$0xff]
      %v269 = vld [vmem:[%s198 + $0x1d8] sm:$0xff]
      %v270 = vld [vmem:[%s198 + $0x1e0] sm:$0xff]
      %v271 = vld [vmem:[%s198 + $0x1e8] sm:$0xff]
      %v272 = vld [vmem:[%s198 + $0x1f0] sm:$0xff]
      %v273 = vld [vmem:[%s198 + $0x1f8] sm:$0xff]
      %v274 = vld [vmem:[%s1] sm:$0x1]
      %v276 = vlaneseq
      %v277 = vshrl.u32 %v276, 7
      %v278 = vsub.s32 0, %v277
      %v279 = vrot.slane %v274, %v278
      %v281 = vmul.f32 %v210, %v279
      %v282 = vmul.f32 %v211, %v279
      %v283 = vmul.f32 %v212, %v279
      %v284 = vmul.f32 %v213, %v279
      %v285 = vmul.f32 %v214, %v279
      %v286 = vmul.f32 %v215, %v279
      %v287 = vmul.f32 %v216, %v279
      %v288 = vmul.f32 %v217, %v279
      %v289 = vmul.f32 %v218, %v279
      %v290 = vmul.f32 %v219, %v279
      %v291 = vmul.f32 %v220, %v279
      %v292 = vmul.f32 %v221, %v279
      %v293 = vmul.f32 %v222, %v279
      %v294 = vmul.f32 %v223, %v279
      %v295 = vmul.f32 %v224, %v279
      %v296 = vmul.f32 %v225, %v279
      %v297 = vmul.f32 %v226, %v279
      %v298 = vmul.f32 %v227, %v279
      %v299 = vmul.f32 %v228, %v279
      %v300 = vmul.f32 %v229, %v279
      %v301 = vmul.f32 %v230, %v279
      %v302 = vmul.f32 %v231, %v279
      %v303 = vmul.f32 %v232, %v279
      %v304 = vmul.f32 %v233, %v279
      %v305 = vmul.f32 %v234, %v279
      %v306 = vmul.f32 %v235, %v279
      %v307 = vmul.f32 %v236, %v279
      %v308 = vmul.f32 %v237, %v279
      %v309 = vmul.f32 %v238, %v279
      %v310 = vmul.f32 %v239, %v279
      %v311 = vmul.f32 %v240, %v279
      %v312 = vmul.f32 %v241, %v279
      %v313 = vmul.f32 %v242, %v279
      %v314 = vmul.f32 %v243, %v279
      %v315 = vmul.f32 %v244, %v279
      %v316 = vmul.f32 %v245, %v279
      %v317 = vmul.f32 %v246, %v279
      %v318 = vmul.f32 %v247, %v279
      %v319 = vmul.f32 %v248, %v279
      %v320 = vmul.f32 %v249, %v279
      %v321 = vmul.f32 %v250, %v279
      %v322 = vmul.f32 %v251, %v279
      %v323 = vmul.f32 %v252, %v279
      %v324 = vmul.f32 %v253, %v279
      %v325 = vmul.f32 %v254, %v279
      %v326 = vmul.f32 %v255, %v279
      %v327 = vmul.f32 %v256, %v279
      %v328 = vmul.f32 %v257, %v279
      %v329 = vmul.f32 %v258, %v279
      %v330 = vmul.f32 %v259, %v279
      %v331 = vmul.f32 %v260, %v279
      %v332 = vmul.f32 %v261, %v279
      %v333 = vmul.f32 %v262, %v279
      %v334 = vmul.f32 %v263, %v279
      %v335 = vmul.f32 %v264, %v279
      %v336 = vmul.f32 %v265, %v279
      %v337 = vmul.f32 %v266, %v279
      %v338 = vmul.f32 %v267, %v279
      %v339 = vmul.f32 %v268, %v279
      %v340 = vmul.f32 %v269, %v279
      %v341 = vmul.f32 %v270, %v279
      %v342 = vmul.f32 %v271, %v279
      %v343 = vmul.f32 %v272, %v279
      %v344 = vmul.f32 %v273, %v279
      %v345 = vld [vmem:[%s2] sm:$0x1]
      %v347 = vlaneseq
      %v348 = vshrl.u32 %v347, 7
      %v349 = vsub.s32 0, %v348
      %v350 = vrot.slane %v345, %v349
      %v352 = vadd.f32 %v281, %v350
      %v353 = vadd.f32 %v282, %v350
      %v354 = vadd.f32 %v283, %v350
      %v355 = vadd.f32 %v284, %v350
      %v356 = vadd.f32 %v285, %v350
      %v357 = vadd.f32 %v286, %v350
      %v358 = vadd.f32 %v287, %v350
      %v359 = vadd.f32 %v288, %v350
      %v360 = vadd.f32 %v289, %v350
      %v361 = vadd.f32 %v290, %v350
      %v362 = vadd.f32 %v291, %v350
      %v363 = vadd.f32 %v292, %v350
      %v364 = vadd.f32 %v293, %v350
      %v365 = vadd.f32 %v294, %v350
      %v366 = vadd.f32 %v295, %v350
      %v367 = vadd.f32 %v296, %v350
      %v368 = vadd.f32 %v297, %v350
      %v369 = vadd.f32 %v298, %v350
      %v370 = vadd.f32 %v299, %v350
      %v371 = vadd.f32 %v300, %v350
      %v372 = vadd.f32 %v301, %v350
      %v373 = vadd.f32 %v302, %v350
      %v374 = vadd.f32 %v303, %v350
      %v375 = vadd.f32 %v304, %v350
      %v376 = vadd.f32 %v305, %v350
      %v377 = vadd.f32 %v306, %v350
      %v378 = vadd.f32 %v307, %v350
      %v379 = vadd.f32 %v308, %v350
      %v380 = vadd.f32 %v309, %v350
      %v381 = vadd.f32 %v310, %v350
      %v382 = vadd.f32 %v311, %v350
      %v383 = vadd.f32 %v312, %v350
      %v384 = vadd.f32 %v313, %v350
      %v385 = vadd.f32 %v314, %v350
      %v386 = vadd.f32 %v315, %v350
      %v387 = vadd.f32 %v316, %v350
      %v388 = vadd.f32 %v317, %v350
      %v389 = vadd.f32 %v318, %v350
      %v390 = vadd.f32 %v319, %v350
      %v391 = vadd.f32 %v320, %v350
      %v392 = vadd.f32 %v321, %v350
      %v393 = vadd.f32 %v322, %v350
      %v394 = vadd.f32 %v323, %v350
      %v395 = vadd.f32 %v324, %v350
      %v396 = vadd.f32 %v325, %v350
      %v397 = vadd.f32 %v326, %v350
      %v398 = vadd.f32 %v327, %v350
      %v399 = vadd.f32 %v328, %v350
      %v400 = vadd.f32 %v329, %v350
      %v401 = vadd.f32 %v330, %v350
      %v402 = vadd.f32 %v331, %v350
      %v403 = vadd.f32 %v332, %v350
      %v404 = vadd.f32 %v333, %v350
      %v405 = vadd.f32 %v334, %v350
      %v406 = vadd.f32 %v335, %v350
      %v407 = vadd.f32 %v336, %v350
      %v408 = vadd.f32 %v337, %v350
      %v409 = vadd.f32 %v338, %v350
      %v410 = vadd.f32 %v339, %v350
      %v411 = vadd.f32 %v340, %v350
      %v412 = vadd.f32 %v341, %v350
      %v413 = vadd.f32 %v342, %v350
      %v414 = vadd.f32 %v343, %v350
      %v415 = vadd.f32 %v344, %v350
      %v416 = vmax.f32 %v352, 0.0
      %v417 = vmax.f32 %v353, 0.0
      %v418 = vmax.f32 %v354, 0.0
      %v419 = vmax.f32 %v355, 0.0
      %v420 = vmax.f32 %v356, 0.0
      %v421 = vmax.f32 %v357, 0.0
      %v422 = vmax.f32 %v358, 0.0
      %v423 = vmax.f32 %v359, 0.0
      %v424 = vmax.f32 %v360, 0.0
      %v425 = vmax.f32 %v361, 0.0
      %v426 = vmax.f32 %v362, 0.0
      %v427 = vmax.f32 %v363, 0.0
      %v428 = vmax.f32 %v364, 0.0
      %v429 = vmax.f32 %v365, 0.0
      %v430 = vmax.f32 %v366, 0.0
      %v431 = vmax.f32 %v367, 0.0
      %v432 = vmax.f32 %v368, 0.0
      %v433 = vmax.f32 %v369, 0.0
      %v434 = vmax.f32 %v370, 0.0
      %v435 = vmax.f32 %v371, 0.0
      %v436 = vmax.f32 %v372, 0.0
      %v437 = vmax.f32 %v373, 0.0
      %v438 = vmax.f32 %v374, 0.0
      %v439 = vmax.f32 %v375, 0.0
      %v440 = vmax.f32 %v376, 0.0
      %v441 = vmax.f32 %v377, 0.0
      %v442 = vmax.f32 %v378, 0.0
      %v443 = vmax.f32 %v379, 0.0
      %v444 = vmax.f32 %v380, 0.0
      %v445 = vmax.f32 %v381, 0.0
      %v446 = vmax.f32 %v382, 0.0
      %v447 = vmax.f32 %v383, 0.0
      %v448 = vmax.f32 %v384, 0.0
      %v449 = vmax.f32 %v385, 0.0
      %v450 = vmax.f32 %v386, 0.0
      %v451 = vmax.f32 %v387, 0.0
      %v452 = vmax.f32 %v388, 0.0
      %v453 = vmax.f32 %v389, 0.0
      %v454 = vmax.f32 %v390, 0.0
      %v455 = vmax.f32 %v391, 0.0
      %v456 = vmax.f32 %v392, 0.0
      %v457 = vmax.f32 %v393, 0.0
      %v458 = vmax.f32 %v394, 0.0
      %v459 = vmax.f32 %v395, 0.0
      %v460 = vmax.f32 %v396, 0.0
      %v461 = vmax.f32 %v397, 0.0
      %v462 = vmax.f32 %v398, 0.0
      %v463 = vmax.f32 %v399, 0.0
      %v464 = vmax.f32 %v400, 0.0
      %v465 = vmax.f32 %v401, 0.0
      %v466 = vmax.f32 %v402, 0.0
      %v467 = vmax.f32 %v403, 0.0
      %v468 = vmax.f32 %v404, 0.0
      %v469 = vmax.f32 %v405, 0.0
      %v470 = vmax.f32 %v406, 0.0
      %v471 = vmax.f32 %v407, 0.0
      %v472 = vmax.f32 %v408, 0.0
      %v473 = vmax.f32 %v409, 0.0
      %v474 = vmax.f32 %v410, 0.0
      %v475 = vmax.f32 %v411, 0.0
      %v476 = vmax.f32 %v412, 0.0
      %v477 = vmax.f32 %v413, 0.0
      %v478 = vmax.f32 %v414, 0.0
      %v479 = vmax.f32 %v415, 0.0
      %v480 = vpack.c.bf16 %v417, %v416
      %v481 = vpack.c.bf16 %v419, %v418
      %v482 = vpack.c.bf16 %v421, %v420
      %v483 = vpack.c.bf16 %v423, %v422
      %v484 = vpack.c.bf16 %v425, %v424
      %v485 = vpack.c.bf16 %v427, %v426
      %v486 = vpack.c.bf16 %v429, %v428
      %v487 = vpack.c.bf16 %v431, %v430
      %v488 = vpack.c.bf16 %v433, %v432
      %v489 = vpack.c.bf16 %v435, %v434
      %v490 = vpack.c.bf16 %v437, %v436
      %v491 = vpack.c.bf16 %v439, %v438
      %v492 = vpack.c.bf16 %v441, %v440
      %v493 = vpack.c.bf16 %v443, %v442
      %v494 = vpack.c.bf16 %v445, %v444
      %v495 = vpack.c.bf16 %v447, %v446
      %v496 = vpack.c.bf16 %v449, %v448
      %v497 = vpack.c.bf16 %v451, %v450
      %v498 = vpack.c.bf16 %v453, %v452
      %v499 = vpack.c.bf16 %v455, %v454
      %v500 = vpack.c.bf16 %v457, %v456
      %v501 = vpack.c.bf16 %v459, %v458
      %v502 = vpack.c.bf16 %v461, %v460
      %v503 = vpack.c.bf16 %v463, %v462
      %v504 = vpack.c.bf16 %v465, %v464
      %v505 = vpack.c.bf16 %v467, %v466
      %v506 = vpack.c.bf16 %v469, %v468
      %v507 = vpack.c.bf16 %v471, %v470
      %v508 = vpack.c.bf16 %v473, %v472
      %v509 = vpack.c.bf16 %v475, %v474
      %v510 = vpack.c.bf16 %v477, %v476
      %v511 = vpack.c.bf16 %v479, %v478
      %v544 = vunpack.c.l.b16 %v480
      %v545 = vunpack.c.h.b16 %v480
      %v546 = vunpack.c.l.b16 %v481
      %v547 = vunpack.c.h.b16 %v481
      %v548 = vunpack.c.l.b16 %v482
      %v549 = vunpack.c.h.b16 %v482
      %v550 = vunpack.c.l.b16 %v483
      %v551 = vunpack.c.h.b16 %v483
      %v552 = vunpack.c.l.b16 %v484
      %v553 = vunpack.c.h.b16 %v484
      %v554 = vunpack.c.l.b16 %v485
      %v555 = vunpack.c.h.b16 %v485
      %v556 = vunpack.c.l.b16 %v486
      %v557 = vunpack.c.h.b16 %v486
      %v558 = vunpack.c.l.b16 %v487
      %v559 = vunpack.c.h.b16 %v487
      %v560 = vunpack.c.l.b16 %v488
      %v561 = vunpack.c.h.b16 %v488
      %v562 = vunpack.c.l.b16 %v489
      %v563 = vunpack.c.h.b16 %v489
      %v564 = vunpack.c.l.b16 %v490
      %v565 = vunpack.c.h.b16 %v490
      %v566 = vunpack.c.l.b16 %v491
      %v567 = vunpack.c.h.b16 %v491
      %v568 = vunpack.c.l.b16 %v492
      %v569 = vunpack.c.h.b16 %v492
      %v570 = vunpack.c.l.b16 %v493
      %v571 = vunpack.c.h.b16 %v493
      %v572 = vunpack.c.l.b16 %v494
      %v573 = vunpack.c.h.b16 %v494
      %v574 = vunpack.c.l.b16 %v495
      %v575 = vunpack.c.h.b16 %v495
      %v576 = vunpack.c.l.b16 %v496
      %v577 = vunpack.c.h.b16 %v496
      %v578 = vunpack.c.l.b16 %v497
      %v579 = vunpack.c.h.b16 %v497
      %v580 = vunpack.c.l.b16 %v498
      %v581 = vunpack.c.h.b16 %v498
      %v582 = vunpack.c.l.b16 %v499
      %v583 = vunpack.c.h.b16 %v499
      %v584 = vunpack.c.l.b16 %v500
      %v585 = vunpack.c.h.b16 %v500
      %v586 = vunpack.c.l.b16 %v501
      %v587 = vunpack.c.h.b16 %v501
      %v588 = vunpack.c.l.b16 %v502
      %v589 = vunpack.c.h.b16 %v502
      %v590 = vunpack.c.l.b16 %v503
      %v591 = vunpack.c.h.b16 %v503
      %v592 = vunpack.c.l.b16 %v504
      %v593 = vunpack.c.h.b16 %v504
      %v594 = vunpack.c.l.b16 %v505
      %v595 = vunpack.c.h.b16 %v505
      %v596 = vunpack.c.l.b16 %v506
      %v597 = vunpack.c.h.b16 %v506
      %v598 = vunpack.c.l.b16 %v507
      %v599 = vunpack.c.h.b16 %v507
      %v600 = vunpack.c.l.b16 %v508
      %v601 = vunpack.c.h.b16 %v508
      %v602 = vunpack.c.l.b16 %v509
      %v603 = vunpack.c.h.b16 %v509
      %v604 = vunpack.c.l.b16 %v510
      %v605 = vunpack.c.h.b16 %v510
      %v606 = vunpack.c.l.b16 %v511
      %v607 = vunpack.c.h.b16 %v511
      %v608 = vpack.c.b16 %v544, %v544
      %v609 = vpack.c.b16 %v545, %v545
      %v610 = vpack.c.b16 %v546, %v546
      %v611 = vpack.c.b16 %v547, %v547
      %v612 = vpack.c.b16 %v548, %v548
      %v613 = vpack.c.b16 %v549, %v549
      %v614 = vpack.c.b16 %v550, %v550
      %v615 = vpack.c.b16 %v551, %v551
      %v616 = vpack.c.b16 %v552, %v552
      %v617 = vpack.c.b16 %v553, %v553
      %v618 = vpack.c.b16 %v554, %v554
      %v619 = vpack.c.b16 %v555, %v555
      %v620 = vpack.c.b16 %v556, %v556
      %v621 = vpack.c.b16 %v557, %v557
      %v622 = vpack.c.b16 %v558, %v558
      %v623 = vpack.c.b16 %v559, %v559
      %v624 = vpack.c.b16 %v560, %v560
      %v625 = vpack.c.b16 %v561, %v561
      %v626 = vpack.c.b16 %v562, %v562
      %v627 = vpack.c.b16 %v563, %v563
      %v628 = vpack.c.b16 %v564, %v564
      %v629 = vpack.c.b16 %v565, %v565
      %v630 = vpack.c.b16 %v566, %v566
      %v631 = vpack.c.b16 %v567, %v567
      %v632 = vpack.c.b16 %v568, %v568
      %v633 = vpack.c.b16 %v569, %v569
      %v634 = vpack.c.b16 %v570, %v570
      %v635 = vpack.c.b16 %v571, %v571
      %v636 = vpack.c.b16 %v572, %v572
      %v637 = vpack.c.b16 %v573, %v573
      %v638 = vpack.c.b16 %v574, %v574
      %v639 = vpack.c.b16 %v575, %v575
      %v640 = vpack.c.b16 %v576, %v576
      %v641 = vpack.c.b16 %v577, %v577
      %v642 = vpack.c.b16 %v578, %v578
      %v643 = vpack.c.b16 %v579, %v579
      %v644 = vpack.c.b16 %v580, %v580
      %v645 = vpack.c.b16 %v581, %v581
      %v646 = vpack.c.b16 %v582, %v582
      %v647 = vpack.c.b16 %v583, %v583
      %v648 = vpack.c.b16 %v584, %v584
      %v649 = vpack.c.b16 %v585, %v585
      %v650 = vpack.c.b16 %v586, %v586
      %v651 = vpack.c.b16 %v587, %v587
      %v652 = vpack.c.b16 %v588, %v588
      %v653 = vpack.c.b16 %v589, %v589
      %v654 = vpack.c.b16 %v590, %v590
      %v655 = vpack.c.b16 %v591, %v591
      %v656 = vpack.c.b16 %v592, %v592
      %v657 = vpack.c.b16 %v593, %v593
      %v658 = vpack.c.b16 %v594, %v594
      %v659 = vpack.c.b16 %v595, %v595
      %v660 = vpack.c.b16 %v596, %v596
      %v661 = vpack.c.b16 %v597, %v597
      %v662 = vpack.c.b16 %v598, %v598
      %v663 = vpack.c.b16 %v599, %v599
      %v664 = vpack.c.b16 %v600, %v600
      %v665 = vpack.c.b16 %v601, %v601
      %v666 = vpack.c.b16 %v602, %v602
      %v667 = vpack.c.b16 %v603, %v603
      %v668 = vpack.c.b16 %v604, %v604
      %v669 = vpack.c.b16 %v605, %v605
      %v670 = vpack.c.b16 %v606, %v606
      %v671 = vpack.c.b16 %v607, %v607
      %736 = vst [vmem:[%s208] sm:$0xf] %v608
      %737 = vst [vmem:[%s208 + $0x4] sm:$0xf] %v609
      %738 = vst [vmem:[%s208 + $0x8] sm:$0xf] %v610
      %739 = vst [vmem:[%s208 + $0xc] sm:$0xf] %v611
      %740 = vst [vmem:[%s208 + $0x10] sm:$0xf] %v612
      %741 = vst [vmem:[%s208 + $0x14] sm:$0xf] %v613
      %742 = vst [vmem:[%s208 + $0x18] sm:$0xf] %v614
      %743 = vst [vmem:[%s208 + $0x1c] sm:$0xf] %v615
      %744 = vst [vmem:[%s208 + $0x20] sm:$0xf] %v616
      %745 = vst [vmem:[%s208 + $0x24] sm:$0xf] %v617
      %746 = vst [vmem:[%s208 + $0x28] sm:$0xf] %v618
      %747 = vst [vmem:[%s208 + $0x2c] sm:$0xf] %v619
      %748 = vst [vmem:[%s208 + $0x30] sm:$0xf] %v620
      %749 = vst [vmem:[%s208 + $0x34] sm:$0xf] %v621
      %750 = vst [vmem:[%s208 + $0x38] sm:$0xf] %v622
      %751 = vst [vmem:[%s208 + $0x3c] sm:$0xf] %v623
      %752 = vst [vmem:[%s208 + $0x40] sm:$0xf] %v624
      %753 = vst [vmem:[%s208 + $0x44] sm:$0xf] %v625
      %754 = vst [vmem:[%s208 + $0x48] sm:$0xf] %v626
      %755 = vst [vmem:[%s208 + $0x4c] sm:$0xf] %v627
      %756 = vst [vmem:[%s208 + $0x50] sm:$0xf] %v628
      %757 = vst [vmem:[%s208 + $0x54] sm:$0xf] %v629
      %758 = vst [vmem:[%s208 + $0x58] sm:$0xf] %v630
      %759 = vst [vmem:[%s208 + $0x5c] sm:$0xf] %v631
      %760 = vst [vmem:[%s208 + $0x60] sm:$0xf] %v632
      %761 = vst [vmem:[%s208 + $0x64] sm:$0xf] %v633
      %762 = vst [vmem:[%s208 + $0x68] sm:$0xf] %v634
      %763 = vst [vmem:[%s208 + $0x6c] sm:$0xf] %v635
      %764 = vst [vmem:[%s208 + $0x70] sm:$0xf] %v636
      %765 = vst [vmem:[%s208 + $0x74] sm:$0xf] %v637
      %766 = vst [vmem:[%s208 + $0x78] sm:$0xf] %v638
      %767 = vst [vmem:[%s208 + $0x7c] sm:$0xf] %v639
      %768 = vst [vmem:[%s208 + $0x80] sm:$0xf] %v640
      %769 = vst [vmem:[%s208 + $0x84] sm:$0xf] %v641
      %770 = vst [vmem:[%s208 + $0x88] sm:$0xf] %v642
      %771 = vst [vmem:[%s208 + $0x8c] sm:$0xf] %v643
      %772 = vst [vmem:[%s208 + $0x90] sm:$0xf] %v644
      %773 = vst [vmem:[%s208 + $0x94] sm:$0xf] %v645
      %774 = vst [vmem:[%s208 + $0x98] sm:$0xf] %v646
      %775 = vst [vmem:[%s208 + $0x9c] sm:$0xf] %v647
      %776 = vst [vmem:[%s208 + $0xa0] sm:$0xf] %v648
      %777 = vst [vmem:[%s208 + $0xa4] sm:$0xf] %v649
      %778 = vst [vmem:[%s208 + $0xa8] sm:$0xf] %v650
      %779 = vst [vmem:[%s208 + $0xac] sm:$0xf] %v651
      %780 = vst [vmem:[%s208 + $0xb0] sm:$0xf] %v652
      %781 = vst [vmem:[%s208 + $0xb4] sm:$0xf] %v653
      %782 = vst [vmem:[%s208 + $0xb8] sm:$0xf] %v654
      %783 = vst [vmem:[%s208 + $0xbc] sm:$0xf] %v655
      %784 = vst [vmem:[%s208 + $0xc0] sm:$0xf] %v656
      %785 = vst [vmem:[%s208 + $0xc4] sm:$0xf] %v657
      %786 = vst [vmem:[%s208 + $0xc8] sm:$0xf] %v658
      %787 = vst [vmem:[%s208 + $0xcc] sm:$0xf] %v659
      %788 = vst [vmem:[%s208 + $0xd0] sm:$0xf] %v660
      %789 = vst [vmem:[%s208 + $0xd4] sm:$0xf] %v661
      %790 = vst [vmem:[%s208 + $0xd8] sm:$0xf] %v662
      %791 = vst [vmem:[%s208 + $0xdc] sm:$0xf] %v663
      %792 = vst [vmem:[%s208 + $0xe0] sm:$0xf] %v664
      %793 = vst [vmem:[%s208 + $0xe4] sm:$0xf] %v665
      %794 = vst [vmem:[%s208 + $0xe8] sm:$0xf] %v666
      %795 = vst [vmem:[%s208 + $0xec] sm:$0xf] %v667
      %796 = vst [vmem:[%s208 + $0xf0] sm:$0xf] %v668
      %797 = vst [vmem:[%s208 + $0xf4] sm:$0xf] %v669
      %798 = vst [vmem:[%s208 + $0xf8] sm:$0xf] %v670
      %799 = vst [vmem:[%s208 + $0xfc] sm:$0xf] %v671
      %s800 = smul.u32 64, %s19
      %p801 = scmp.lt.s32.totalorder %s18, 3
      %s802 = scalar_select %p801, %s18, 3
      %p803 = scmp.lt.s32.totalorder %s800, 63
      %s804 = scalar_select %p803, %s800, 63
      %s805 = smul.addr %s802, 64
      %s806 = sadd.s32 %s804, %s805
      %s807 = smul.addr %s806, 4
      %s808 = scalar_lea.vmem %s3, %s807
      // Predicated region
      $region33: #{forward.16} parent=31 // pred_check
        %p809 = pneg %p116
      $region34: #{forward.16} parent=31 // pred_check_branch
        %811 = sbr.rel (%p809) target = $region36
      $region35: #{forward.16} parent=31 // pred_region
        %s812 = smul.u32 64, %s19
      $region36: #{forward.16} parent=31 // pred_fallthru
        _
    $region32: #{forward.16} parent=5 // pred_fallthru
      _
    %p813 = scmp.le.s32.totalorder 2, %s9
    // Predicated region
    $region37: #{forward.16} parent=5 // pred_check
      %p814 = pneg %p813
    $region38: #{forward.16} parent=5 // pred_check_branch
      %816 = sbr.rel (%p814) target = $region40
    $region39: #{forward.16} parent=5 // pred_region
      %s817 = ssub.s32 %s9, 2
      // Predicated region
      $region41: #{forward.16} parent=39 // pred_check
        %p818 = pneg %p122
      $region42: #{forward.16} parent=39 // pred_check_branch
        %820 = sbr.rel (%p818) target = $region44
      $region43: #{forward.16} parent=39 // pred_region
        %s821 = smul.u32 64, %s21
        %p822 = scmp.lt.s32.totalorder %s20, 3
        %s823 = scalar_select %p822, %s20, 3
        %p824 = scmp.lt.s32.totalorder %s821, 63
        %s825 = scalar_select %p824, %s821, 63
        %s826 = smul.addr %s823, 64
        %s827 = sadd.s32 %s825, %s826
        %s828 = smul.addr %s827, 4
        %s829 = scalar_lea.vmem %s3, %s828
      $region44: #{forward.16} parent=39 // pred_fallthru
        _
    $region40: #{forward.16} parent=5 // pred_fallthru
      _
  $region6: #{forward.16} parent=0 // loop_footer
    %s13 = sadd.s32 1, %s9
  $region7: #{forward.16} parent=0 // loop_footer_branch
    %8 = sbr.rel target = $region3
  $region8: #{forward.16} parent=0 // loop_exit
    _

// kernel: forward.17
$region0: #{forward.17}
  #allocation0 [shape = 'u32[]', space=smem, size = 0x4, offset = 0x4, fixed_abs, tag = 'smem constant byte address 0x4 - core index']
  #allocation1 [shape = 'u32[144,128]{1,0:T(1,128)}', space=vmem, size = 0x12000, scoped, tag = 'internal scratch']
  %s0 = inlined_call_operand.vmem [shape: bf16[4,2048,32], index: 0, kind: input, shape index: {}]
  %s1 = inlined_call_operand.vmem [shape: bf16[4,32,128], index: 1, kind: input, shape index: {}]
  %s2 = inlined_call_operand.vmem [shape: f32[4,2048,128], index: 2, kind: output, shape index: {}]
  %s3 = sld [smem:[#allocation0]]
  $region41: #{forward.17} parent=0
    _
  %s5 = ssub.s32 1, %s3
  %s6 = scalar_select 0, %s5, %s3
  loop: start=0, step=1, limit=18
  $region2: #{forward.17} parent=0 // loop_pre_header
    _
  $region3: #{forward.17} parent=0 // loop_header
    %s8 = sphi 0, %s12
    %p9 = scmp.ge.s32.totalorder %s8, 18
    %s15 = sphi 0, %s27
    %s16 = sphi 0, %s23
    %s17 = sphi 0, %s15
    %s18 = sphi 0, %s16
    %s19 = sphi 0, %s17
    %s20 = sphi 0, %s18
    %s32 = sphi 0, %s34
    %s35 = sphi 0, %s32
    %s36 = sphi 0, %s35
    %s52 = sphi 0, %s36
    %s58 = sphi 0, %s60
    %s61 = sphi 0, %s58
    %s62 = sphi 0, %s61
    %s78 = sphi 0, %s62
    %s86 = sphi 0, %s88
    %s89 = sphi 0, %s86
    %s90 = sphi 0, %s89
    %s106 = sphi 0, %s90
  $region4: #{forward.17} parent=0 // loop_header_branch
    %11 = sbr.rel (%p9) target = $region8
  $region5: #{forward.17} parent=0 // loop_body
    %s13 = ssub.s32 %s8, 1
    %s14 = ssub.s32 %s8, 2
    %s21 = sadd.s32 1, %s16
    %p22 = scmp.ge.s32.totalorder %s21, 4
    %s23 = scalar_select %p22, 0, %s21
    %s24 = sadd.s32 1, %s15
    %s25 = scalar_select %p22, %s24, %s15
    %p26 = scmp.ge.s32.totalorder %s25, 4
    %s27 = scalar_select %p26, 0, %s25
    %s28 = ssub.s32 %s15, %s27
    %s29 = ssub.s32 %s16, %s23
    %s30 = sor.u32 %s28, %s29
    %p31 = scmp.eq.s32.totalorder %s30, 0
    %s33 = sadd.s32 %s32, 1
    %s34 = scalar_select %p31, %s32, %s33
    %p37 = pneg %p31
    %p38 = scmp.eq.s32.totalorder %s8, 15
    %p39 = por %p37, %p38
    %p40 = scmp.ne.s32.totalorder %s32, %s35
    %p41 = scmp.eq.s32.totalorder %s8, 0
    %p42 = por %p40, %p41
    %p43 = scmp.ne.s32.totalorder %s32, %s35
    %p44 = scmp.eq.s32.totalorder %s13, 15
    %p45 = por %p43, %p44
    %p46 = scmp.ne.s32.totalorder %s35, %s36
    %p47 = scmp.eq.s32.totalorder %s13, 0
    %p48 = por %p46, %p47
    %p49 = scmp.ne.s32.totalorder %s35, %s36
    %p50 = scmp.eq.s32.totalorder %s14, 15
    %p51 = por %p49, %p50
    %p53 = scmp.ne.s32.totalorder %s36, %s52
    %p54 = scmp.eq.s32.totalorder %s14, 0
    %p55 = por %p53, %p54
    %s56 = ssub.s32 %s15, %s27
    %p57 = scmp.eq.s32.totalorder %s56, 0
    %s59 = sadd.s32 %s58, 1
    %s60 = scalar_select %p57, %s58, %s59
    %p63 = pneg %p57
    %p64 = scmp.eq.s32.totalorder %s8, 15
    %p65 = por %p63, %p64
    %p66 = scmp.ne.s32.totalorder %s58, %s61
    %p67 = scmp.eq.s32.totalorder %s8, 0
    %p68 = por %p66, %p67
    %p69 = scmp.ne.s32.totalorder %s58, %s61
    %p70 = scmp.eq.s32.totalorder %s13, 15
    %p71 = por %p69, %p70
    %p72 = scmp.ne.s32.totalorder %s61, %s62
    %p73 = scmp.eq.s32.totalorder %s13, 0
    %p74 = por %p72, %p73
    %p75 = scmp.ne.s32.totalorder %s61, %s62
    %p76 = scmp.eq.s32.totalorder %s14, 15
    %p77 = por %p75, %p76
    %p79 = scmp.ne.s32.totalorder %s62, %s78
    %p80 = scmp.eq.s32.totalorder %s14, 0
    %p81 = por %p79, %p80
    %s82 = ssub.s32 %s15, %s27
    %s83 = ssub.s32 %s16, %s23
    %s84 = sor.u32 %s82, %s83
    %p85 = scmp.eq.s32.totalorder %s84, 0
    %s87 = sadd.s32 %s86, 1
    %s88 = scalar_select %p85, %s86, %s87
    %p91 = pneg %p85
    %p92 = scmp.eq.s32.totalorder %s8, 15
    %p93 = por %p91, %p92
    %p94 = scmp.ne.s32.totalorder %s86, %s89
    %p95 = scmp.eq.s32.totalorder %s8, 0
    %p96 = por %p94, %p95
    %p97 = scmp.ne.s32.totalorder %s86, %s89
    %p98 = scmp.eq.s32.totalorder %s13, 15
    %p99 = por %p97, %p98
    %p100 = scmp.ne.s32.totalorder %s89, %s90
    %p101 = scmp.eq.s32.totalorder %s13, 0
    %p102 = por %p100, %p101
    %p103 = scmp.ne.s32.totalorder %s89, %s90
    %p104 = scmp.eq.s32.totalorder %s14, 15
    %p105 = por %p103, %p104
    %p107 = scmp.ne.s32.totalorder %s90, %s106
    %p108 = scmp.eq.s32.totalorder %s14, 0
    %p109 = por %p107, %p108
    %p110 = scmp.le.s32.totalorder 1, %s8
    %p111 = scmp.lt.s32.totalorder %s8, 17
    %p112 = pnand %p110, %p111
    %p113 = pneg %p112
    // Predicated region
    $region9: #{forward.17} parent=5 // pred_check
      _
    $region10: #{forward.17} parent=5 // pred_check_branch
      %115 = sbr.rel (%p112) target = $region12
    $region11: #{forward.17} parent=5 // pred_region
      %s116 = ssub.s32 %s8, 1
    $region12: #{forward.17} parent=5 // pred_fallthru
      _
    %p117 = scmp.lt.s32.totalorder %s8, 16
    // Predicated region
    $region13: #{forward.17} parent=5 // pred_check
      %p118 = pneg %p117
    $region14: #{forward.17} parent=5 // pred_check_branch
      %120 = sbr.rel (%p118) target = $region16
    $region15: #{forward.17} parent=5 // pred_region
      // Predicated region
      $region17: #{forward.17} parent=15 // pred_check
        %p121 = pneg %p42
      $region18: #{forward.17} parent=15 // pred_check_branch
        %123 = sbr.rel (%p121) target = $region20
      $region19: #{forward.17} parent=15 // pred_region
        %s124 = smul.u32 64, %s16
        %p125 = scmp.lt.s32.totalorder %s15, 3
        %s126 = scalar_select %p125, %s15, 3
        %p127 = scmp.lt.s32.totalorder %s124, 255
        %s128 = scalar_select %p127, %s124, 255
        %s129 = smul.addr %s126, 256
        %s130 = sadd.s32 %s128, %s129
        %s131 = smul.addr %s130, 4
        %s132 = scalar_lea.vmem %s0, %s131
        %s133 = smul.u32 64, %s16
      $region20: #{forward.17} parent=15 // pred_fallthru
        _
      // Predicated region
      $region21: #{forward.17} parent=15 // pred_check
        %p134 = pneg %p68
      $region22: #{forward.17} parent=15 // pred_check_branch
        %136 = sbr.rel (%p134) target = $region24
      $region23: #{forward.17} parent=15 // pred_region
        %p137 = scmp.lt.s32.totalorder %s15, 3
        %s138 = scalar_select %p137, %s15, 3
        %s139 = smul.addr %s138, 4
        %s140 = smul.addr %s139, 4
        %s141 = scalar_lea.vmem %s1, %s140
      $region24: #{forward.17} parent=15 // pred_fallthru
        _
    $region16: #{forward.17} parent=5 // pred_fallthru
      _
    %p142 = scmp.le.s32.totalorder 1, %s8
    %p143 = scmp.lt.s32.totalorder %s8, 17
    %p144 = pnand %p142, %p143
    %p145 = pneg %p144
    // Predicated region
    $region25: #{forward.17} parent=5 // pred_check
      _
    $region26: #{forward.17} parent=5 // pred_check_branch
      %147 = sbr.rel (%p144) target = $region28
    $region27: #{forward.17} parent=5 // pred_region
      %s148 = ssub.s32 %s8, 1
      %s149 = smul.u32 64, %s18
      %p150 = scmp.lt.s32.totalorder %s17, 3
      %s151 = scalar_select %p150, %s17, 3
      %p152 = scmp.lt.s32.totalorder %s149, 255
      %s153 = scalar_select %p152, %s149, 255
      %s154 = smul.addr %s151, 256
      %s155 = sadd.s32 %s153, %s154
      %s156 = smul.addr %s155, 4
      %s157 = scalar_lea.vmem %s0, %s156
      %p158 = pneg %p48
      %p159 = pneg %p45
      %p160 = scmp.lt.s32.totalorder %s17, 3
      %s161 = scalar_select %p160, %s17, 3
      %s162 = smul.addr %s161, 4
      %s163 = smul.addr %s162, 4
      %s164 = scalar_lea.vmem %s1, %s163
      %p165 = pneg %p74
      %p166 = pneg %p71
      %p167 = pneg %p102
      %p168 = pneg %p99
      %s169 = smul.u32 64, %s18
      %p170 = scmp.lt.s32.totalorder %s17, 3
      %s171 = scalar_select %p170, %s17, 3
      %p172 = scmp.lt.s32.totalorder %s169, 255
      %s173 = scalar_select %p172, %s169, 255
      %s174 = smul.addr %s171, 256
      %s175 = sadd.s32 %s173, %s174
      %s176 = smul.addr %s175, 8
      %s177 = scalar_lea.vmem %s2, %s176
      %s178 = smul.u32 64, %s18
      %p179 = scmp.lt.s32.totalorder %s17, 3
      %s180 = scalar_select %p179, %s17, 3
      %p181 = scmp.lt.s32.totalorder %s178, 255
      %s182 = scalar_select %p181, %s178, 255
      %s183 = smul.addr %s180, 256
      %s184 = sadd.s32 %s182, %s183
      %s185 = smul.addr %s184, 4
      %s186 = scalar_lea.vmem %s0, %s185
      %s187 = smul.u32 64, %s18
      %p188 = scmp.lt.s32.totalorder %s17, 3
      %s189 = scalar_select %p188, %s17, 3
      %s190 = smul.addr %s189, 4
      %s191 = smul.addr %s190, 4
      %s192 = scalar_lea.vmem %s1, %s191
      %s193 = smul.u32 64, %s18
      %p194 = scmp.lt.s32.totalorder %s17, 3
      %s195 = scalar_select %p194, %s17, 3
      %p196 = scmp.lt.s32.totalorder %s193, 255
      %s197 = scalar_select %p196, %s193, 255
      %s198 = smul.addr %s195, 256
      %s199 = sadd.s32 %s197, %s198
      %s200 = smul.addr %s199, 8
      %s201 = scalar_lea.vmem %s2, %s200
      %s202 = smul.u32 64, %s18
      %v204 = vld [vmem:[%s186] sm:$0xf]
      %v205 = vld [vmem:[%s186 + $0x4] sm:$0xf]
      %v206 = vld [vmem:[%s186 + $0x8] sm:$0xf]
      %v207 = vld [vmem:[%s186 + $0xc] sm:$0xf]
      %v208 = vld [vmem:[%s186 + $0x10] sm:$0xf]
      %v209 = vld [vmem:[%s186 + $0x14] sm:$0xf]
      %v210 = vld [vmem:[%s186 + $0x18] sm:$0xf]
      %v211 = vld [vmem:[%s186 + $0x1c] sm:$0xf]
      %v212 = vld [vmem:[%s186 + $0x20] sm:$0xf]
      %v213 = vld [vmem:[%s186 + $0x24] sm:$0xf]
      %v214 = vld [vmem:[%s186 + $0x28] sm:$0xf]
      %v215 = vld [vmem:[%s186 + $0x2c] sm:$0xf]
      %v216 = vld [vmem:[%s186 + $0x30] sm:$0xf]
      %v217 = vld [vmem:[%s186 + $0x34] sm:$0xf]
      %v218 = vld [vmem:[%s186 + $0x38] sm:$0xf]
      %v219 = vld [vmem:[%s186 + $0x3c] sm:$0xf]
      %v220 = vld [vmem:[%s186 + $0x40] sm:$0xf]
      %v221 = vld [vmem:[%s186 + $0x44] sm:$0xf]
      %v222 = vld [vmem:[%s186 + $0x48] sm:$0xf]
      %v223 = vld [vmem:[%s186 + $0x4c] sm:$0xf]
      %v224 = vld [vmem:[%s186 + $0x50] sm:$0xf]
      %v225 = vld [vmem:[%s186 + $0x54] sm:$0xf]
      %v226 = vld [vmem:[%s186 + $0x58] sm:$0xf]
      %v227 = vld [vmem:[%s186 + $0x5c] sm:$0xf]
      %v228 = vld [vmem:[%s186 + $0x60] sm:$0xf]
      %v229 = vld [vmem:[%s186 + $0x64] sm:$0xf]
      %v230 = vld [vmem:[%s186 + $0x68] sm:$0xf]
      %v231 = vld [vmem:[%s186 + $0x6c] sm:$0xf]
      %v232 = vld [vmem:[%s186 + $0x70] sm:$0xf]
      %v233 = vld [vmem:[%s186 + $0x74] sm:$0xf]
      %v234 = vld [vmem:[%s186 + $0x78] sm:$0xf]
      %v235 = vld [vmem:[%s186 + $0x7c] sm:$0xf]
      %v236 = vld [vmem:[%s186 + $0x80] sm:$0xf]
      %v237 = vld [vmem:[%s186 + $0x84] sm:$0xf]
      %v238 = vld [vmem:[%s186 + $0x88] sm:$0xf]
      %v239 = vld [vmem:[%s186 + $0x8c] sm:$0xf]
      %v240 = vld [vmem:[%s186 + $0x90] sm:$0xf]
      %v241 = vld [vmem:[%s186 + $0x94] sm:$0xf]
      %v242 = vld [vmem:[%s186 + $0x98] sm:$0xf]
      %v243 = vld [vmem:[%s186 + $0x9c] sm:$0xf]
      %v244 = vld [vmem:[%s186 + $0xa0] sm:$0xf]
      %v245 = vld [vmem:[%s186 + $0xa4] sm:$0xf]
      %v246 = vld [vmem:[%s186 + $0xa8] sm:$0xf]
      %v247 = vld [vmem:[%s186 + $0xac] sm:$0xf]
      %v248 = vld [vmem:[%s186 + $0xb0] sm:$0xf]
      %v249 = vld [vmem:[%s186 + $0xb4] sm:$0xf]
      %v250 = vld [vmem:[%s186 + $0xb8] sm:$0xf]
      %v251 = vld [vmem:[%s186 + $0xbc] sm:$0xf]
      %v252 = vld [vmem:[%s186 + $0xc0] sm:$0xf]
      %v253 = vld [vmem:[%s186 + $0xc4] sm:$0xf]
      %v254 = vld [vmem:[%s186 + $0xc8] sm:$0xf]
      %v255 = vld [vmem:[%s186 + $0xcc] sm:$0xf]
      %v256 = vld [vmem:[%s186 + $0xd0] sm:$0xf]
      %v257 = vld [vmem:[%s186 + $0xd4] sm:$0xf]
      %v258 = vld [vmem:[%s186 + $0xd8] sm:$0xf]
      %v259 = vld [vmem:[%s186 + $0xdc] sm:$0xf]
      %v260 = vld [vmem:[%s186 + $0xe0] sm:$0xf]
      %v261 = vld [vmem:[%s186 + $0xe4] sm:$0xf]
      %v262 = vld [vmem:[%s186 + $0xe8] sm:$0xf]
      %v263 = vld [vmem:[%s186 + $0xec] sm:$0xf]
      %v264 = vld [vmem:[%s186 + $0xf0] sm:$0xf]
      %v265 = vld [vmem:[%s186 + $0xf4] sm:$0xf]
      %v266 = vld [vmem:[%s186 + $0xf8] sm:$0xf]
      %v267 = vld [vmem:[%s186 + $0xfc] sm:$0xf]
      %v268 = vld [vmem:[%s192] sm:$0xf]
      %v269 = vld [vmem:[%s192 + $0x4] sm:$0xf]
      %v270 = vld [vmem:[%s192 + $0x8] sm:$0xf]
      %v271 = vld [vmem:[%s192 + $0xc] sm:$0xf]
      %v336 = vunpack.c.l.b16 %v204
      %v337 = vunpack.c.l.b16 %v205
      %v338 = vunpack.c.l.b16 %v206
      %v339 = vunpack.c.l.b16 %v207
      %v340 = vunpack.c.l.b16 %v208
      %v341 = vunpack.c.l.b16 %v209
      %v342 = vunpack.c.l.b16 %v210
      %v343 = vunpack.c.l.b16 %v211
      %v344 = vunpack.c.l.b16 %v212
      %v345 = vunpack.c.l.b16 %v213
      %v346 = vunpack.c.l.b16 %v214
      %v347 = vunpack.c.l.b16 %v215
      %v348 = vunpack.c.l.b16 %v216
      %v349 = vunpack.c.l.b16 %v217
      %v350 = vunpack.c.l.b16 %v218
      %v351 = vunpack.c.l.b16 %v219
      %v352 = vunpack.c.l.b16 %v220
      %v353 = vunpack.c.l.b16 %v221
      %v354 = vunpack.c.l.b16 %v222
      %v355 = vunpack.c.l.b16 %v223
      %v356 = vunpack.c.l.b16 %v224
      %v357 = vunpack.c.l.b16 %v225
      %v358 = vunpack.c.l.b16 %v226
      %v359 = vunpack.c.l.b16 %v227
      %v360 = vunpack.c.l.b16 %v228
      %v361 = vunpack.c.l.b16 %v229
      %v362 = vunpack.c.l.b16 %v230
      %v363 = vunpack.c.l.b16 %v231
      %v364 = vunpack.c.l.b16 %v232
      %v365 = vunpack.c.l.b16 %v233
      %v366 = vunpack.c.l.b16 %v234
      %v367 = vunpack.c.l.b16 %v235
      %v368 = vunpack.c.l.b16 %v236
      %v369 = vunpack.c.l.b16 %v237
      %v370 = vunpack.c.l.b16 %v238
      %v371 = vunpack.c.l.b16 %v239
      %v372 = vunpack.c.l.b16 %v240
      %v373 = vunpack.c.l.b16 %v241
      %v374 = vunpack.c.l.b16 %v242
      %v375 = vunpack.c.l.b16 %v243
      %v376 = vunpack.c.l.b16 %v244
      %v377 = vunpack.c.l.b16 %v245
      %v378 = vunpack.c.l.b16 %v246
      %v379 = vunpack.c.l.b16 %v247
      %v380 = vunpack.c.l.b16 %v248
      %v381 = vunpack.c.l.b16 %v249
      %v382 = vunpack.c.l.b16 %v250
      %v383 = vunpack.c.l.b16 %v251
      %v384 = vunpack.c.l.b16 %v252
      %v385 = vunpack.c.l.b16 %v253
      %v386 = vunpack.c.l.b16 %v254
      %v387 = vunpack.c.l.b16 %v255
      %v388 = vunpack.c.l.b16 %v256
      %v389 = vunpack.c.l.b16 %v257
      %v390 = vunpack.c.l.b16 %v258
      %v391 = vunpack.c.l.b16 %v259
      %v392 = vunpack.c.l.b16 %v260
      %v393 = vunpack.c.l.b16 %v261
      %v394 = vunpack.c.l.b16 %v262
      %v395 = vunpack.c.l.b16 %v263
      %v396 = vunpack.c.l.b16 %v264
      %v397 = vunpack.c.l.b16 %v265
      %v398 = vunpack.c.l.b16 %v266
      %v399 = vunpack.c.l.b16 %v267
      %v400 = vpack.c.b16 %v337, %v336
      %v401 = vpack.c.b16 %v339, %v338
      %v402 = vpack.c.b16 %v341, %v340
      %v403 = vpack.c.b16 %v343, %v342
      %v404 = vpack.c.b16 %v345, %v344
      %v405 = vpack.c.b16 %v347, %v346
      %v406 = vpack.c.b16 %v349, %v348
      %v407 = vpack.c.b16 %v351, %v350
      %v408 = vpack.c.b16 %v353, %v352
      %v409 = vpack.c.b16 %v355, %v354
      %v410 = vpack.c.b16 %v357, %v356
      %v411 = vpack.c.b16 %v359, %v358
      %v412 = vpack.c.b16 %v361, %v360
      %v413 = vpack.c.b16 %v363, %v362
      %v414 = vpack.c.b16 %v365, %v364
      %v415 = vpack.c.b16 %v367, %v366
      %v416 = vpack.c.b16 %v369, %v368
      %v417 = vpack.c.b16 %v371, %v370
      %v418 = vpack.c.b16 %v373, %v372
      %v419 = vpack.c.b16 %v375, %v374
      %v420 = vpack.c.b16 %v377, %v376
      %v421 = vpack.c.b16 %v379, %v378
      %v422 = vpack.c.b16 %v381, %v380
      %v423 = vpack.c.b16 %v383, %v382
      %v424 = vpack.c.b16 %v385, %v384
      %v425 = vpack.c.b16 %v387, %v386
      %v426 = vpack.c.b16 %v389, %v388
      %v427 = vpack.c.b16 %v391, %v390
      %v428 = vpack.c.b16 %v393, %v392
      %v429 = vpack.c.b16 %v395, %v394
      %v430 = vpack.c.b16 %v397, %v396
      %v431 = vpack.c.b16 %v399, %v398
      %v436 = vunpack.c.l.b16 %v268
      %v437 = vunpack.c.l.b16 %v269
      %v438 = vunpack.c.l.b16 %v270
      %v439 = vunpack.c.l.b16 %v271
      %v440 = vpack.c.b16 %v437, %v436
      %v441 = vpack.c.b16 %v439, %v438
      %vm444 = vcmask 261120
      %v446 = vsel %vm444, %v400, 0
      %v449 = vsel %vm444, %v401, 0
      %v452 = vsel %vm444, %v402, 0
      %v455 = vsel %vm444, %v403, 0
      %v458 = vsel %vm444, %v404, 0
      %v461 = vsel %vm444, %v405, 0
      %v464 = vsel %vm444, %v406, 0
      %v467 = vsel %vm444, %v407, 0
      %v470 = vsel %vm444, %v408, 0
      %v473 = vsel %vm444, %v409, 0
      %v476 = vsel %vm444, %v410, 0
      %v479 = vsel %vm444, %v411, 0
      %v482 = vsel %vm444, %v412, 0
      %v485 = vsel %vm444, %v413, 0
      %v488 = vsel %vm444, %v414, 0
      %v491 = vsel %vm444, %v415, 0
      %v494 = vsel %vm444, %v416, 0
      %v497 = vsel %vm444, %v417, 0
      %v500 = vsel %vm444, %v418, 0
      %v503 = vsel %vm444, %v419, 0
      %v506 = vsel %vm444, %v420, 0
      %v509 = vsel %vm444, %v421, 0
      %v512 = vsel %vm444, %v422, 0
      %v515 = vsel %vm444, %v423, 0
      %v518 = vsel %vm444, %v424, 0
      %v521 = vsel %vm444, %v425, 0
      %v524 = vsel %vm444, %v426, 0
      %v527 = vsel %vm444, %v427, 0
      %v530 = vsel %vm444, %v428, 0
      %v533 = vsel %vm444, %v429, 0
      %v536 = vsel %vm444, %v430, 0
      %v539 = vsel %vm444, %v431, 0
      %541 = vmatprep.subr.bf16.mxu0 0
      %542 = vmatpush1.bf16.msra.mxu0 0
      %543 = vmatprep.subr.bf16.mxu0 0
      %544 = vmatpush1.bf16.msra.mxu0 0
      %545 = vmatprep.subr.bf16.mxu0 0
      %546 = vmatpush1.bf16.msra.mxu0 0
      %547 = vmatprep.subr.bf16.mxu0 0
      %548 = vmatpush1.bf16.msra.mxu0 0
      %549 = vmatprep.subr.bf16.mxu0 0
      %550 = vmatpush1.bf16.msra.mxu0 0
      %551 = vmatprep.subr.bf16.mxu0 0
      %552 = vmatpush1.bf16.msra.mxu0 0
      %553 = vmatprep.subr.bf16.mxu0 0
      %554 = vmatpush1.bf16.msra.mxu0 %v441
      %555 = vmatprep.subr.bf16.mxu0 0
      %556 = vmatpush1.bf16.msra.mxu0 %v440
      %557 = vmatprep.subr.bf16.mxu0 0
      %558 = vmatpush2.bf16.msra.mxu0 0
      %559 = vmatprep.subr.bf16.mxu0 0
      %560 = vmatpush2.bf16.msra.mxu0 0
      %561 = vmatprep.subr.bf16.mxu0 0
      %562 = vmatpush2.bf16.msra.mxu0 0
      %563 = vmatprep.subr.bf16.mxu0 0
      %564 = vmatpush2.bf16.msra.mxu0 0
      %565 = vmatprep.subr.bf16.mxu0 0
      %566 = vmatpush2.bf16.msra.mxu0 0
      %567 = vmatprep.subr.bf16.mxu0 0
      %568 = vmatpush2.bf16.msra.mxu0 0
      %569 = vmatprep.subr.bf16.mxu0 0
      %570 = vmatpush2.bf16.msra.mxu0 0
      %571 = vmatprep.subr.bf16.mxu0 0
      %572 = vmatpush2.bf16.msra.mxu0 0
      %573 = vmatprep.mubr.bf16.mxu0 0
      %574 = vmatmul.mubr.bf16.gmra.mxu0 %v446
      %v575 = vpop.f32.mrf.mxu0
      %v576 = vadd.f32 0.0, %v575
      %v577 = vpop.f32.mrf.mxu0
      %v578 = vpop.f32.mrf.mxu0
      %v579 = vadd.f32 0.0, %v578
      %v580 = vpop.f32.mrf.mxu0
      %581 = vmatprep.mubr.bf16.mxu0 0
      %582 = vmatmul.mubr.bf16.gmra.mxu0 %v449
      %v583 = vpop.f32.mrf.mxu0
      %v584 = vadd.f32 0.0, %v583
      %v585 = vpop.f32.mrf.mxu0
      %v586 = vpop.f32.mrf.mxu0
      %v587 = vadd.f32 0.0, %v586
      %v588 = vpop.f32.mrf.mxu0
      %589 = vmatprep.mubr.bf16.mxu0 0
      %590 = vmatmul.mubr.bf16.gmra.mxu0 %v452
      %v591 = vpop.f32.mrf.mxu0
      %v592 = vadd.f32 0.0, %v591
      %v593 = vpop.f32.mrf.mxu0
      %v594 = vpop.f32.mrf.mxu0
      %v595 = vadd.f32 0.0, %v594
      %v596 = vpop.f32.mrf.mxu0
      %597 = vmatprep.mubr.bf16.mxu0 0
      %598 = vmatmul.mubr.bf16.gmra.mxu0 %v455
      %v599 = vpop.f32.mrf.mxu0
      %v600 = vadd.f32 0.0, %v599
      %v601 = vpop.f32.mrf.mxu0
      %v602 = vpop.f32.mrf.mxu0
      %v603 = vadd.f32 0.0, %v602
      %v604 = vpop.f32.mrf.mxu0
      %605 = vmatprep.mubr.bf16.mxu0 0
      %606 = vmatmul.mubr.bf16.gmra.mxu0 %v458
      %v607 = vpop.f32.mrf.mxu0
      %v608 = vadd.f32 0.0, %v607
      %v609 = vpop.f32.mrf.mxu0
      %v610 = vpop.f32.mrf.mxu0
      %v611 = vadd.f32 0.0, %v610
      %v612 = vpop.f32.mrf.mxu0
      %613 = vmatprep.mubr.bf16.mxu0 0
      %614 = vmatmul.mubr.bf16.gmra.mxu0 %v461
      %v615 = vpop.f32.mrf.mxu0
      %v616 = vadd.f32 0.0, %v615
      %v617 = vpop.f32.mrf.mxu0
      %v618 = vpop.f32.mrf.mxu0
      %v619 = vadd.f32 0.0, %v618
      %v620 = vpop.f32.mrf.mxu0
      %621 = vmatprep.mubr.bf16.mxu0 0
      %622 = vmatmul.mubr.bf16.gmra.mxu0 %v464
      %v623 = vpop.f32.mrf.mxu0
      %v624 = vadd.f32 0.0, %v623
      %v625 = vpop.f32.mrf.mxu0
      %v626 = vpop.f32.mrf.mxu0
      %v627 = vadd.f32 0.0, %v626
      %v628 = vpop.f32.mrf.mxu0
      %629 = vmatprep.mubr.bf16.mxu0 0
      %630 = vmatmul.mubr.bf16.gmra.mxu0 %v467
      %v631 = vpop.f32.mrf.mxu0
      %v632 = vadd.f32 0.0, %v631
      %v633 = vpop.f32.mrf.mxu0
      %v634 = vpop.f32.mrf.mxu0
      %v635 = vadd.f32 0.0, %v634
      %v636 = vpop.f32.mrf.mxu0
      %637 = vmatprep.mubr.bf16.mxu0 0
      %638 = vmatmul.mubr.bf16.gmra.mxu0 %v470
      %v639 = vpop.f32.mrf.mxu0
      %v640 = vadd.f32 0.0, %v639
      %v641 = vpop.f32.mrf.mxu0
      %v642 = vpop.f32.mrf.mxu0
      %v643 = vadd.f32 0.0, %v642
      %v644 = vpop.f32.mrf.mxu0
      %645 = vmatprep.mubr.bf16.mxu0 0
      %646 = vmatmul.mubr.bf16.gmra.mxu0 %v473
      %v647 = vpop.f32.mrf.mxu0
      %v648 = vadd.f32 0.0, %v647
      %v649 = vpop.f32.mrf.mxu0
      %v650 = vpop.f32.mrf.mxu0
      %v651 = vadd.f32 0.0, %v650
      %v652 = vpop.f32.mrf.mxu0
      %653 = vmatprep.mubr.bf16.mxu0 0
      %654 = vmatmul.mubr.bf16.gmra.mxu0 %v476
      %v655 = vpop.f32.mrf.mxu0
      %v656 = vadd.f32 0.0, %v655
      %v657 = vpop.f32.mrf.mxu0
      %v658 = vpop.f32.mrf.mxu0
      %v659 = vadd.f32 0.0, %v658
      %v660 = vpop.f32.mrf.mxu0
      %661 = vmatprep.mubr.bf16.mxu0 0
      %662 = vmatmul.mubr.bf16.gmra.mxu0 %v479
      %v663 = vpop.f32.mrf.mxu0
      %v664 = vadd.f32 0.0, %v663
      %v665 = vpop.f32.mrf.mxu0
      %v666 = vpop.f32.mrf.mxu0
      %v667 = vadd.f32 0.0, %v666
      %v668 = vpop.f32.mrf.mxu0
      %669 = vmatprep.mubr.bf16.mxu0 0
      %670 = vmatmul.mubr.bf16.gmra.mxu0 %v482
      %v671 = vpop.f32.mrf.mxu0
      %v672 = vadd.f32 0.0, %v671
      %v673 = vpop.f32.mrf.mxu0
      %v674 = vpop.f32.mrf.mxu0
      %v675 = vadd.f32 0.0, %v674
      %v676 = vpop.f32.mrf.mxu0
      %677 = vmatprep.mubr.bf16.mxu0 0
      %678 = vmatmul.mubr.bf16.gmra.mxu0 %v485
      %v679 = vpop.f32.mrf.mxu0
      %v680 = vadd.f32 0.0, %v679
      %v681 = vpop.f32.mrf.mxu0
      %v682 = vpop.f32.mrf.mxu0
      %v683 = vadd.f32 0.0, %v682
      %v684 = vpop.f32.mrf.mxu0
      %685 = vmatprep.mubr.bf16.mxu0 0
      %686 = vmatmul.mubr.bf16.gmra.mxu0 %v488
      %v687 = vpop.f32.mrf.mxu0
      %v688 = vadd.f32 0.0, %v687
      %v689 = vpop.f32.mrf.mxu0
      %v690 = vpop.f32.mrf.mxu0
      %v691 = vadd.f32 0.0, %v690
      %v692 = vpop.f32.mrf.mxu0
      %693 = vmatprep.mubr.bf16.mxu0 0
      %694 = vmatmul.mubr.bf16.gmra.mxu0 %v491
      %v695 = vpop.f32.mrf.mxu0
      %v696 = vadd.f32 0.0, %v695
      %v697 = vpop.f32.mrf.mxu0
      %v698 = vpop.f32.mrf.mxu0
      %v699 = vadd.f32 0.0, %v698
      %v700 = vpop.f32.mrf.mxu0
      %701 = vmatprep.mubr.bf16.mxu0 0
      %702 = vmatmul.mubr.bf16.gmra.mxu0 %v494
      %v703 = vpop.f32.mrf.mxu0
      %v704 = vadd.f32 0.0, %v703
      %v705 = vpop.f32.mrf.mxu0
      %v706 = vpop.f32.mrf.mxu0
      %v707 = vadd.f32 0.0, %v706
      %v708 = vpop.f32.mrf.mxu0
      %709 = vmatprep.mubr.bf16.mxu0 0
      %710 = vmatmul.mubr.bf16.gmra.mxu0 %v497
      %v711 = vpop.f32.mrf.mxu0
      %v712 = vadd.f32 0.0, %v711
      %v713 = vpop.f32.mrf.mxu0
      %v714 = vpop.f32.mrf.mxu0
      %v715 = vadd.f32 0.0, %v714
      %v716 = vpop.f32.mrf.mxu0
      %717 = vmatprep.mubr.bf16.mxu0 0
      %718 = vmatmul.mubr.bf16.gmra.mxu0 %v500
      %v719 = vpop.f32.mrf.mxu0
      %v720 = vadd.f32 0.0, %v719
      %v721 = vpop.f32.mrf.mxu0
      %v722 = vpop.f32.mrf.mxu0
      %v723 = vadd.f32 0.0, %v722
      %v724 = vpop.f32.mrf.mxu0
      %725 = vmatprep.mubr.bf16.mxu0 0
      %726 = vmatmul.mubr.bf16.gmra.mxu0 %v503
      %v727 = vpop.f32.mrf.mxu0
      %v728 = vadd.f32 0.0, %v727
      %v729 = vpop.f32.mrf.mxu0
      %v730 = vpop.f32.mrf.mxu0
      %v731 = vadd.f32 0.0, %v730
      %v732 = vpop.f32.mrf.mxu0
      %733 = vmatprep.mubr.bf16.mxu0 0
      %734 = vmatmul.mubr.bf16.gmra.mxu0 %v506
      %v735 = vpop.f32.mrf.mxu0
      %v736 = vadd.f32 0.0, %v735
      %v737 = vpop.f32.mrf.mxu0
      %v738 = vpop.f32.mrf.mxu0
      %v739 = vadd.f32 0.0, %v738
      %v740 = vpop.f32.mrf.mxu0
      %741 = vmatprep.mubr.bf16.mxu0 0
      %742 = vmatmul.mubr.bf16.gmra.mxu0 %v509
      %v743 = vpop.f32.mrf.mxu0
      %v744 = vadd.f32 0.0, %v743
      %v745 = vpop.f32.mrf.mxu0
      %v746 = vpop.f32.mrf.mxu0
      %v747 = vadd.f32 0.0, %v746
      %v748 = vpop.f32.mrf.mxu0
      %749 = vmatprep.mubr.bf16.mxu0 0
      %750 = vmatmul.mubr.bf16.gmra.mxu0 %v512
      %v751 = vpop.f32.mrf.mxu0
      %v752 = vadd.f32 0.0, %v751
      %v753 = vpop.f32.mrf.mxu0
      %v754 = vpop.f32.mrf.mxu0
      %v755 = vadd.f32 0.0, %v754
      %v756 = vpop.f32.mrf.mxu0
      %757 = vmatprep.mubr.bf16.mxu0 0
      %758 = vmatmul.mubr.bf16.gmra.mxu0 %v515
      %v759 = vpop.f32.mrf.mxu0
      %v760 = vadd.f32 0.0, %v759
      %v761 = vpop.f32.mrf.mxu0
      %v762 = vpop.f32.mrf.mxu0
      %v763 = vadd.f32 0.0, %v762
      %v764 = vpop.f32.mrf.mxu0
      %765 = vmatprep.mubr.bf16.mxu0 0
      %766 = vmatmul.mubr.bf16.gmra.mxu0 %v518
      %v767 = vpop.f32.mrf.mxu0
      %v768 = vadd.f32 0.0, %v767
      %v769 = vpop.f32.mrf.mxu0
      %v770 = vpop.f32.mrf.mxu0
      %v771 = vadd.f32 0.0, %v770
      %v772 = vpop.f32.mrf.mxu0
      %773 = vmatprep.mubr.bf16.mxu0 0
      %774 = vmatmul.mubr.bf16.gmra.mxu0 %v521
      %v775 = vpop.f32.mrf.mxu0
      %v776 = vadd.f32 0.0, %v775
      %v777 = vpop.f32.mrf.mxu0
      %v778 = vpop.f32.mrf.mxu0
      %v779 = vadd.f32 0.0, %v778
      %v780 = vpop.f32.mrf.mxu0
      %781 = vmatprep.mubr.bf16.mxu0 0
      %782 = vmatmul.mubr.bf16.gmra.mxu0 %v524
      %v783 = vpop.f32.mrf.mxu0
      %v784 = vadd.f32 0.0, %v783
      %v785 = vpop.f32.mrf.mxu0
      %v786 = vpop.f32.mrf.mxu0
      %v787 = vadd.f32 0.0, %v786
      %v788 = vpop.f32.mrf.mxu0
      %789 = vmatprep.mubr.bf16.mxu0 0
      %790 = vmatmul.mubr.bf16.gmra.mxu0 %v527
      %v791 = vpop.f32.mrf.mxu0
      %v792 = vadd.f32 0.0, %v791
      %v793 = vpop.f32.mrf.mxu0
      %v794 = vpop.f32.mrf.mxu0
      %v795 = vadd.f32 0.0, %v794
      %v796 = vpop.f32.mrf.mxu0
      %797 = vmatprep.mubr.bf16.mxu0 0
      %798 = vmatmul.mubr.bf16.gmra.mxu0 %v530
      %v799 = vpop.f32.mrf.mxu0
      %v800 = vadd.f32 0.0, %v799
      %v801 = vpop.f32.mrf.mxu0
      %v802 = vpop.f32.mrf.mxu0
      %v803 = vadd.f32 0.0, %v802
      %v804 = vpop.f32.mrf.mxu0
      %805 = vmatprep.mubr.bf16.mxu0 0
      %806 = vmatmul.mubr.bf16.gmra.mxu0 %v533
      %v807 = vpop.f32.mrf.mxu0
      %v808 = vadd.f32 0.0, %v807
      %v809 = vpop.f32.mrf.mxu0
      %v810 = vpop.f32.mrf.mxu0
      %v811 = vadd.f32 0.0, %v810
      %v812 = vpop.f32.mrf.mxu0
      %813 = vmatprep.mubr.bf16.mxu0 0
      %814 = vmatmul.mubr.bf16.gmra.mxu0 %v536
      %v815 = vpop.f32.mrf.mxu0
      %v816 = vadd.f32 0.0, %v815
      %v817 = vpop.f32.mrf.mxu0
      %v818 = vpop.f32.mrf.mxu0
      %v819 = vadd.f32 0.0, %v818
      %v820 = vpop.f32.mrf.mxu0
      %821 = vmatprep.mubr.bf16.mxu0 0
      %822 = vmatmul.mubr.bf16.gmra.mxu0 %v539
      %v823 = vpop.f32.mrf.mxu0
      %v824 = vadd.f32 0.0, %v823
      %v825 = vpop.f32.mrf.mxu0
      %v826 = vpop.f32.mrf.mxu0
      %v827 = vadd.f32 0.0, %v826
      %v828 = vpop.f32.mrf.mxu0
      %829 = vdwg.mxu0
      %v830 = vtanh.pop %v576
      %v831 = vtanh.pop %v579
      %v832 = vtanh.pop %v584
      %v833 = vtanh.pop %v587
      %v834 = vtanh.pop %v592
      %v835 = vtanh.pop %v595
      %v836 = vtanh.pop %v600
      %v837 = vtanh.pop %v603
      %v838 = vtanh.pop %v608
      %v839 = vtanh.pop %v611
      %v840 = vtanh.pop %v616
      %v841 = vtanh.pop %v619
      %v842 = vtanh.pop %v624
      %v843 = vtanh.pop %v627
      %v844 = vtanh.pop %v632
      %v845 = vtanh.pop %v635
      %v846 = vtanh.pop %v640
      %v847 = vtanh.pop %v643
      %v848 = vtanh.pop %v648
      %v849 = vtanh.pop %v651
      %v850 = vtanh.pop %v656
      %v851 = vtanh.pop %v659
      %v852 = vtanh.pop %v664
      %v853 = vtanh.pop %v667
      %v854 = vtanh.pop %v672
      %v855 = vtanh.pop %v675
      %v856 = vtanh.pop %v680
      %v857 = vtanh.pop %v683
      %v858 = vtanh.pop %v688
      %v859 = vtanh.pop %v691
      %v860 = vtanh.pop %v696
      %v861 = vtanh.pop %v699
      %v862 = vtanh.pop %v704
      %v863 = vtanh.pop %v707
      %v864 = vtanh.pop %v712
      %v865 = vtanh.pop %v715
      %v866 = vtanh.pop %v720
      %v867 = vtanh.pop %v723
      %v868 = vtanh.pop %v728
      %v869 = vtanh.pop %v731
      %v870 = vtanh.pop %v736
      %v871 = vtanh.pop %v739
      %v872 = vtanh.pop %v744
      %v873 = vtanh.pop %v747
      %v874 = vtanh.pop %v752
      %v875 = vtanh.pop %v755
      %v876 = vtanh.pop %v760
      %v877 = vtanh.pop %v763
      %v878 = vtanh.pop %v768
      %v879 = vtanh.pop %v771
      %v880 = vtanh.pop %v776
      %v881 = vtanh.pop %v779
      %v882 = vtanh.pop %v784
      %v883 = vtanh.pop %v787
      %v884 = vtanh.pop %v792
      %v885 = vtanh.pop %v795
      %v886 = vtanh.pop %v800
      %v887 = vtanh.pop %v803
      %v888 = vtanh.pop %v808
      %v889 = vtanh.pop %v811
      %v890 = vtanh.pop %v816
      %v891 = vtanh.pop %v819
      %v892 = vtanh.pop %v824
      %v893 = vtanh.pop %v827
      %894 = vst [vmem:[%s201] sm:$0xff] %v830
      %895 = vst [vmem:[%s201 + $0x8] sm:$0xff] %v831
      %896 = vst [vmem:[%s201 + $0x10] sm:$0xff] %v832
      %897 = vst [vmem:[%s201 + $0x18] sm:$0xff] %v833
      %898 = vst [vmem:[%s201 + $0x20] sm:$0xff] %v834
      %899 = vst [vmem:[%s201 + $0x28] sm:$0xff] %v835
      %900 = vst [vmem:[%s201 + $0x30] sm:$0xff] %v836
      %901 = vst [vmem:[%s201 + $0x38] sm:$0xff] %v837
      %902 = vst [vmem:[%s201 + $0x40] sm:$0xff] %v838
      %903 = vst [vmem:[%s201 + $0x48] sm:$0xff] %v839
      %904 = vst [vmem:[%s201 + $0x50] sm:$0xff] %v840
      %905 = vst [vmem:[%s201 + $0x58] sm:$0xff] %v841
      %906 = vst [vmem:[%s201 + $0x60] sm:$0xff] %v842
      %907 = vst [vmem:[%s201 + $0x68] sm:$0xff] %v843
      %908 = vst [vmem:[%s201 + $0x70] sm:$0xff] %v844
      %909 = vst [vmem:[%s201 + $0x78] sm:$0xff] %v845
      %910 = vst [vmem:[%s201 + $0x80] sm:$0xff] %v846
      %911 = vst [vmem:[%s201 + $0x88] sm:$0xff] %v847
      %912 = vst [vmem:[%s201 + $0x90] sm:$0xff] %v848
      %913 = vst [vmem:[%s201 + $0x98] sm:$0xff] %v849
      %914 = vst [vmem:[%s201 + $0xa0] sm:$0xff] %v850
      %915 = vst [vmem:[%s201 + $0xa8] sm:$0xff] %v851
      %916 = vst [vmem:[%s201 + $0xb0] sm:$0xff] %v852
      %917 = vst [vmem:[%s201 + $0xb8] sm:$0xff] %v853
      %918 = vst [vmem:[%s201 + $0xc0] sm:$0xff] %v854
      %919 = vst [vmem:[%s201 + $0xc8] sm:$0xff] %v855
      %920 = vst [vmem:[%s201 + $0xd0] sm:$0xff] %v856
      %921 = vst [vmem:[%s201 + $0xd8] sm:$0xff] %v857
      %922 = vst [vmem:[%s201 + $0xe0] sm:$0xff] %v858
      %923 = vst [vmem:[%s201 + $0xe8] sm:$0xff] %v859
      %924 = vst [vmem:[%s201 + $0xf0] sm:$0xff] %v860
      %925 = vst [vmem:[%s201 + $0xf8] sm:$0xff] %v861
      %926 = vst [vmem:[%s201 + $0x100] sm:$0xff] %v862
      %927 = vst [vmem:[%s201 + $0x108] sm:$0xff] %v863
      %928 = vst [vmem:[%s201 + $0x110] sm:$0xff] %v864
      %929 = vst [vmem:[%s201 + $0x118] sm:$0xff] %v865
      %930 = vst [vmem:[%s201 + $0x120] sm:$0xff] %v866
      %931 = vst [vmem:[%s201 + $0x128] sm:$0xff] %v867
      %932 = vst [vmem:[%s201 + $0x130] sm:$0xff] %v868
      %933 = vst [vmem:[%s201 + $0x138] sm:$0xff] %v869
      %934 = vst [vmem:[%s201 + $0x140] sm:$0xff] %v870
      %935 = vst [vmem:[%s201 + $0x148] sm:$0xff] %v871
      %936 = vst [vmem:[%s201 + $0x150] sm:$0xff] %v872
      %937 = vst [vmem:[%s201 + $0x158] sm:$0xff] %v873
      %938 = vst [vmem:[%s201 + $0x160] sm:$0xff] %v874
      %939 = vst [vmem:[%s201 + $0x168] sm:$0xff] %v875
      %940 = vst [vmem:[%s201 + $0x170] sm:$0xff] %v876
      %941 = vst [vmem:[%s201 + $0x178] sm:$0xff] %v877
      %942 = vst [vmem:[%s201 + $0x180] sm:$0xff] %v878
      %943 = vst [vmem:[%s201 + $0x188] sm:$0xff] %v879
      %944 = vst [vmem:[%s201 + $0x190] sm:$0xff] %v880
      %945 = vst [vmem:[%s201 + $0x198] sm:$0xff] %v881
      %946 = vst [vmem:[%s201 + $0x1a0] sm:$0xff] %v882
      %947 = vst [vmem:[%s201 + $0x1a8] sm:$0xff] %v883
      %948 = vst [vmem:[%s201 + $0x1b0] sm:$0xff] %v884
      %949 = vst [vmem:[%s201 + $0x1b8] sm:$0xff] %v885
      %950 = vst [vmem:[%s201 + $0x1c0] sm:$0xff] %v886
      %951 = vst [vmem:[%s201 + $0x1c8] sm:$0xff] %v887
      %952 = vst [vmem:[%s201 + $0x1d0] sm:$0xff] %v888
      %953 = vst [vmem:[%s201 + $0x1d8] sm:$0xff] %v889
      %954 = vst [vmem:[%s201 + $0x1e0] sm:$0xff] %v890
      %955 = vst [vmem:[%s201 + $0x1e8] sm:$0xff] %v891
      %956 = vst [vmem:[%s201 + $0x1f0] sm:$0xff] %v892
      %957 = vst [vmem:[%s201 + $0x1f8] sm:$0xff] %v893
      %s958 = smul.u32 64, %s18
      %p959 = scmp.lt.s32.totalorder %s17, 3
      %s960 = scalar_select %p959, %s17, 3
      %p961 = scmp.lt.s32.totalorder %s958, 255
      %s962 = scalar_select %p961, %s958, 255
      %s963 = smul.addr %s960, 256
      %s964 = sadd.s32 %s962, %s963
      %s965 = smul.addr %s964, 8
      %s966 = scalar_lea.vmem %s2, %s965
      // Predicated region
      $region29: #{forward.17} parent=27 // pred_check
        %p967 = pneg %p99
      $region30: #{forward.17} parent=27 // pred_check_branch
        %969 = sbr.rel (%p967) target = $region32
      $region31: #{forward.17} parent=27 // pred_region
        %s970 = smul.u32 64, %s18
      $region32: #{forward.17} parent=27 // pred_fallthru
        _
    $region28: #{forward.17} parent=5 // pred_fallthru
      _
    %p971 = scmp.le.s32.totalorder 2, %s8
    // Predicated region
    $region33: #{forward.17} parent=5 // pred_check
      %p972 = pneg %p971
    $region34: #{forward.17} parent=5 // pred_check_branch
      %974 = sbr.rel (%p972) target = $region36
    $region35: #{forward.17} parent=5 // pred_region
      %s975 = ssub.s32 %s8, 2
      // Predicated region
      $region37: #{forward.17} parent=35 // pred_check
        %p976 = pneg %p105
      $region38: #{forward.17} parent=35 // pred_check_branch
        %978 = sbr.rel (%p976) target = $region40
      $region39: #{forward.17} parent=35 // pred_region
        %s979 = smul.u32 64, %s20
        %p980 = scmp.lt.s32.totalorder %s19, 3
        %s981 = scalar_select %p980, %s19, 3
        %p982 = scmp.lt.s32.totalorder %s979, 255
        %s983 = scalar_select %p982, %s979, 255
        %s984 = smul.addr %s981, 256
        %s985 = sadd.s32 %s983, %s984
        %s986 = smul.addr %s985, 8
        %s987 = scalar_lea.vmem %s2, %s986
      $region40: #{forward.17} parent=35 // pred_fallthru
        _
    $region36: #{forward.17} parent=5 // pred_fallthru
      _
  $region6: #{forward.17} parent=0 // loop_footer
    %s12 = sadd.s32 1, %s8
  $region7: #{forward.17} parent=0 // loop_footer_branch
    %7 = sbr.rel target = $region3
  $region8: #{forward.17} parent=0 // loop_exit
    _

</llo_original>
